<compile_context>
chip_gen: v7x
topology: tpu7x:2x2x1
jax: 0.10.0
libtpu: 0.0.40
codegen_flags: <defaults>
</compile_context>

<pallas_src>
import math

import jax
import jax.numpy as jnp
from jax.experimental import pallas as pl
from jax.experimental.pallas import tpu as pltpu

PAD_IDX = 0


# ----------------------------------------------------------------------------
# Pallas kernels
# ----------------------------------------------------------------------------

def _in_proj_kernel(x_ref, w_ref, b_ref, o_ref):
    """o[d] = x @ w[d] + b[d] — one big gate-concatenated input projection."""
    o_ref[0] = (
        jnp.dot(x_ref[...], w_ref[0], preferred_element_type=jnp.float32)
        + b_ref[0]
    )


def in_proj(x_flat, w, b):
    """x_flat: [M, K]; w: [2, K, G]; b: [2, 1, G]  ->  [2, M, G]."""
    M, K = x_flat.shape
    G = w.shape[-1]
    return pl.pallas_call(
        _in_proj_kernel,
        out_shape=jax.ShapeDtypeStruct((2, M, G), jnp.float32),
        grid=(2,),
        in_specs=[
            pl.BlockSpec((M, K), lambda d: (0, 0)),
            pl.BlockSpec((1, K, G), lambda d: (d, 0, 0)),
            pl.BlockSpec((1, 1, G), lambda d: (d, 0, 0)),
        ],
        out_specs=pl.BlockSpec((1, M, G), lambda d: (d, 0, 0)),
        compiler_params=pltpu.CompilerParams(
            dimension_semantics=("parallel",)),
    )(x_flat, w, b)


def _dual_linear_kernel(x_ref, w0_ref, w1_ref, b_ref, o_ref):
    """o[d] = x[0] @ w0[d] + x[1] @ w1[d] + b[d]  (fused dual-input linear)."""
    o_ref[0] = (
        jnp.dot(x_ref[0], w0_ref[0], preferred_element_type=jnp.float32)
        + jnp.dot(x_ref[1], w1_ref[0], preferred_element_type=jnp.float32)
        + b_ref[0]
    )


def dual_linear(x2, w0, w1, b):
    """x2: [2, M, K]; w0/w1: [D, K, N]; b: [D, 1, N]  ->  [D, M, N], D in {1,2}."""
    D = w0.shape[0]
    _, M, K = x2.shape
    N = w0.shape[-1]
    return pl.pallas_call(
        _dual_linear_kernel,
        out_shape=jax.ShapeDtypeStruct((D, M, N), jnp.float32),
        grid=(D,),
        in_specs=[
            pl.BlockSpec((2, M, K), lambda d: (0, 0, 0)),
            pl.BlockSpec((1, K, N), lambda d: (d, 0, 0)),
            pl.BlockSpec((1, K, N), lambda d: (d, 0, 0)),
            pl.BlockSpec((1, 1, N), lambda d: (d, 0, 0)),
        ],
        out_specs=pl.BlockSpec((1, M, N), lambda d: (d, 0, 0)),
        compiler_params=pltpu.CompilerParams(
            dimension_semantics=("parallel",)),
    )(x2, w0, w1, b)


def _gru_final_kernel(xp_ref, m_ref, whh_ref, bhh_ref, hout_ref):
    """Masked GRU (packed semantics), in-kernel time loop, final hidden only.

    xp: [1, T, N, 3H] precomputed x@Wih+bih (gate order r|z|n);
    m:  [T, N, 1] positional mask; whh: [1, H, 3H]; bhh: [1, 1, 3H];
    hout: [1, N, H].  grid=(direction,), backward dir reverses time via index.
    """
    d = pl.program_id(0)
    T = xp_ref.shape[1]
    N = hout_ref.shape[1]
    H = hout_ref.shape[2]

    def step(t, h):
        idx = t + d * (T - 1 - 2 * t)            # fwd: t, bwd: T-1-t
        xg = xp_ref[0, idx]                      # [N, 3H]
        hp = (jnp.dot(h, whh_ref[0], preferred_element_type=jnp.float32)
              + bhh_ref[0])                      # [N, 3H]
        r = jax.nn.sigmoid(xg[:, :H] + hp[:, :H])
        z = jax.nn.sigmoid(xg[:, H:2 * H] + hp[:, H:2 * H])
        n = jnp.tanh(xg[:, 2 * H:] + r * hp[:, 2 * H:])
        h_new = (1.0 - z) * n + z * h
        m = m_ref[idx]                           # [N, 1]
        return m * h_new + (1.0 - m) * h

    hout_ref[0] = jax.lax.fori_loop(0, T, step, jnp.zeros((N, H), jnp.float32))


def gru_final(xp, mask, whh, bhh):
    """xp: [2, T, N, 3H]; mask: [T, N, 1]; whh: [2, H, 3H]; bhh: [2, 1, 3H]
    -> final hiddens [2, N, H] (dir 0 = forward, dir 1 = backward)."""
    _, T, N, G = xp.shape
    H = whh.shape[1]
    return pl.pallas_call(
        _gru_final_kernel,
        out_shape=jax.ShapeDtypeStruct((2, N, H), jnp.float32),
        grid=(2,),
        in_specs=[
            pl.BlockSpec((1, T, N, G), lambda d: (d, 0, 0, 0)),
            pl.BlockSpec((T, N, 1), lambda d: (0, 0, 0)),
            pl.BlockSpec((1, H, G), lambda d: (d, 0, 0)),
            pl.BlockSpec((1, 1, G), lambda d: (d, 0, 0)),
        ],
        out_specs=pl.BlockSpec((1, N, H), lambda d: (d, 0, 0)),
        compiler_params=pltpu.CompilerParams(
            dimension_semantics=("parallel",)),
    )(xp, mask, whh, bhh)


def _gru_seq_kernel(xp_ref, whh_ref, bhh_ref, out_ref):
    """Unmasked GRU (decoder_1), in-kernel time loop, full per-step outputs."""
    d = pl.program_id(0)
    T = xp_ref.shape[1]
    N = out_ref.shape[2]
    H = out_ref.shape[3]

    def step(t, h):
        idx = t + d * (T - 1 - 2 * t)
        xg = xp_ref[0, idx]
        hp = (jnp.dot(h, whh_ref[0], preferred_element_type=jnp.float32)
              + bhh_ref[0])
        r = jax.nn.sigmoid(xg[:, :H] + hp[:, :H])
        z = jax.nn.sigmoid(xg[:, H:2 * H] + hp[:, H:2 * H])
        n = jnp.tanh(xg[:, 2 * H:] + r * hp[:, 2 * H:])
        h_new = (1.0 - z) * n + z * h
        out_ref[0, idx] = h_new                  # store at original time index
        return h_new

    jax.lax.fori_loop(0, T, step, jnp.zeros((N, H), jnp.float32))


def gru_seq(xp, whh, bhh):
    """xp: [2, T, N, 3H]; whh: [2, H, 3H]; bhh: [2, 1, 3H]
    -> outputs [2, T, N, H] in original time order for both directions."""
    _, T, N, G = xp.shape
    H = whh.shape[1]
    return pl.pallas_call(
        _gru_seq_kernel,
        out_shape=jax.ShapeDtypeStruct((2, T, N, H), jnp.float32),
        grid=(2,),
        in_specs=[
            pl.BlockSpec((1, T, N, G), lambda d: (d, 0, 0, 0)),
            pl.BlockSpec((1, H, G), lambda d: (d, 0, 0)),
            pl.BlockSpec((1, 1, G), lambda d: (d, 0, 0)),
        ],
        out_specs=pl.BlockSpec((1, T, N, H), lambda d: (d, 0, 0, 0)),
        compiler_params=pltpu.CompilerParams(
            dimension_semantics=("parallel",)),
    )(xp, whh, bhh)


def _lstm_seq_kernel(xp_ref, cb_ref, whh_ref, out_ref, fin_ref):
    """LSTM (decoder_2), in-kernel time loop.  Input projection (incl. biases)
    is precomputed in xp; the per-sequence attention-context gate contribution
    cb is a constant add per step."""
    d = pl.program_id(0)
    T = xp_ref.shape[1]
    N = fin_ref.shape[1]
    H = fin_ref.shape[2]

    def step(t, carry):
        h, c = carry
        idx = t + d * (T - 1 - 2 * t)
        pre = (xp_ref[0, idx] + cb_ref[0]
               + jnp.dot(h, whh_ref[0], preferred_element_type=jnp.float32))
        i = jax.nn.sigmoid(pre[:, :H])
        f = jax.nn.sigmoid(pre[:, H:2 * H])
        g = jnp.tanh(pre[:, 2 * H:3 * H])
        o = jax.nn.sigmoid(pre[:, 3 * H:])
        c_new = f * c + i * g
        h_new = o * jnp.tanh(c_new)
        out_ref[0, idx] = h_new
        return (h_new, c_new)

    h_fin, _ = jax.lax.fori_loop(
        0, T, step,
        (jnp.zeros((N, H), jnp.float32), jnp.zeros((N, H), jnp.float32)))
    fin_ref[0] = h_fin


def lstm_seq(xp, cb, whh):
    """xp: [2, T, N, 4H]; cb: [2, N, 4H]; whh: [2, H, 4H]
    -> (outputs [2, T, N, H] in original time order, final hidden [2, N, H])."""
    _, T, N, G = xp.shape
    H = whh.shape[1]
    return pl.pallas_call(
        _lstm_seq_kernel,
        out_shape=(jax.ShapeDtypeStruct((2, T, N, H), jnp.float32),
                   jax.ShapeDtypeStruct((2, N, H), jnp.float32)),
        grid=(2,),
        in_specs=[
            pl.BlockSpec((1, T, N, G), lambda d: (d, 0, 0, 0)),
            pl.BlockSpec((1, N, G), lambda d: (d, 0, 0)),
            pl.BlockSpec((1, H, G), lambda d: (d, 0, 0)),
        ],
        out_specs=[pl.BlockSpec((1, T, N, H), lambda d: (d, 0, 0, 0)),
                   pl.BlockSpec((1, N, H), lambda d: (d, 0, 0))],
        compiler_params=pltpu.CompilerParams(
            dimension_semantics=("parallel",)),
    )(xp, cb, whh)


def _combine_kernel(c_ref, m_ref, wout_ref, bout_ref, wctx_ref, cb_ref):
    """Fused: attention over memory + w_out + decoder-2 context projection.

    Emits the per-sequence, gate-concatenated context contribution to
    decoder_2's gates: cb[d] = w_out([mws | C]) @ Wctx[d]   (lane-dense 4*H2).
    """
    C = c_ref[...]                                  # [B, D]
    Mm = m_ref[...]                                 # [B, Tt, D]
    s = jnp.sum(C[:, None, :] * Mm, axis=-1)        # [B, Tt]
    s = s - jnp.max(s, axis=-1, keepdims=True)
    e = jnp.exp(s)
    p = e / jnp.sum(e, axis=-1, keepdims=True)      # exact softmax (PyTorch parity)
    mws = jnp.sum(p[:, :, None] * Mm, axis=1)       # [B, D]
    # ctx = w_out([mws | C]) with the concat replaced by split weight rows.
    ctx = (jnp.dot(mws, wout_ref[0], preferred_element_type=jnp.float32)
           + jnp.dot(C, wout_ref[1], preferred_element_type=jnp.float32)
           + bout_ref[...])                         # [B, 4h]
    cb_ref[0] = jnp.dot(ctx, wctx_ref[0], preferred_element_type=jnp.float32)
    cb_ref[1] = jnp.dot(ctx, wctx_ref[1], preferred_element_type=jnp.float32)


def combine(C, M, wout, bout, wctx):
    """C: [B, 2h]; M: [B, Tt, 2h]; wout: [2, 2h, 4h]; bout: [1, 4h];
    wctx: [2, 4h, 4*H2]  ->  context gate contribution [2, B, 4*H2]."""
    B, D = C.shape
    Tt = M.shape[1]
    H4 = wout.shape[-1]
    G = wctx.shape[-1]
    return pl.pallas_call(
        _combine_kernel,
        out_shape=jax.ShapeDtypeStruct((2, B, G), jnp.float32),
        grid=(1,),
        in_specs=[
            pl.BlockSpec((B, D), lambda i: (0, 0)),
            pl.BlockSpec((B, Tt, D), lambda i: (0, 0, 0)),
            pl.BlockSpec((2, D, H4), lambda i: (0, 0, 0)),
            pl.BlockSpec((1, H4), lambda i: (0, 0)),
            pl.BlockSpec((2, H4, G), lambda i: (0, 0, 0)),
        ],
        out_specs=pl.BlockSpec((2, B, G), lambda i: (0, 0, 0)),
    )(C, M, wout, bout, wctx)


# ----------------------------------------------------------------------------
# Parameters (deterministic init, mirroring the module's __init__, stored in
# kernel-ready layouts: pre-transposed, gate-concatenated, direction-stacked)
# ----------------------------------------------------------------------------

def init_params(key, vocab, E, h, slot_size, intent_size):
    keys = iter(jax.random.split(key, 64))

    def xav(shape):
        fan_out, fan_in = shape
        limit = math.sqrt(6.0 / (fan_in + fan_out))
        return jax.random.uniform(next(keys), shape, jnp.float32, -limit, limit)

    def gru_params(in_dim, hid):
        wih, whh, bih, bhh = [], [], [], []
        for _ in range(2):                                   # forward, backward
            wih.append(xav((3 * hid, in_dim)).T)             # [in, 3H] (r|z|n)
            whh.append(xav((3 * hid, hid)).T)                # [H, 3H]
            bih.append(jnp.zeros((1, 3 * hid), jnp.float32))
            bhh.append(jnp.zeros((1, 3 * hid), jnp.float32))
        return dict(wih=jnp.stack(wih), whh=jnp.stack(whh),
                    bih=jnp.stack(bih), bhh=jnp.stack(bhh))

    def lstm_params(half_in, ctx_in, hid):
        # decoder_2 input = [O1_fwd (half_in) | O1_bwd (half_in) | ctx (ctx_in)]
        in_dim = 2 * half_in + ctx_in
        w1f, w1b, wctx, whh, b = [], [], [], [], []
        for _ in range(2):
            wt = xav((4 * hid, in_dim)).T                    # [in, 4H] (i|f|g|o)
            w1f.append(wt[:half_in])
            w1b.append(wt[half_in:2 * half_in])
            wctx.append(wt[2 * half_in:])
            whh.append(xav((4 * hid, hid)).T)                # [H, 4H]
            b.append(jnp.zeros((1, 4 * hid), jnp.float32))   # b_ih + b_hh (zero init)
        return dict(w1f=jnp.stack(w1f), w1b=jnp.stack(w1b), wctx=jnp.stack(wctx),
                    whh=jnp.stack(whh), b=jnp.stack(b))

    p = {}
    p["embed"] = xav((vocab, E))      # xavier over whole table (init loop overrides pad row)
    p["bigru_m"] = gru_params(E, h)
    p["bigru_c"] = gru_params(E, h)
    p["dec1"] = gru_params(E, 2 * h)
    p["dec2"] = lstm_params(2 * h, 4 * h, 2 * h)

    w = xav((4 * h, 4 * h)).T                                # [4h_in, 4h_out]
    p["w_out"] = dict(w=jnp.stack([w[:2 * h], w[2 * h:]]),   # rows: [mws | C]
                      b=jnp.zeros((1, 4 * h), jnp.float32))
    wi = xav((intent_size, 4 * h)).T                         # [4h, intent]
    p["intent"] = dict(wf=wi[:2 * h][None], wb=wi[2 * h:][None],
                       b=jnp.zeros((1, 1, intent_size), jnp.float32))
    ws = xav((slot_size, 4 * h)).T                           # [4h, slot]
    p["slot"] = dict(wf=ws[:2 * h][None], wb=ws[2 * h:][None],
                     b=jnp.zeros((1, 1, slot_size), jnp.float32))
    return p


# ----------------------------------------------------------------------------
# MemNet_plus forward (slm=False branch)
# ----------------------------------------------------------------------------

def _time_major_embed_and_mask(tokens, emb_table):
    """tokens: [N, T] int32 -> (emb [T, N, E], mask [T, N, 1]) time-major."""
    T = tokens.shape[1]
    x = emb_table[tokens.T]                                       # [T, N, E]
    lengths = jnp.sum((tokens != PAD_IDX).astype(jnp.int32), axis=1)
    mask = (jnp.arange(T)[:, None] < lengths[None, :]).astype(jnp.float32)[:, :, None]
    return x, mask


@jax.jit
def memnet_plus_forward(params, history, current):
    """history: int32 [B, Tturns, Lh]; current: int32 [B, Lc]."""
    B, Tturns, Lh = history.shape
    Lc = current.shape[1]
    emb = params["embed"]
    E = emb.shape[1]
    h = params["bigru_m"]["whh"].shape[1]          # hidden_size
    H2 = 2 * h                                     # decoder hidden size

    # ---- history encoder (bigru_m): final hiddens per turn -> M [B, Tturns, 2h]
    hist_tok = history.reshape(B * Tturns, Lh)
    hist_x, hist_mask = _time_major_embed_and_mask(hist_tok, emb)  # [Lh, BT, E]
    pm = params["bigru_m"]
    xp_m = in_proj(hist_x.reshape(Lh * B * Tturns, E), pm["wih"], pm["bih"])
    xp_m = xp_m.reshape(2, Lh, B * Tturns, 3 * h)
    hfin_m = gru_final(xp_m, hist_mask, pm["whh"], pm["bhh"])      # [2, BT, h]
    M = jnp.concatenate([hfin_m[0], hfin_m[1]], axis=-1).reshape(B, Tturns, H2)

    # ---- current encoder (bigru_c): final hidden -> C [B, 2h]
    cur_x, cur_mask = _time_major_embed_and_mask(current, emb)     # [Lc, B, E]
    pc = params["bigru_c"]
    xp_c = in_proj(cur_x.reshape(Lc * B, E), pc["wih"], pc["bih"])
    xp_c = xp_c.reshape(2, Lc, B, 3 * h)
    hfin_c = gru_final(xp_c, cur_mask, pc["whh"], pc["bhh"])       # [2, B, h]
    C = jnp.concatenate([hfin_c[0], hfin_c[1]], axis=-1)           # [B, 2h]

    # ---- fused attention + w_out + decoder_2 context gate contribution
    cb = combine(C, M, params["w_out"]["w"], params["w_out"]["b"],
                 params["dec2"]["wctx"])                           # [2, B, 4*H2]

    # ---- decoder_1: BiGRU over current embeddings (no packing -> no mask)
    pd1 = params["dec1"]
    xp1 = in_proj(cur_x.reshape(Lc * B, E), pd1["wih"], pd1["bih"])
    xp1 = xp1.reshape(2, Lc, B, 3 * H2)
    o1 = gru_seq(xp1, pd1["whh"], pd1["bhh"])                      # [2, Lc, B, H2]

    # ---- decoder_2: hoisted input projection + BiLSTM (zero init state)
    pd2 = params["dec2"]
    o1_flat = o1.reshape(2, Lc * B, H2)
    xp2 = dual_linear(o1_flat, pd2["w1f"], pd2["w1b"], pd2["b"])   # [2, Lc*B, 4*H2]
    xp2 = xp2.reshape(2, Lc, B, 4 * H2)
    o2, fin = lstm_seq(xp2, cb, pd2["whh"])                        # [2, Lc, B, H2], [2, B, H2]

    # ---- heads (split per-direction weights, no concat of decoder outputs)
    intent_prob = dual_linear(fin, params["intent"]["wf"], params["intent"]["wb"],
                              params["intent"]["b"])[0]            # [B, intent]
    slot_flat = dual_linear(o2.reshape(2, Lc * B, H2),
                            params["slot"]["wf"], params["slot"]["wb"],
                            params["slot"]["b"])[0]                # [Lc*B, slot] (time-major)
    slot_prob = slot_flat.reshape(Lc, B, -1).transpose(1, 0, 2).reshape(B * Lc, -1)
    return slot_prob, intent_prob


# ----------------------------------------------------------------------------
# Demo
# ----------------------------------------------------------------------------

if __name__ == "__main__":
    vocab_size, embed_size, hidden_size = 50, 32, 16
    slot_size, intent_size = 10, 5
    B, Tturns, Lh, Lc = 2, 3, 8, 8

    key = jax.random.PRNGKey(0)
    pk, hk, ck = jax.random.split(key, 3)
    params = init_params(pk, vocab_size, embed_size, hidden_size, slot_size, intent_size)

    # history: [B, Tturns, Lh] with trailing PAD (lengths >= 1)
    hist = jax.random.randint(hk, (B, Tturns, Lh), 1, vocab_size, dtype=jnp.int32)
    hist_lens = jnp.array([[8, 5, 3], [6, 8, 1]], dtype=jnp.int32)
    hist = jnp.where(jnp.arange(Lh)[None, None, :] < hist_lens[:, :, None], hist, PAD_IDX)

    # current: [B, Lc] with trailing PAD (lengths >= 1)
    cur = jax.random.randint(ck, (B, Lc), 1, vocab_size, dtype=jnp.int32)
    cur_lens = jnp.array([7, 4], dtype=jnp.int32)
    cur = jnp.where(jnp.arange(Lc)[None, :] < cur_lens[:, None], cur, PAD_IDX)

    slot_prob, intent_prob = memnet_plus_forward(params, hist, cur)
    jax.block_until_ready((slot_prob, intent_prob))

    assert slot_prob.shape == (B * Lc, slot_size), slot_prob.shape
    assert intent_prob.shape == (B, intent_size), intent_prob.shape
    assert bool(jnp.isfinite(slot_prob).all()) and bool(jnp.isfinite(intent_prob).all())
    print("KERNEL_OK")
</pallas_src>

<mosaic_0001>
module attributes {stable_mosaic.version = 11 : i64} {
  func.func @_in_proj_kernel(%arg0: i32, %arg1: memref<16x32xf32, #tpu.memory_space<vmem>>, %arg2: memref<1x32x48xf32, #tpu.memory_space<vmem>>, %arg3: memref<1x1x48xf32, #tpu.memory_space<vmem>>, %arg4: memref<1x16x48xf32, #tpu.memory_space<vmem>>) attributes {dimension_semantics = [#tpu.dimension_semantics<parallel>], iteration_bounds = array<i64: 2>, scalar_prefetch = 0 : i64, scratch_operands = 0 : i64, tpu.core_type = #tpu.core_type<tc>, window_params = [{pipeline_mode = #tpu.pipeline_mode<synchronous>, transform_indices = @transform_0, window_bounds = array<i64: 16, 32>}, {transform_indices = @transform_1, window_bounds = array<i64: 1, 32, 48>}, {transform_indices = @transform_2, window_bounds = array<i64: 1, 1, 48>}, {transform_indices = @transform_3, window_bounds = array<i64: 1, 16, 48>}]} {
    %c0 = arith.constant 0 : index
    %c0_0 = arith.constant 0 : index
    %0 = vector.load %arg1[%c0, %c0_0] : memref<16x32xf32, #tpu.memory_space<vmem>>, vector<16x32xf32>
    %c0_1 = arith.constant 0 : index
    %c0_2 = arith.constant 0 : index
    %c0_3 = arith.constant 0 : index
    %1 = vector.load %arg2[%c0_1, %c0_2, %c0_3] : memref<1x32x48xf32, #tpu.memory_space<vmem>>, vector<1x32x48xf32>
    %2 = vector.shape_cast %1 : vector<1x32x48xf32> to vector<32x48xf32>
    %cst = arith.constant dense<0.000000e+00> : vector<16x48xf32>
    %3 = tpu.matmul %0, %2, %cst {dimension_numbers = #tpu.dot_dimension_numbers<[1], [0], [0], [1], [0, 0, 1, 1], [], []>} : vector<16x32xf32>, vector<32x48xf32>, vector<16x48xf32> -> vector<16x48xf32>
    %c0_4 = arith.constant 0 : index
    %c0_5 = arith.constant 0 : index
    %c0_6 = arith.constant 0 : index
    %4 = vector.load %arg3[%c0_4, %c0_5, %c0_6] : memref<1x1x48xf32, #tpu.memory_space<vmem>>, vector<1x1x48xf32>
    %5 = vector.shape_cast %4 : vector<1x1x48xf32> to vector<1x48xf32>
    %6 = vector.broadcast %5 : vector<1x48xf32> to vector<16x48xf32>
    %7 = arith.addf %3, %6 : vector<16x48xf32>
    %c0_7 = arith.constant 0 : index
    %c0_8 = arith.constant 0 : index
    %c0_9 = arith.constant 0 : index
    %8 = vector.load %arg4[%c0_7, %c0_8, %c0_9] : memref<1x16x48xf32, #tpu.memory_space<vmem>>, vector<1x16x48xf32>
    %9 = vector.shape_cast %8 : vector<1x16x48xf32> to vector<16x48xf32>
    %10 = vector.shape_cast %7 : vector<16x48xf32> to vector<1x16x48xf32>
    tpu.vector_store %arg4[%c0_7, %c0_8, %c0_9], %10 {strides = array<i32>} : memref<1x16x48xf32, #tpu.memory_space<vmem>>, vector<1x16x48xf32>,
    return
  }
  func.func @transform_0(%arg0: i32) -> (i32, i32) {
    %c0_i32 = arith.constant 0 : i32
    %c0_i32_0 = arith.constant 0 : i32
    %c0_i32_1 = arith.constant 0 : i32
    return %c0_i32, %c0_i32_0 : i32, i32
  }
  func.func @transform_1(%arg0: i32) -> (i32, i32, i32) {
    %c0_i32 = arith.constant 0 : i32
    %c0_i32_0 = arith.constant 0 : i32
    %c0_i32_1 = arith.constant 0 : i32
    return %arg0, %c0_i32, %c0_i32_0 : i32, i32, i32
  }
  func.func @transform_2(%arg0: i32) -> (i32, i32, i32) {
    %c0_i32 = arith.constant 0 : i32
    %c0_i32_0 = arith.constant 0 : i32
    %c0_i32_1 = arith.constant 0 : i32
    return %arg0, %c0_i32, %c0_i32_0 : i32, i32, i32
  }
  func.func @transform_3(%arg0: i32) -> (i32, i32, i32) {
    %c0_i32 = arith.constant 0 : i32
    %c0_i32_0 = arith.constant 0 : i32
    %c0_i32_1 = arith.constant 0 : i32
    return %arg0, %c0_i32, %c0_i32_0 : i32, i32, i32
  }
}

module attributes {stable_mosaic.version = 11 : i64} {
  func.func @_gru_final_kernel(%arg0: i32, %arg1: memref<1x8x2x48xf32, #tpu.memory_space<vmem>>, %arg2: memref<8x2x1xf32, #tpu.memory_space<vmem>>, %arg3: memref<1x16x48xf32, #tpu.memory_space<vmem>>, %arg4: memref<1x1x48xf32, #tpu.memory_space<vmem>>, %arg5: memref<1x2x16xf32, #tpu.memory_space<vmem>>) attributes {dimension_semantics = [#tpu.dimension_semantics<parallel>], iteration_bounds = array<i64: 2>, scalar_prefetch = 0 : i64, scratch_operands = 0 : i64, tpu.core_type = #tpu.core_type<tc>, window_params = [{transform_indices = @transform_0, window_bounds = array<i64: 1, 8, 2, 48>}, {pipeline_mode = #tpu.pipeline_mode<synchronous>, transform_indices = @transform_1, window_bounds = array<i64: 8, 2, 1>}, {transform_indices = @transform_2, window_bounds = array<i64: 1, 16, 48>}, {transform_indices = @transform_3, window_bounds = array<i64: 1, 1, 48>}, {transform_indices = @transform_4, window_bounds = array<i64: 1, 2, 16>}]} {
    %cst = arith.constant 0.000000e+00 : f32
    %0 = vector.broadcast %cst : f32 to vector<2x16xf32>
    %c0_i32 = arith.constant 0 : i32
    %c8_i32 = arith.constant 8 : i32
    %1 = arith.addi %c0_i32, %c8_i32 : i32
    %c1_i32 = arith.constant 1 : i32
    %2 = scf.for %arg6 = %c0_i32 to %1 step %c1_i32 iter_args(%arg7 = %0) -> (vector<2x16xf32>)  : i32 {
      %c2_i32 = arith.constant 2 : i32
      %6 = arith.muli %c2_i32, %arg6 : i32
      %c7_i32 = arith.constant 7 : i32
      %7 = arith.subi %c7_i32, %6 : i32
      %8 = arith.muli %arg0, %7 : i32
      %9 = arith.addi %arg6, %8 : i32
      %c0_3 = arith.constant 0 : index
      %10 = arith.index_cast %9 : i32 to index
      %c0_4 = arith.constant 0 : index
      %c0_5 = arith.constant 0 : index
      %11 = vector.load %arg1[%c0_3, %10, %c0_4, %c0_5] : memref<1x8x2x48xf32, #tpu.memory_space<vmem>>, vector<1x1x2x48xf32>
      %12 = vector.shape_cast %11 : vector<1x1x2x48xf32> to vector<2x48xf32>
      %c0_6 = arith.constant 0 : index
      %c0_7 = arith.constant 0 : index
      %c0_8 = arith.constant 0 : index
      %13 = vector.load %arg3[%c0_6, %c0_7, %c0_8] : memref<1x16x48xf32, #tpu.memory_space<vmem>>, vector<1x16x48xf32>
      %14 = vector.shape_cast %13 : vector<1x16x48xf32> to vector<16x48xf32>
      %cst_9 = arith.constant dense<0.000000e+00> : vector<2x48xf32>
      %15 = tpu.matmul %arg7, %14, %cst_9 {dimension_numbers = #tpu.dot_dimension_numbers<[1], [0], [0], [1], [0, 0, 1, 1], [], []>} : vector<2x16xf32>, vector<16x48xf32>, vector<2x48xf32> -> vector<2x48xf32>
      %c0_10 = arith.constant 0 : index
      %c0_11 = arith.constant 0 : index
      %c0_12 = arith.constant 0 : index
      %16 = vector.load %arg4[%c0_10, %c0_11, %c0_12] : memref<1x1x48xf32, #tpu.memory_space<vmem>>, vector<1x1x48xf32>
      %17 = vector.shape_cast %16 : vector<1x1x48xf32> to vector<1x48xf32>
      %18 = vector.broadcast %17 : vector<1x48xf32> to vector<2x48xf32>
      %19 = arith.addf %15, %18 : vector<2x48xf32>
      %20 = vector.extract_strided_slice %12 {offsets = [0, 0], sizes = [2, 16], strides = [1, 1]} : vector<2x48xf32> to vector<2x16xf32>
      %21 = vector.extract_strided_slice %19 {offsets = [0, 0], sizes = [2, 16], strides = [1, 1]} : vector<2x48xf32> to vector<2x16xf32>
      %22 = arith.addf %20, %21 : vector<2x16xf32>
      %23 = arith.negf %22 : vector<2x16xf32>
      %24 = math.exp %23 : vector<2x16xf32>
      %cst_13 = arith.constant 1.000000e+00 : f32
      %25 = vector.broadcast %cst_13 : f32 to vector<2x16xf32>
      %26 = arith.addf %25, %24 : vector<2x16xf32>
      %27 = arith.divf %25, %26 : vector<2x16xf32>
      %28 = vector.extract_strided_slice %12 {offsets = [0, 16], sizes = [2, 16], strides = [1, 1]} : vector<2x48xf32> to vector<2x16xf32>
      %29 = vector.extract_strided_slice %19 {offsets = [0, 16], sizes = [2, 16], strides = [1, 1]} : vector<2x48xf32> to vector<2x16xf32>
      %30 = arith.addf %28, %29 : vector<2x16xf32>
      %31 = arith.negf %30 : vector<2x16xf32>
      %32 = math.exp %31 : vector<2x16xf32>
      %cst_14 = arith.constant 1.000000e+00 : f32
      %33 = vector.broadcast %cst_14 : f32 to vector<2x16xf32>
      %34 = arith.addf %33, %32 : vector<2x16xf32>
      %35 = arith.divf %33, %34 : vector<2x16xf32>
      %36 = vector.extract_strided_slice %12 {offsets = [0, 32], sizes = [2, 16], strides = [1, 1]} : vector<2x48xf32> to vector<2x16xf32>
      %37 = vector.extract_strided_slice %19 {offsets = [0, 32], sizes = [2, 16], strides = [1, 1]} : vector<2x48xf32> to vector<2x16xf32>
      %38 = arith.mulf %27, %37 : vector<2x16xf32>
      %39 = arith.addf %36, %38 : vector<2x16xf32>
      %40 = math.tanh %39 : vector<2x16xf32>
      %cst_15 = arith.constant 1.000000e+00 : f32
      %41 = vector.broadcast %cst_15 : f32 to vector<2x16xf32>
      %42 = arith.subf %41, %35 : vector<2x16xf32>
      %43 = arith.mulf %42, %40 : vector<2x16xf32>
      %44 = arith.mulf %35, %arg7 : vector<2x16xf32>
      %45 = arith.addf %43, %44 : vector<2x16xf32>
      %46 = arith.index_cast %9 : i32 to index
      %c0_16 = arith.constant 0 : index
      %c0_17 = arith.constant 0 : index
      %47 = vector.load %arg2[%46, %c0_16, %c0_17] : memref<8x2x1xf32, #tpu.memory_space<vmem>>, vector<1x2x1xf32>
      %48 = vector.shape_cast %47 : vector<1x2x1xf32> to vector<2x1xf32>
      %49 = vector.broadcast %48 : vector<2x1xf32> to vector<2x16xf32>
      %50 = arith.mulf %49, %45 : vector<2x16xf32>
      %cst_18 = arith.constant 1.000000e+00 : f32
      %51 = vector.broadcast %cst_18 : f32 to vector<2x1xf32>
      %52 = arith.subf %51, %48 : vector<2x1xf32>
      %53 = vector.broadcast %52 : vector<2x1xf32> to vector<2x16xf32>
      %54 = arith.mulf %53, %arg7 : vector<2x16xf32>
      %55 = arith.addf %50, %54 : vector<2x16xf32>
      scf.yield %55 : vector<2x16xf32>
    }
    %c8_i32_0 = arith.constant 8 : i32
    %c0 = arith.constant 0 : index
    %c0_1 = arith.constant 0 : index
    %c0_2 = arith.constant 0 : index
    %3 = vector.load %arg5[%c0, %c0_1, %c0_2] : memref<1x2x16xf32, #tpu.memory_space<vmem>>, vector<1x2x16xf32>
    %4 = vector.shape_cast %3 : vector<1x2x16xf32> to vector<2x16xf32>
    %5 = vector.shape_cast %2 : vector<2x16xf32> to vector<1x2x16xf32>
    tpu.vector_store %arg5[%c0, %c0_1, %c0_2], %5 {strides = array<i32>} : memref<1x2x16xf32, #tpu.memory_space<vmem>>, vector<1x2x16xf32>,
    return
  }
  func.func @transform_0(%arg0: i32) -> (i32, i32, i32, i32) {
    %c0_i32 = arith.constant 0 : i32
    %c0_i32_0 = arith.constant 0 : i32
    %c0_i32_1 = arith.constant 0 : i32
    %c0_i32_2 = arith.constant 0 : i32
    return %arg0, %c0_i32, %c0_i32_0, %c0_i32_1 : i32, i32, i32, i32
  }
  func.func @transform_1(%arg0: i32) -> (i32, i32, i32) {
    %c0_i32 = arith.constant 0 : i32
    %c0_i32_0 = arith.constant 0 : i32
    %c0_i32_1 = arith.constant 0 : i32
    %c0_i32_2 = arith.constant 0 : i32
    return %c0_i32, %c0_i32_0, %c0_i32_1 : i32, i32, i32
  }
  func.func @transform_2(%arg0: i32) -> (i32, i32, i32) {
    %c0_i32 = arith.constant 0 : i32
    %c0_i32_0 = arith.constant 0 : i32
    %c0_i32_1 = arith.constant 0 : i32
    return %arg0, %c0_i32, %c0_i32_0 : i32, i32, i32
  }
  func.func @transform_3(%arg0: i32) -> (i32, i32, i32) {
    %c0_i32 = arith.constant 0 : i32
    %c0_i32_0 = arith.constant 0 : i32
    %c0_i32_1 = arith.constant 0 : i32
    return %arg0, %c0_i32, %c0_i32_0 : i32, i32, i32
  }
  func.func @transform_4(%arg0: i32) -> (i32, i32, i32) {
    %c0_i32 = arith.constant 0 : i32
    %c0_i32_0 = arith.constant 0 : i32
    %c0_i32_1 = arith.constant 0 : i32
    return %arg0, %c0_i32, %c0_i32_0 : i32, i32, i32
  }
}

module attributes {stable_mosaic.version = 11 : i64} {
  func.func @_in_proj_kernel(%arg0: i32, %arg1: memref<48x32xf32, #tpu.memory_space<vmem>>, %arg2: memref<1x32x48xf32, #tpu.memory_space<vmem>>, %arg3: memref<1x1x48xf32, #tpu.memory_space<vmem>>, %arg4: memref<1x48x48xf32, #tpu.memory_space<vmem>>) attributes {dimension_semantics = [#tpu.dimension_semantics<parallel>], iteration_bounds = array<i64: 2>, scalar_prefetch = 0 : i64, scratch_operands = 0 : i64, tpu.core_type = #tpu.core_type<tc>, window_params = [{pipeline_mode = #tpu.pipeline_mode<synchronous>, transform_indices = @transform_0, window_bounds = array<i64: 48, 32>}, {transform_indices = @transform_1, window_bounds = array<i64: 1, 32, 48>}, {transform_indices = @transform_2, window_bounds = array<i64: 1, 1, 48>}, {transform_indices = @transform_3, window_bounds = array<i64: 1, 48, 48>}]} {
    %c0 = arith.constant 0 : index
    %c0_0 = arith.constant 0 : index
    %0 = vector.load %arg1[%c0, %c0_0] : memref<48x32xf32, #tpu.memory_space<vmem>>, vector<48x32xf32>
    %c0_1 = arith.constant 0 : index
    %c0_2 = arith.constant 0 : index
    %c0_3 = arith.constant 0 : index
    %1 = vector.load %arg2[%c0_1, %c0_2, %c0_3] : memref<1x32x48xf32, #tpu.memory_space<vmem>>, vector<1x32x48xf32>
    %2 = vector.shape_cast %1 : vector<1x32x48xf32> to vector<32x48xf32>
    %cst = arith.constant dense<0.000000e+00> : vector<48x48xf32>
    %3 = tpu.matmul %0, %2, %cst {dimension_numbers = #tpu.dot_dimension_numbers<[1], [0], [0], [1], [0, 0, 1, 1], [], []>} : vector<48x32xf32>, vector<32x48xf32>, vector<48x48xf32> -> vector<48x48xf32>
    %c0_4 = arith.constant 0 : index
    %c0_5 = arith.constant 0 : index
    %c0_6 = arith.constant 0 : index
    %4 = vector.load %arg3[%c0_4, %c0_5, %c0_6] : memref<1x1x48xf32, #tpu.memory_space<vmem>>, vector<1x1x48xf32>
    %5 = vector.shape_cast %4 : vector<1x1x48xf32> to vector<1x48xf32>
    %6 = vector.broadcast %5 : vector<1x48xf32> to vector<48x48xf32>
    %7 = arith.addf %3, %6 : vector<48x48xf32>
    %c0_7 = arith.constant 0 : index
    %c0_8 = arith.constant 0 : index
    %c0_9 = arith.constant 0 : index
    %8 = vector.load %arg4[%c0_7, %c0_8, %c0_9] : memref<1x48x48xf32, #tpu.memory_space<vmem>>, vector<1x48x48xf32>
    %9 = vector.shape_cast %8 : vector<1x48x48xf32> to vector<48x48xf32>
    %10 = vector.shape_cast %7 : vector<48x48xf32> to vector<1x48x48xf32>
    tpu.vector_store %arg4[%c0_7, %c0_8, %c0_9], %10 {strides = array<i32>} : memref<1x48x48xf32, #tpu.memory_space<vmem>>, vector<1x48x48xf32>,
    return
  }
  func.func @transform_0(%arg0: i32) -> (i32, i32) {
    %c0_i32 = arith.constant 0 : i32
    %c0_i32_0 = arith.constant 0 : i32
    %c0_i32_1 = arith.constant 0 : i32
    return %c0_i32, %c0_i32_0 : i32, i32
  }
  func.func @transform_1(%arg0: i32) -> (i32, i32, i32) {
    %c0_i32 = arith.constant 0 : i32
    %c0_i32_0 = arith.constant 0 : i32
    %c0_i32_1 = arith.constant 0 : i32
    return %arg0, %c0_i32, %c0_i32_0 : i32, i32, i32
  }
  func.func @transform_2(%arg0: i32) -> (i32, i32, i32) {
    %c0_i32 = arith.constant 0 : i32
    %c0_i32_0 = arith.constant 0 : i32
    %c0_i32_1 = arith.constant 0 : i32
    return %arg0, %c0_i32, %c0_i32_0 : i32, i32, i32
  }
  func.func @transform_3(%arg0: i32) -> (i32, i32, i32) {
    %c0_i32 = arith.constant 0 : i32
    %c0_i32_0 = arith.constant 0 : i32
    %c0_i32_1 = arith.constant 0 : i32
    return %arg0, %c0_i32, %c0_i32_0 : i32, i32, i32
  }
}

module attributes {stable_mosaic.version = 11 : i64} {
  func.func @_gru_final_kernel(%arg0: i32, %arg1: memref<1x8x6x48xf32, #tpu.memory_space<vmem>>, %arg2: memref<8x6x1xf32, #tpu.memory_space<vmem>>, %arg3: memref<1x16x48xf32, #tpu.memory_space<vmem>>, %arg4: memref<1x1x48xf32, #tpu.memory_space<vmem>>, %arg5: memref<1x6x16xf32, #tpu.memory_space<vmem>>) attributes {dimension_semantics = [#tpu.dimension_semantics<parallel>], iteration_bounds = array<i64: 2>, scalar_prefetch = 0 : i64, scratch_operands = 0 : i64, tpu.core_type = #tpu.core_type<tc>, window_params = [{transform_indices = @transform_0, window_bounds = array<i64: 1, 8, 6, 48>}, {pipeline_mode = #tpu.pipeline_mode<synchronous>, transform_indices = @transform_1, window_bounds = array<i64: 8, 6, 1>}, {transform_indices = @transform_2, window_bounds = array<i64: 1, 16, 48>}, {transform_indices = @transform_3, window_bounds = array<i64: 1, 1, 48>}, {transform_indices = @transform_4, window_bounds = array<i64: 1, 6, 16>}]} {
    %cst = arith.constant 0.000000e+00 : f32
    %0 = vector.broadcast %cst : f32 to vector<6x16xf32>
    %c0_i32 = arith.constant 0 : i32
    %c8_i32 = arith.constant 8 : i32
    %1 = arith.addi %c0_i32, %c8_i32 : i32
    %c1_i32 = arith.constant 1 : i32
    %2 = scf.for %arg6 = %c0_i32 to %1 step %c1_i32 iter_args(%arg7 = %0) -> (vector<6x16xf32>)  : i32 {
      %c2_i32 = arith.constant 2 : i32
      %6 = arith.muli %c2_i32, %arg6 : i32
      %c7_i32 = arith.constant 7 : i32
      %7 = arith.subi %c7_i32, %6 : i32
      %8 = arith.muli %arg0, %7 : i32
      %9 = arith.addi %arg6, %8 : i32
      %c0_3 = arith.constant 0 : index
      %10 = arith.index_cast %9 : i32 to index
      %c0_4 = arith.constant 0 : index
      %c0_5 = arith.constant 0 : index
      %11 = vector.load %arg1[%c0_3, %10, %c0_4, %c0_5] : memref<1x8x6x48xf32, #tpu.memory_space<vmem>>, vector<1x1x6x48xf32>
      %12 = vector.shape_cast %11 : vector<1x1x6x48xf32> to vector<6x48xf32>
      %c0_6 = arith.constant 0 : index
      %c0_7 = arith.constant 0 : index
      %c0_8 = arith.constant 0 : index
      %13 = vector.load %arg3[%c0_6, %c0_7, %c0_8] : memref<1x16x48xf32, #tpu.memory_space<vmem>>, vector<1x16x48xf32>
      %14 = vector.shape_cast %13 : vector<1x16x48xf32> to vector<16x48xf32>
      %cst_9 = arith.constant dense<0.000000e+00> : vector<6x48xf32>
      %15 = tpu.matmul %arg7, %14, %cst_9 {dimension_numbers = #tpu.dot_dimension_numbers<[1], [0], [0], [1], [0, 0, 1, 1], [], []>} : vector<6x16xf32>, vector<16x48xf32>, vector<6x48xf32> -> vector<6x48xf32>
      %c0_10 = arith.constant 0 : index
      %c0_11 = arith.constant 0 : index
      %c0_12 = arith.constant 0 : index
      %16 = vector.load %arg4[%c0_10, %c0_11, %c0_12] : memref<1x1x48xf32, #tpu.memory_space<vmem>>, vector<1x1x48xf32>
      %17 = vector.shape_cast %16 : vector<1x1x48xf32> to vector<1x48xf32>
      %18 = vector.broadcast %17 : vector<1x48xf32> to vector<6x48xf32>
      %19 = arith.addf %15, %18 : vector<6x48xf32>
      %20 = vector.extract_strided_slice %12 {offsets = [0, 0], sizes = [6, 16], strides = [1, 1]} : vector<6x48xf32> to vector<6x16xf32>
      %21 = vector.extract_strided_slice %19 {offsets = [0, 0], sizes = [6, 16], strides = [1, 1]} : vector<6x48xf32> to vector<6x16xf32>
      %22 = arith.addf %20, %21 : vector<6x16xf32>
      %23 = arith.negf %22 : vector<6x16xf32>
      %24 = math.exp %23 : vector<6x16xf32>
      %cst_13 = arith.constant 1.000000e+00 : f32
      %25 = vector.broadcast %cst_13 : f32 to vector<6x16xf32>
      %26 = arith.addf %25, %24 : vector<6x16xf32>
      %27 = arith.divf %25, %26 : vector<6x16xf32>
      %28 = vector.extract_strided_slice %12 {offsets = [0, 16], sizes = [6, 16], strides = [1, 1]} : vector<6x48xf32> to vector<6x16xf32>
      %29 = vector.extract_strided_slice %19 {offsets = [0, 16], sizes = [6, 16], strides = [1, 1]} : vector<6x48xf32> to vector<6x16xf32>
      %30 = arith.addf %28, %29 : vector<6x16xf32>
      %31 = arith.negf %30 : vector<6x16xf32>
      %32 = math.exp %31 : vector<6x16xf32>
      %cst_14 = arith.constant 1.000000e+00 : f32
      %33 = vector.broadcast %cst_14 : f32 to vector<6x16xf32>
      %34 = arith.addf %33, %32 : vector<6x16xf32>
      %35 = arith.divf %33, %34 : vector<6x16xf32>
      %36 = vector.extract_strided_slice %12 {offsets = [0, 32], sizes = [6, 16], strides = [1, 1]} : vector<6x48xf32> to vector<6x16xf32>
      %37 = vector.extract_strided_slice %19 {offsets = [0, 32], sizes = [6, 16], strides = [1, 1]} : vector<6x48xf32> to vector<6x16xf32>
      %38 = arith.mulf %27, %37 : vector<6x16xf32>
      %39 = arith.addf %36, %38 : vector<6x16xf32>
      %40 = math.tanh %39 : vector<6x16xf32>
      %cst_15 = arith.constant 1.000000e+00 : f32
      %41 = vector.broadcast %cst_15 : f32 to vector<6x16xf32>
      %42 = arith.subf %41, %35 : vector<6x16xf32>
      %43 = arith.mulf %42, %40 : vector<6x16xf32>
      %44 = arith.mulf %35, %arg7 : vector<6x16xf32>
      %45 = arith.addf %43, %44 : vector<6x16xf32>
      %46 = arith.index_cast %9 : i32 to index
      %c0_16 = arith.constant 0 : index
      %c0_17 = arith.constant 0 : index
      %47 = vector.load %arg2[%46, %c0_16, %c0_17] : memref<8x6x1xf32, #tpu.memory_space<vmem>>, vector<1x6x1xf32>
      %48 = vector.shape_cast %47 : vector<1x6x1xf32> to vector<6x1xf32>
      %49 = vector.broadcast %48 : vector<6x1xf32> to vector<6x16xf32>
      %50 = arith.mulf %49, %45 : vector<6x16xf32>
      %cst_18 = arith.constant 1.000000e+00 : f32
      %51 = vector.broadcast %cst_18 : f32 to vector<6x1xf32>
      %52 = arith.subf %51, %48 : vector<6x1xf32>
      %53 = vector.broadcast %52 : vector<6x1xf32> to vector<6x16xf32>
      %54 = arith.mulf %53, %arg7 : vector<6x16xf32>
      %55 = arith.addf %50, %54 : vector<6x16xf32>
      scf.yield %55 : vector<6x16xf32>
    }
    %c8_i32_0 = arith.constant 8 : i32
    %c0 = arith.constant 0 : index
    %c0_1 = arith.constant 0 : index
    %c0_2 = arith.constant 0 : index
    %3 = vector.load %arg5[%c0, %c0_1, %c0_2] : memref<1x6x16xf32, #tpu.memory_space<vmem>>, vector<1x6x16xf32>
    %4 = vector.shape_cast %3 : vector<1x6x16xf32> to vector<6x16xf32>
    %5 = vector.shape_cast %2 : vector<6x16xf32> to vector<1x6x16xf32>
    tpu.vector_store %arg5[%c0, %c0_1, %c0_2], %5 {strides = array<i32>} : memref<1x6x16xf32, #tpu.memory_space<vmem>>, vector<1x6x16xf32>,
    return
  }
  func.func @transform_0(%arg0: i32) -> (i32, i32, i32, i32) {
    %c0_i32 = arith.constant 0 : i32
    %c0_i32_0 = arith.constant 0 : i32
    %c0_i32_1 = arith.constant 0 : i32
    %c0_i32_2 = arith.constant 0 : i32
    return %arg0, %c0_i32, %c0_i32_0, %c0_i32_1 : i32, i32, i32, i32
  }
  func.func @transform_1(%arg0: i32) -> (i32, i32, i32) {
    %c0_i32 = arith.constant 0 : i32
    %c0_i32_0 = arith.constant 0 : i32
    %c0_i32_1 = arith.constant 0 : i32
    %c0_i32_2 = arith.constant 0 : i32
    return %c0_i32, %c0_i32_0, %c0_i32_1 : i32, i32, i32
  }
  func.func @transform_2(%arg0: i32) -> (i32, i32, i32) {
    %c0_i32 = arith.constant 0 : i32
    %c0_i32_0 = arith.constant 0 : i32
    %c0_i32_1 = arith.constant 0 : i32
    return %arg0, %c0_i32, %c0_i32_0 : i32, i32, i32
  }
  func.func @transform_3(%arg0: i32) -> (i32, i32, i32) {
    %c0_i32 = arith.constant 0 : i32
    %c0_i32_0 = arith.constant 0 : i32
    %c0_i32_1 = arith.constant 0 : i32
    return %arg0, %c0_i32, %c0_i32_0 : i32, i32, i32
  }
  func.func @transform_4(%arg0: i32) -> (i32, i32, i32) {
    %c0_i32 = arith.constant 0 : i32
    %c0_i32_0 = arith.constant 0 : i32
    %c0_i32_1 = arith.constant 0 : i32
    return %arg0, %c0_i32, %c0_i32_0 : i32, i32, i32
  }
}

module attributes {stable_mosaic.version = 11 : i64} {
  func.func @_combine_kernel(%arg0: i32, %arg1: memref<2x32xf32, #tpu.memory_space<vmem>>, %arg2: memref<2x3x32xf32, #tpu.memory_space<vmem>>, %arg3: memref<2x32x64xf32, #tpu.memory_space<vmem>>, %arg4: memref<1x64xf32, #tpu.memory_space<vmem>>, %arg5: memref<2x64x128xf32, #tpu.memory_space<vmem>>, %arg6: memref<2x2x128xf32, #tpu.memory_space<vmem>>) attributes {dimension_semantics = [#tpu.dimension_semantics<arbitrary>], iteration_bounds = array<i64: 1>, scalar_prefetch = 0 : i64, scratch_operands = 0 : i64, tpu.core_type = #tpu.core_type<tc>, window_params = [{pipeline_mode = #tpu.pipeline_mode<synchronous>, transform_indices = @transform_0, window_bounds = array<i64: 2, 32>}, {pipeline_mode = #tpu.pipeline_mode<synchronous>, transform_indices = @transform_1, window_bounds = array<i64: 2, 3, 32>}, {pipeline_mode = #tpu.pipeline_mode<synchronous>, transform_indices = @transform_2, window_bounds = array<i64: 2, 32, 64>}, {pipeline_mode = #tpu.pipeline_mode<synchronous>, transform_indices = @transform_3, window_bounds = array<i64: 1, 64>}, {pipeline_mode = #tpu.pipeline_mode<synchronous>, transform_indices = @transform_4, window_bounds = array<i64: 2, 64, 128>}, {pipeline_mode = #tpu.pipeline_mode<synchronous>, transform_indices = @transform_5, window_bounds = array<i64: 2, 2, 128>}]} {
    %c0 = arith.constant 0 : index
    %c0_0 = arith.constant 0 : index
    %0 = vector.load %arg1[%c0, %c0_0] : memref<2x32xf32, #tpu.memory_space<vmem>>, vector<2x32xf32>
    %c0_1 = arith.constant 0 : index
    %c0_2 = arith.constant 0 : index
    %c0_3 = arith.constant 0 : index
    %1 = vector.load %arg2[%c0_1, %c0_2, %c0_3] : memref<2x3x32xf32, #tpu.memory_space<vmem>>, vector<2x3x32xf32>
    %2 = vector.shape_cast %0 : vector<2x32xf32> to vector<2x1x32xf32>
    %3 = vector.broadcast %2 : vector<2x1x32xf32> to vector<2x3x32xf32>
    %4 = arith.mulf %3, %1 : vector<2x3x32xf32>
    %cst = arith.constant dense<0.000000e+00> : vector<2x3xf32>
    %5 = vector.multi_reduction <add>, %4, %cst [2] : vector<2x3x32xf32> to vector<2x3xf32>
    %cst_4 = arith.constant dense<0xFF800000> : vector<2xf32>
    %6 = vector.multi_reduction <maximumf>, %5, %cst_4 [1] : vector<2x3xf32> to vector<2xf32>
    %7 = vector.shape_cast %6 : vector<2xf32> to vector<2x1xf32>
    %8 = vector.broadcast %7 : vector<2x1xf32> to vector<2x3xf32>
    %9 = arith.subf %5, %8 : vector<2x3xf32>
    %10 = math.exp %9 : vector<2x3xf32>
    %cst_5 = arith.constant dense<0.000000e+00> : vector<2xf32>
    %11 = vector.multi_reduction <add>, %10, %cst_5 [1] : vector<2x3xf32> to vector<2xf32>
    %12 = vector.shape_cast %11 : vector<2xf32> to vector<2x1xf32>
    %13 = vector.broadcast %12 : vector<2x1xf32> to vector<2x3xf32>
    %14 = arith.divf %10, %13 : vector<2x3xf32>
    %15 = vector.shape_cast %14 : vector<2x3xf32> to vector<2x3x1xf32>
    %16 = vector.broadcast %15 : vector<2x3x1xf32> to vector<2x3x32xf32>
    %17 = arith.mulf %16, %1 : vector<2x3x32xf32>
    %cst_6 = arith.constant dense<0.000000e+00> : vector<2x32xf32>
    %18 = vector.multi_reduction <add>, %17, %cst_6 [1] : vector<2x3x32xf32> to vector<2x32xf32>
    %c0_7 = arith.constant 0 : index
    %c0_8 = arith.constant 0 : index
    %c0_9 = arith.constant 0 : index
    %19 = vector.load %arg3[%c0_7, %c0_8, %c0_9] : memref<2x32x64xf32, #tpu.memory_space<vmem>>, vector<1x32x64xf32>
    %20 = vector.shape_cast %19 : vector<1x32x64xf32> to vector<32x64xf32>
    %cst_10 = arith.constant dense<0.000000e+00> : vector<2x64xf32>
    %21 = tpu.matmul %18, %20, %cst_10 {dimension_numbers = #tpu.dot_dimension_numbers<[1], [0], [0], [1], [0, 0, 1, 1], [], []>} : vector<2x32xf32>, vector<32x64xf32>, vector<2x64xf32> -> vector<2x64xf32>
    %c1 = arith.constant 1 : index
    %c0_11 = arith.constant 0 : index
    %c0_12 = arith.constant 0 : index
    %22 = vector.load %arg3[%c1, %c0_11, %c0_12] : memref<2x32x64xf32, #tpu.memory_space<vmem>>, vector<1x32x64xf32>
    %23 = vector.shape_cast %22 : vector<1x32x64xf32> to vector<32x64xf32>
    %cst_13 = arith.constant dense<0.000000e+00> : vector<2x64xf32>
    %24 = tpu.matmul %0, %23, %cst_13 {dimension_numbers = #tpu.dot_dimension_numbers<[1], [0], [0], [1], [0, 0, 1, 1], [], []>} : vector<2x32xf32>, vector<32x64xf32>, vector<2x64xf32> -> vector<2x64xf32>
    %25 = arith.addf %21, %24 : vector<2x64xf32>
    %c0_14 = arith.constant 0 : index
    %c0_15 = arith.constant 0 : index
    %26 = vector.load %arg4[%c0_14, %c0_15] : memref<1x64xf32, #tpu.memory_space<vmem>>, vector<1x64xf32>
    %27 = vector.broadcast %26 : vector<1x64xf32> to vector<2x64xf32>
    %28 = arith.addf %25, %27 : vector<2x64xf32>
    %c0_16 = arith.constant 0 : index
    %c0_17 = arith.constant 0 : index
    %c0_18 = arith.constant 0 : index
    %29 = vector.load %arg5[%c0_16, %c0_17, %c0_18] : memref<2x64x128xf32, #tpu.memory_space<vmem>>, vector<1x64x128xf32>
    %30 = vector.shape_cast %29 : vector<1x64x128xf32> to vector<64x128xf32>
    %cst_19 = arith.constant dense<0.000000e+00> : vector<2x128xf32>
    %31 = tpu.matmul %28, %30, %cst_19 {dimension_numbers = #tpu.dot_dimension_numbers<[1], [0], [0], [1], [0, 0, 1, 1], [], []>} : vector<2x64xf32>, vector<64x128xf32>, vector<2x128xf32> -> vector<2x128xf32>
    %c0_20 = arith.constant 0 : index
    %c0_21 = arith.constant 0 : index
    %c0_22 = arith.constant 0 : index
    %32 = vector.load %arg6[%c0_20, %c0_21, %c0_22] : memref<2x2x128xf32, #tpu.memory_space<vmem>>, vector<1x2x128xf32>
    %33 = vector.shape_cast %32 : vector<1x2x128xf32> to vector<2x128xf32>
    %34 = vector.shape_cast %31 : vector<2x128xf32> to vector<1x2x128xf32>
    tpu.vector_store %arg6[%c0_20, %c0_21, %c0_22], %34 {strides = array<i32>} : memref<2x2x128xf32, #tpu.memory_space<vmem>>, vector<1x2x128xf32>,
    %c1_23 = arith.constant 1 : index
    %c0_24 = arith.constant 0 : index
    %c0_25 = arith.constant 0 : index
    %35 = vector.load %arg5[%c1_23, %c0_24, %c0_25] : memref<2x64x128xf32, #tpu.memory_space<vmem>>, vector<1x64x128xf32>
    %36 = vector.shape_cast %35 : vector<1x64x128xf32> to vector<64x128xf32>
    %cst_26 = arith.constant dense<0.000000e+00> : vector<2x128xf32>
    %37 = tpu.matmul %28, %36, %cst_26 {dimension_numbers = #tpu.dot_dimension_numbers<[1], [0], [0], [1], [0, 0, 1, 1], [], []>} : vector<2x64xf32>, vector<64x128xf32>, vector<2x128xf32> -> vector<2x128xf32>
    %c1_27 = arith.constant 1 : index
    %c0_28 = arith.constant 0 : index
    %c0_29 = arith.constant 0 : index
    %38 = vector.load %arg6[%c1_27, %c0_28, %c0_29] : memref<2x2x128xf32, #tpu.memory_space<vmem>>, vector<1x2x128xf32>
    %39 = vector.shape_cast %38 : vector<1x2x128xf32> to vector<2x128xf32>
    %40 = vector.shape_cast %37 : vector<2x128xf32> to vector<1x2x128xf32>
    tpu.vector_store %arg6[%c1_27, %c0_28, %c0_29], %40 {strides = array<i32>} : memref<2x2x128xf32, #tpu.memory_space<vmem>>, vector<1x2x128xf32>,
    return
  }
  func.func @transform_0(%arg0: i32) -> (i32, i32) {
    %c0_i32 = arith.constant 0 : i32
    %c0_i32_0 = arith.constant 0 : i32
    %c0_i32_1 = arith.constant 0 : i32
    return %c0_i32, %c0_i32_0 : i32, i32
  }
  func.func @transform_1(%arg0: i32) -> (i32, i32, i32) {
    %c0_i32 = arith.constant 0 : i32
    %c0_i32_0 = arith.constant 0 : i32
    %c0_i32_1 = arith.constant 0 : i32
    %c0_i32_2 = arith.constant 0 : i32
    return %c0_i32, %c0_i32_0, %c0_i32_1 : i32, i32, i32
  }
  func.func @transform_2(%arg0: i32) -> (i32, i32, i32) {
    %c0_i32 = arith.constant 0 : i32
    %c0_i32_0 = arith.constant 0 : i32
    %c0_i32_1 = arith.constant 0 : i32
    %c0_i32_2 = arith.constant 0 : i32
    return %c0_i32, %c0_i32_0, %c0_i32_1 : i32, i32, i32
  }
  func.func @transform_3(%arg0: i32) -> (i32, i32) {
    %c0_i32 = arith.constant 0 : i32
    %c0_i32_0 = arith.constant 0 : i32
    %c0_i32_1 = arith.constant 0 : i32
    return %c0_i32, %c0_i32_0 : i32, i32
  }
  func.func @transform_4(%arg0: i32) -> (i32, i32, i32) {
    %c0_i32 = arith.constant 0 : i32
    %c0_i32_0 = arith.constant 0 : i32
    %c0_i32_1 = arith.constant 0 : i32
    %c0_i32_2 = arith.constant 0 : i32
    return %c0_i32, %c0_i32_0, %c0_i32_1 : i32, i32, i32
  }
  func.func @transform_5(%arg0: i32) -> (i32, i32, i32) {
    %c0_i32 = arith.constant 0 : i32
    %c0_i32_0 = arith.constant 0 : i32
    %c0_i32_1 = arith.constant 0 : i32
    %c0_i32_2 = arith.constant 0 : i32
    return %c0_i32, %c0_i32_0, %c0_i32_1 : i32, i32, i32
  }
}

module attributes {stable_mosaic.version = 11 : i64} {
  func.func @_in_proj_kernel(%arg0: i32, %arg1: memref<16x32xf32, #tpu.memory_space<vmem>>, %arg2: memref<1x32x96xf32, #tpu.memory_space<vmem>>, %arg3: memref<1x1x96xf32, #tpu.memory_space<vmem>>, %arg4: memref<1x16x96xf32, #tpu.memory_space<vmem>>) attributes {dimension_semantics = [#tpu.dimension_semantics<parallel>], iteration_bounds = array<i64: 2>, scalar_prefetch = 0 : i64, scratch_operands = 0 : i64, tpu.core_type = #tpu.core_type<tc>, window_params = [{pipeline_mode = #tpu.pipeline_mode<synchronous>, transform_indices = @transform_0, window_bounds = array<i64: 16, 32>}, {transform_indices = @transform_1, window_bounds = array<i64: 1, 32, 96>}, {transform_indices = @transform_2, window_bounds = array<i64: 1, 1, 96>}, {transform_indices = @transform_3, window_bounds = array<i64: 1, 16, 96>}]} {
    %c0 = arith.constant 0 : index
    %c0_0 = arith.constant 0 : index
    %0 = vector.load %arg1[%c0, %c0_0] : memref<16x32xf32, #tpu.memory_space<vmem>>, vector<16x32xf32>
    %c0_1 = arith.constant 0 : index
    %c0_2 = arith.constant 0 : index
    %c0_3 = arith.constant 0 : index
    %1 = vector.load %arg2[%c0_1, %c0_2, %c0_3] : memref<1x32x96xf32, #tpu.memory_space<vmem>>, vector<1x32x96xf32>
    %2 = vector.shape_cast %1 : vector<1x32x96xf32> to vector<32x96xf32>
    %cst = arith.constant dense<0.000000e+00> : vector<16x96xf32>
    %3 = tpu.matmul %0, %2, %cst {dimension_numbers = #tpu.dot_dimension_numbers<[1], [0], [0], [1], [0, 0, 1, 1], [], []>} : vector<16x32xf32>, vector<32x96xf32>, vector<16x96xf32> -> vector<16x96xf32>
    %c0_4 = arith.constant 0 : index
    %c0_5 = arith.constant 0 : index
    %c0_6 = arith.constant 0 : index
    %4 = vector.load %arg3[%c0_4, %c0_5, %c0_6] : memref<1x1x96xf32, #tpu.memory_space<vmem>>, vector<1x1x96xf32>
    %5 = vector.shape_cast %4 : vector<1x1x96xf32> to vector<1x96xf32>
    %6 = vector.broadcast %5 : vector<1x96xf32> to vector<16x96xf32>
    %7 = arith.addf %3, %6 : vector<16x96xf32>
    %c0_7 = arith.constant 0 : index
    %c0_8 = arith.constant 0 : index
    %c0_9 = arith.constant 0 : index
    %8 = vector.load %arg4[%c0_7, %c0_8, %c0_9] : memref<1x16x96xf32, #tpu.memory_space<vmem>>, vector<1x16x96xf32>
    %9 = vector.shape_cast %8 : vector<1x16x96xf32> to vector<16x96xf32>
    %10 = vector.shape_cast %7 : vector<16x96xf32> to vector<1x16x96xf32>
    tpu.vector_store %arg4[%c0_7, %c0_8, %c0_9], %10 {strides = array<i32>} : memref<1x16x96xf32, #tpu.memory_space<vmem>>, vector<1x16x96xf32>,
    return
  }
  func.func @transform_0(%arg0: i32) -> (i32, i32) {
    %c0_i32 = arith.constant 0 : i32
    %c0_i32_0 = arith.constant 0 : i32
    %c0_i32_1 = arith.constant 0 : i32
    return %c0_i32, %c0_i32_0 : i32, i32
  }
  func.func @transform_1(%arg0: i32) -> (i32, i32, i32) {
    %c0_i32 = arith.constant 0 : i32
    %c0_i32_0 = arith.constant 0 : i32
    %c0_i32_1 = arith.constant 0 : i32
    return %arg0, %c0_i32, %c0_i32_0 : i32, i32, i32
  }
  func.func @transform_2(%arg0: i32) -> (i32, i32, i32) {
    %c0_i32 = arith.constant 0 : i32
    %c0_i32_0 = arith.constant 0 : i32
    %c0_i32_1 = arith.constant 0 : i32
    return %arg0, %c0_i32, %c0_i32_0 : i32, i32, i32
  }
  func.func @transform_3(%arg0: i32) -> (i32, i32, i32) {
    %c0_i32 = arith.constant 0 : i32
    %c0_i32_0 = arith.constant 0 : i32
    %c0_i32_1 = arith.constant 0 : i32
    return %arg0, %c0_i32, %c0_i32_0 : i32, i32, i32
  }
}

module attributes {stable_mosaic.version = 11 : i64} {
  func.func @_gru_seq_kernel(%arg0: i32, %arg1: memref<1x8x2x96xf32, #tpu.memory_space<vmem>>, %arg2: memref<1x32x96xf32, #tpu.memory_space<vmem>>, %arg3: memref<1x1x96xf32, #tpu.memory_space<vmem>>, %arg4: memref<1x8x2x32xf32, #tpu.memory_space<vmem>>) attributes {dimension_semantics = [#tpu.dimension_semantics<parallel>], iteration_bounds = array<i64: 2>, scalar_prefetch = 0 : i64, scratch_operands = 0 : i64, tpu.core_type = #tpu.core_type<tc>, window_params = [{transform_indices = @transform_0, window_bounds = array<i64: 1, 8, 2, 96>}, {transform_indices = @transform_1, window_bounds = array<i64: 1, 32, 96>}, {transform_indices = @transform_2, window_bounds = array<i64: 1, 1, 96>}, {transform_indices = @transform_3, window_bounds = array<i64: 1, 8, 2, 32>}]} {
    %cst = arith.constant 0.000000e+00 : f32
    %0 = vector.broadcast %cst : f32 to vector<2x32xf32>
    %c0_i32 = arith.constant 0 : i32
    %c8_i32 = arith.constant 8 : i32
    %1 = arith.addi %c0_i32, %c8_i32 : i32
    %c1_i32 = arith.constant 1 : i32
    %2 = scf.for %arg5 = %c0_i32 to %1 step %c1_i32 iter_args(%arg6 = %0) -> (vector<2x32xf32>)  : i32 {
      %c2_i32 = arith.constant 2 : i32
      %3 = arith.muli %c2_i32, %arg5 : i32
      %c7_i32 = arith.constant 7 : i32
      %4 = arith.subi %c7_i32, %3 : i32
      %5 = arith.muli %arg0, %4 : i32
      %6 = arith.addi %arg5, %5 : i32
      %c0 = arith.constant 0 : index
      %7 = arith.index_cast %6 : i32 to index
      %c0_1 = arith.constant 0 : index
      %c0_2 = arith.constant 0 : index
      %8 = vector.load %arg1[%c0, %7, %c0_1, %c0_2] : memref<1x8x2x96xf32, #tpu.memory_space<vmem>>, vector<1x1x2x96xf32>
      %9 = vector.shape_cast %8 : vector<1x1x2x96xf32> to vector<2x96xf32>
      %c0_3 = arith.constant 0 : index
      %c0_4 = arith.constant 0 : index
      %c0_5 = arith.constant 0 : index
      %10 = vector.load %arg2[%c0_3, %c0_4, %c0_5] : memref<1x32x96xf32, #tpu.memory_space<vmem>>, vector<1x32x96xf32>
      %11 = vector.shape_cast %10 : vector<1x32x96xf32> to vector<32x96xf32>
      %cst_6 = arith.constant dense<0.000000e+00> : vector<2x96xf32>
      %12 = tpu.matmul %arg6, %11, %cst_6 {dimension_numbers = #tpu.dot_dimension_numbers<[1], [0], [0], [1], [0, 0, 1, 1], [], []>} : vector<2x32xf32>, vector<32x96xf32>, vector<2x96xf32> -> vector<2x96xf32>
      %c0_7 = arith.constant 0 : index
      %c0_8 = arith.constant 0 : index
      %c0_9 = arith.constant 0 : index
      %13 = vector.load %arg3[%c0_7, %c0_8, %c0_9] : memref<1x1x96xf32, #tpu.memory_space<vmem>>, vector<1x1x96xf32>
      %14 = vector.shape_cast %13 : vector<1x1x96xf32> to vector<1x96xf32>
      %15 = vector.broadcast %14 : vector<1x96xf32> to vector<2x96xf32>
      %16 = arith.addf %12, %15 : vector<2x96xf32>
      %17 = vector.extract_strided_slice %9 {offsets = [0, 0], sizes = [2, 32], strides = [1, 1]} : vector<2x96xf32> to vector<2x32xf32>
      %18 = vector.extract_strided_slice %16 {offsets = [0, 0], sizes = [2, 32], strides = [1, 1]} : vector<2x96xf32> to vector<2x32xf32>
      %19 = arith.addf %17, %18 : vector<2x32xf32>
      %20 = arith.negf %19 : vector<2x32xf32>
      %21 = math.exp %20 : vector<2x32xf32>
      %cst_10 = arith.constant 1.000000e+00 : f32
      %22 = vector.broadcast %cst_10 : f32 to vector<2x32xf32>
      %23 = arith.addf %22, %21 : vector<2x32xf32>
      %24 = arith.divf %22, %23 : vector<2x32xf32>
      %25 = vector.extract_strided_slice %9 {offsets = [0, 32], sizes = [2, 32], strides = [1, 1]} : vector<2x96xf32> to vector<2x32xf32>
      %26 = vector.extract_strided_slice %16 {offsets = [0, 32], sizes = [2, 32], strides = [1, 1]} : vector<2x96xf32> to vector<2x32xf32>
      %27 = arith.addf %25, %26 : vector<2x32xf32>
      %28 = arith.negf %27 : vector<2x32xf32>
      %29 = math.exp %28 : vector<2x32xf32>
      %cst_11 = arith.constant 1.000000e+00 : f32
      %30 = vector.broadcast %cst_11 : f32 to vector<2x32xf32>
      %31 = arith.addf %30, %29 : vector<2x32xf32>
      %32 = arith.divf %30, %31 : vector<2x32xf32>
      %33 = vector.extract_strided_slice %9 {offsets = [0, 64], sizes = [2, 32], strides = [1, 1]} : vector<2x96xf32> to vector<2x32xf32>
      %34 = vector.extract_strided_slice %16 {offsets = [0, 64], sizes = [2, 32], strides = [1, 1]} : vector<2x96xf32> to vector<2x32xf32>
      %35 = arith.mulf %24, %34 : vector<2x32xf32>
      %36 = arith.addf %33, %35 : vector<2x32xf32>
      %37 = math.tanh %36 : vector<2x32xf32>
      %cst_12 = arith.constant 1.000000e+00 : f32
      %38 = vector.broadcast %cst_12 : f32 to vector<2x32xf32>
      %39 = arith.subf %38, %32 : vector<2x32xf32>
      %40 = arith.mulf %39, %37 : vector<2x32xf32>
      %41 = arith.mulf %32, %arg6 : vector<2x32xf32>
      %42 = arith.addf %40, %41 : vector<2x32xf32>
      %c0_13 = arith.constant 0 : index
      %43 = arith.index_cast %6 : i32 to index
      %c0_14 = arith.constant 0 : index
      %c0_15 = arith.constant 0 : index
      %44 = vector.load %arg4[%c0_13, %43, %c0_14, %c0_15] : memref<1x8x2x32xf32, #tpu.memory_space<vmem>>, vector<1x1x2x32xf32>
      %45 = vector.shape_cast %44 : vector<1x1x2x32xf32> to vector<2x32xf32>
      %46 = vector.shape_cast %42 : vector<2x32xf32> to vector<1x1x2x32xf32>
      tpu.vector_store %arg4[%c0_13, %43, %c0_14, %c0_15], %46 {strides = array<i32>} : memref<1x8x2x32xf32, #tpu.memory_space<vmem>>, vector<1x1x2x32xf32>,
      scf.yield %42 : vector<2x32xf32>
    }
    %c8_i32_0 = arith.constant 8 : i32
    return
  }
  func.func @transform_0(%arg0: i32) -> (i32, i32, i32, i32) {
    %c0_i32 = arith.constant 0 : i32
    %c0_i32_0 = arith.constant 0 : i32
    %c0_i32_1 = arith.constant 0 : i32
    %c0_i32_2 = arith.constant 0 : i32
    return %arg0, %c0_i32, %c0_i32_0, %c0_i32_1 : i32, i32, i32, i32
  }
  func.func @transform_1(%arg0: i32) -> (i32, i32, i32) {
    %c0_i32 = arith.constant 0 : i32
    %c0_i32_0 = arith.constant 0 : i32
    %c0_i32_1 = arith.constant 0 : i32
    return %arg0, %c0_i32, %c0_i32_0 : i32, i32, i32
  }
  func.func @transform_2(%arg0: i32) -> (i32, i32, i32) {
    %c0_i32 = arith.constant 0 : i32
    %c0_i32_0 = arith.constant 0 : i32
    %c0_i32_1 = arith.constant 0 : i32
    return %arg0, %c0_i32, %c0_i32_0 : i32, i32, i32
  }
  func.func @transform_3(%arg0: i32) -> (i32, i32, i32, i32) {
    %c0_i32 = arith.constant 0 : i32
    %c0_i32_0 = arith.constant 0 : i32
    %c0_i32_1 = arith.constant 0 : i32
    %c0_i32_2 = arith.constant 0 : i32
    return %arg0, %c0_i32, %c0_i32_0, %c0_i32_1 : i32, i32, i32, i32
  }
}

module attributes {stable_mosaic.version = 11 : i64} {
  func.func @_dual_linear_kernel(%arg0: i32, %arg1: memref<2x16x32xf32, #tpu.memory_space<vmem>>, %arg2: memref<1x32x128xf32, #tpu.memory_space<vmem>>, %arg3: memref<1x32x128xf32, #tpu.memory_space<vmem>>, %arg4: memref<1x1x128xf32, #tpu.memory_space<vmem>>, %arg5: memref<1x16x128xf32, #tpu.memory_space<vmem>>) attributes {dimension_semantics = [#tpu.dimension_semantics<parallel>], iteration_bounds = array<i64: 2>, scalar_prefetch = 0 : i64, scratch_operands = 0 : i64, tpu.core_type = #tpu.core_type<tc>, window_params = [{pipeline_mode = #tpu.pipeline_mode<synchronous>, transform_indices = @transform_0, window_bounds = array<i64: 2, 16, 32>}, {transform_indices = @transform_1, window_bounds = array<i64: 1, 32, 128>}, {transform_indices = @transform_2, window_bounds = array<i64: 1, 32, 128>}, {transform_indices = @transform_3, window_bounds = array<i64: 1, 1, 128>}, {transform_indices = @transform_4, window_bounds = array<i64: 1, 16, 128>}]} {
    %c0 = arith.constant 0 : index
    %c0_0 = arith.constant 0 : index
    %c0_1 = arith.constant 0 : index
    %0 = vector.load %arg1[%c0, %c0_0, %c0_1] : memref<2x16x32xf32, #tpu.memory_space<vmem>>, vector<1x16x32xf32>
    %1 = vector.shape_cast %0 : vector<1x16x32xf32> to vector<16x32xf32>
    %c0_2 = arith.constant 0 : index
    %c0_3 = arith.constant 0 : index
    %c0_4 = arith.constant 0 : index
    %2 = vector.load %arg2[%c0_2, %c0_3, %c0_4] : memref<1x32x128xf32, #tpu.memory_space<vmem>>, vector<1x32x128xf32>
    %3 = vector.shape_cast %2 : vector<1x32x128xf32> to vector<32x128xf32>
    %cst = arith.constant dense<0.000000e+00> : vector<16x128xf32>
    %4 = tpu.matmul %1, %3, %cst {dimension_numbers = #tpu.dot_dimension_numbers<[1], [0], [0], [1], [0, 0, 1, 1], [], []>} : vector<16x32xf32>, vector<32x128xf32>, vector<16x128xf32> -> vector<16x128xf32>
    %c1 = arith.constant 1 : index
    %c0_5 = arith.constant 0 : index
    %c0_6 = arith.constant 0 : index
    %5 = vector.load %arg1[%c1, %c0_5, %c0_6] : memref<2x16x32xf32, #tpu.memory_space<vmem>>, vector<1x16x32xf32>
    %6 = vector.shape_cast %5 : vector<1x16x32xf32> to vector<16x32xf32>
    %c0_7 = arith.constant 0 : index
    %c0_8 = arith.constant 0 : index
    %c0_9 = arith.constant 0 : index
    %7 = vector.load %arg3[%c0_7, %c0_8, %c0_9] : memref<1x32x128xf32, #tpu.memory_space<vmem>>, vector<1x32x128xf32>
    %8 = vector.shape_cast %7 : vector<1x32x128xf32> to vector<32x128xf32>
    %cst_10 = arith.constant dense<0.000000e+00> : vector<16x128xf32>
    %9 = tpu.matmul %6, %8, %cst_10 {dimension_numbers = #tpu.dot_dimension_numbers<[1], [0], [0], [1], [0, 0, 1, 1], [], []>} : vector<16x32xf32>, vector<32x128xf32>, vector<16x128xf32> -> vector<16x128xf32>
    %10 = arith.addf %4, %9 : vector<16x128xf32>
    %c0_11 = arith.constant 0 : index
    %c0_12 = arith.constant 0 : index
    %c0_13 = arith.constant 0 : index
    %11 = vector.load %arg4[%c0_11, %c0_12, %c0_13] : memref<1x1x128xf32, #tpu.memory_space<vmem>>, vector<1x1x128xf32>
    %12 = vector.shape_cast %11 : vector<1x1x128xf32> to vector<1x128xf32>
    %13 = vector.broadcast %12 : vector<1x128xf32> to vector<16x128xf32>
    %14 = arith.addf %10, %13 : vector<16x128xf32>
    %c0_14 = arith.constant 0 : index
    %c0_15 = arith.constant 0 : index
    %c0_16 = arith.constant 0 : index
    %15 = vector.load %arg5[%c0_14, %c0_15, %c0_16] : memref<1x16x128xf32, #tpu.memory_space<vmem>>, vector<1x16x128xf32>
    %16 = vector.shape_cast %15 : vector<1x16x128xf32> to vector<16x128xf32>
    %17 = vector.shape_cast %14 : vector<16x128xf32> to vector<1x16x128xf32>
    tpu.vector_store %arg5[%c0_14, %c0_15, %c0_16], %17 {strides = array<i32>} : memref<1x16x128xf32, #tpu.memory_space<vmem>>, vector<1x16x128xf32>,
    return
  }
  func.func @transform_0(%arg0: i32) -> (i32, i32, i32) {
    %c0_i32 = arith.constant 0 : i32
    %c0_i32_0 = arith.constant 0 : i32
    %c0_i32_1 = arith.constant 0 : i32
    %c0_i32_2 = arith.constant 0 : i32
    return %c0_i32, %c0_i32_0, %c0_i32_1 : i32, i32, i32
  }
  func.func @transform_1(%arg0: i32) -> (i32, i32, i32) {
    %c0_i32 = arith.constant 0 : i32
    %c0_i32_0 = arith.constant 0 : i32
    %c0_i32_1 = arith.constant 0 : i32
    return %arg0, %c0_i32, %c0_i32_0 : i32, i32, i32
  }
  func.func @transform_2(%arg0: i32) -> (i32, i32, i32) {
    %c0_i32 = arith.constant 0 : i32
    %c0_i32_0 = arith.constant 0 : i32
    %c0_i32_1 = arith.constant 0 : i32
    return %arg0, %c0_i32, %c0_i32_0 : i32, i32, i32
  }
  func.func @transform_3(%arg0: i32) -> (i32, i32, i32) {
    %c0_i32 = arith.constant 0 : i32
    %c0_i32_0 = arith.constant 0 : i32
    %c0_i32_1 = arith.constant 0 : i32
    return %arg0, %c0_i32, %c0_i32_0 : i32, i32, i32
  }
  func.func @transform_4(%arg0: i32) -> (i32, i32, i32) {
    %c0_i32 = arith.constant 0 : i32
    %c0_i32_0 = arith.constant 0 : i32
    %c0_i32_1 = arith.constant 0 : i32
    return %arg0, %c0_i32, %c0_i32_0 : i32, i32, i32
  }
}

module attributes {stable_mosaic.version = 11 : i64} {
  func.func @_lstm_seq_kernel(%arg0: i32, %arg1: memref<1x8x2x128xf32, #tpu.memory_space<vmem>>, %arg2: memref<1x2x128xf32, #tpu.memory_space<vmem>>, %arg3: memref<1x32x128xf32, #tpu.memory_space<vmem>>, %arg4: memref<1x8x2x32xf32, #tpu.memory_space<vmem>>, %arg5: memref<1x2x32xf32, #tpu.memory_space<vmem>>) attributes {dimension_semantics = [#tpu.dimension_semantics<parallel>], iteration_bounds = array<i64: 2>, scalar_prefetch = 0 : i64, scratch_operands = 0 : i64, tpu.core_type = #tpu.core_type<tc>, window_params = [{transform_indices = @transform_0, window_bounds = array<i64: 1, 8, 2, 128>}, {transform_indices = @transform_1, window_bounds = array<i64: 1, 2, 128>}, {transform_indices = @transform_2, window_bounds = array<i64: 1, 32, 128>}, {transform_indices = @transform_3, window_bounds = array<i64: 1, 8, 2, 32>}, {transform_indices = @transform_4, window_bounds = array<i64: 1, 2, 32>}]} {
    %cst = arith.constant 0.000000e+00 : f32
    %0 = vector.broadcast %cst : f32 to vector<2x32xf32>
    %cst_0 = arith.constant 0.000000e+00 : f32
    %1 = vector.broadcast %cst_0 : f32 to vector<2x32xf32>
    %c0_i32 = arith.constant 0 : i32
    %c8_i32 = arith.constant 8 : i32
    %2 = arith.addi %c0_i32, %c8_i32 : i32
    %c1_i32 = arith.constant 1 : i32
    %3:2 = scf.for %arg6 = %c0_i32 to %2 step %c1_i32 iter_args(%arg7 = %0, %arg8 = %1) -> (vector<2x32xf32>, vector<2x32xf32>)  : i32 {
      %c2_i32 = arith.constant 2 : i32
      %7 = arith.muli %c2_i32, %arg6 : i32
      %c7_i32 = arith.constant 7 : i32
      %8 = arith.subi %c7_i32, %7 : i32
      %9 = arith.muli %arg0, %8 : i32
      %10 = arith.addi %arg6, %9 : i32
      %c0_4 = arith.constant 0 : index
      %11 = arith.index_cast %10 : i32 to index
      %c0_5 = arith.constant 0 : index
      %c0_6 = arith.constant 0 : index
      %12 = vector.load %arg1[%c0_4, %11, %c0_5, %c0_6] : memref<1x8x2x128xf32, #tpu.memory_space<vmem>>, vector<1x1x2x128xf32>
      %13 = vector.shape_cast %12 : vector<1x1x2x128xf32> to vector<2x128xf32>
      %c0_7 = arith.constant 0 : index
      %c0_8 = arith.constant 0 : index
      %c0_9 = arith.constant 0 : index
      %14 = vector.load %arg2[%c0_7, %c0_8, %c0_9] : memref<1x2x128xf32, #tpu.memory_space<vmem>>, vector<1x2x128xf32>
      %15 = vector.shape_cast %14 : vector<1x2x128xf32> to vector<2x128xf32>
      %16 = arith.addf %13, %15 : vector<2x128xf32>
      %c0_10 = arith.constant 0 : index
      %c0_11 = arith.constant 0 : index
      %c0_12 = arith.constant 0 : index
      %17 = vector.load %arg3[%c0_10, %c0_11, %c0_12] : memref<1x32x128xf32, #tpu.memory_space<vmem>>, vector<1x32x128xf32>
      %18 = vector.shape_cast %17 : vector<1x32x128xf32> to vector<32x128xf32>
      %cst_13 = arith.constant dense<0.000000e+00> : vector<2x128xf32>
      %19 = tpu.matmul %arg7, %18, %cst_13 {dimension_numbers = #tpu.dot_dimension_numbers<[1], [0], [0], [1], [0, 0, 1, 1], [], []>} : vector<2x32xf32>, vector<32x128xf32>, vector<2x128xf32> -> vector<2x128xf32>
      %20 = arith.addf %16, %19 : vector<2x128xf32>
      %21 = vector.extract_strided_slice %20 {offsets = [0, 0], sizes = [2, 32], strides = [1, 1]} : vector<2x128xf32> to vector<2x32xf32>
      %22 = arith.negf %21 : vector<2x32xf32>
      %23 = math.exp %22 : vector<2x32xf32>
      %cst_14 = arith.constant 1.000000e+00 : f32
      %24 = vector.broadcast %cst_14 : f32 to vector<2x32xf32>
      %25 = arith.addf %24, %23 : vector<2x32xf32>
      %26 = arith.divf %24, %25 : vector<2x32xf32>
      %27 = vector.extract_strided_slice %20 {offsets = [0, 32], sizes = [2, 32], strides = [1, 1]} : vector<2x128xf32> to vector<2x32xf32>
      %28 = arith.negf %27 : vector<2x32xf32>
      %29 = math.exp %28 : vector<2x32xf32>
      %cst_15 = arith.constant 1.000000e+00 : f32
      %30 = vector.broadcast %cst_15 : f32 to vector<2x32xf32>
      %31 = arith.addf %30, %29 : vector<2x32xf32>
      %32 = arith.divf %30, %31 : vector<2x32xf32>
      %33 = vector.extract_strided_slice %20 {offsets = [0, 64], sizes = [2, 32], strides = [1, 1]} : vector<2x128xf32> to vector<2x32xf32>
      %34 = math.tanh %33 : vector<2x32xf32>
      %35 = vector.extract_strided_slice %20 {offsets = [0, 96], sizes = [2, 32], strides = [1, 1]} : vector<2x128xf32> to vector<2x32xf32>
      %36 = arith.negf %35 : vector<2x32xf32>
      %37 = math.exp %36 : vector<2x32xf32>
      %cst_16 = arith.constant 1.000000e+00 : f32
      %38 = vector.broadcast %cst_16 : f32 to vector<2x32xf32>
      %39 = arith.addf %38, %37 : vector<2x32xf32>
      %40 = arith.divf %38, %39 : vector<2x32xf32>
      %41 = arith.mulf %32, %arg8 : vector<2x32xf32>
      %42 = arith.mulf %26, %34 : vector<2x32xf32>
      %43 = arith.addf %41, %42 : vector<2x32xf32>
      %44 = math.tanh %43 : vector<2x32xf32>
      %45 = arith.mulf %40, %44 : vector<2x32xf32>
      %c0_17 = arith.constant 0 : index
      %46 = arith.index_cast %10 : i32 to index
      %c0_18 = arith.constant 0 : index
      %c0_19 = arith.constant 0 : index
      %47 = vector.load %arg4[%c0_17, %46, %c0_18, %c0_19] : memref<1x8x2x32xf32, #tpu.memory_space<vmem>>, vector<1x1x2x32xf32>
      %48 = vector.shape_cast %47 : vector<1x1x2x32xf32> to vector<2x32xf32>
      %49 = vector.shape_cast %45 : vector<2x32xf32> to vector<1x1x2x32xf32>
      tpu.vector_store %arg4[%c0_17, %46, %c0_18, %c0_19], %49 {strides = array<i32>} : memref<1x8x2x32xf32, #tpu.memory_space<vmem>>, vector<1x1x2x32xf32>,
      scf.yield %45, %43 : vector<2x32xf32>, vector<2x32xf32>
    }
    %c8_i32_1 = arith.constant 8 : i32
    %c0 = arith.constant 0 : index
    %c0_2 = arith.constant 0 : index
    %c0_3 = arith.constant 0 : index
    %4 = vector.load %arg5[%c0, %c0_2, %c0_3] : memref<1x2x32xf32, #tpu.memory_space<vmem>>, vector<1x2x32xf32>
    %5 = vector.shape_cast %4 : vector<1x2x32xf32> to vector<2x32xf32>
    %6 = vector.shape_cast %3#0 : vector<2x32xf32> to vector<1x2x32xf32>
    tpu.vector_store %arg5[%c0, %c0_2, %c0_3], %6 {strides = array<i32>} : memref<1x2x32xf32, #tpu.memory_space<vmem>>, vector<1x2x32xf32>,
    return
  }
  func.func @transform_0(%arg0: i32) -> (i32, i32, i32, i32) {
    %c0_i32 = arith.constant 0 : i32
    %c0_i32_0 = arith.constant 0 : i32
    %c0_i32_1 = arith.constant 0 : i32
    %c0_i32_2 = arith.constant 0 : i32
    return %arg0, %c0_i32, %c0_i32_0, %c0_i32_1 : i32, i32, i32, i32
  }
  func.func @transform_1(%arg0: i32) -> (i32, i32, i32) {
    %c0_i32 = arith.constant 0 : i32
    %c0_i32_0 = arith.constant 0 : i32
    %c0_i32_1 = arith.constant 0 : i32
    return %arg0, %c0_i32, %c0_i32_0 : i32, i32, i32
  }
  func.func @transform_2(%arg0: i32) -> (i32, i32, i32) {
    %c0_i32 = arith.constant 0 : i32
    %c0_i32_0 = arith.constant 0 : i32
    %c0_i32_1 = arith.constant 0 : i32
    return %arg0, %c0_i32, %c0_i32_0 : i32, i32, i32
  }
  func.func @transform_3(%arg0: i32) -> (i32, i32, i32, i32) {
    %c0_i32 = arith.constant 0 : i32
    %c0_i32_0 = arith.constant 0 : i32
    %c0_i32_1 = arith.constant 0 : i32
    %c0_i32_2 = arith.constant 0 : i32
    return %arg0, %c0_i32, %c0_i32_0, %c0_i32_1 : i32, i32, i32, i32
  }
  func.func @transform_4(%arg0: i32) -> (i32, i32, i32) {
    %c0_i32 = arith.constant 0 : i32
    %c0_i32_0 = arith.constant 0 : i32
    %c0_i32_1 = arith.constant 0 : i32
    return %arg0, %c0_i32, %c0_i32_0 : i32, i32, i32
  }
}

module attributes {stable_mosaic.version = 11 : i64} {
  func.func @_dual_linear_kernel(%arg0: i32, %arg1: memref<2x16x32xf32, #tpu.memory_space<vmem>>, %arg2: memref<1x32x10xf32, #tpu.memory_space<vmem>>, %arg3: memref<1x32x10xf32, #tpu.memory_space<vmem>>, %arg4: memref<1x1x10xf32, #tpu.memory_space<vmem>>, %arg5: memref<1x16x10xf32, #tpu.memory_space<vmem>>) attributes {dimension_semantics = [#tpu.dimension_semantics<parallel>], iteration_bounds = array<i64: 1>, scalar_prefetch = 0 : i64, scratch_operands = 0 : i64, tpu.core_type = #tpu.core_type<tc>, window_params = [{pipeline_mode = #tpu.pipeline_mode<synchronous>, transform_indices = @transform_0, window_bounds = array<i64: 2, 16, 32>}, {transform_indices = @transform_1, window_bounds = array<i64: 1, 32, 10>}, {transform_indices = @transform_2, window_bounds = array<i64: 1, 32, 10>}, {transform_indices = @transform_3, window_bounds = array<i64: 1, 1, 10>}, {transform_indices = @transform_4, window_bounds = array<i64: 1, 16, 10>}]} {
    %c0 = arith.constant 0 : index
    %c0_0 = arith.constant 0 : index
    %c0_1 = arith.constant 0 : index
    %0 = vector.load %arg1[%c0, %c0_0, %c0_1] : memref<2x16x32xf32, #tpu.memory_space<vmem>>, vector<1x16x32xf32>
    %1 = vector.shape_cast %0 : vector<1x16x32xf32> to vector<16x32xf32>
    %c0_2 = arith.constant 0 : index
    %c0_3 = arith.constant 0 : index
    %c0_4 = arith.constant 0 : index
    %2 = vector.load %arg2[%c0_2, %c0_3, %c0_4] : memref<1x32x10xf32, #tpu.memory_space<vmem>>, vector<1x32x10xf32>
    %3 = vector.shape_cast %2 : vector<1x32x10xf32> to vector<32x10xf32>
    %cst = arith.constant dense<0.000000e+00> : vector<16x10xf32>
    %4 = tpu.matmul %1, %3, %cst {dimension_numbers = #tpu.dot_dimension_numbers<[1], [0], [0], [1], [0, 0, 1, 1], [], []>} : vector<16x32xf32>, vector<32x10xf32>, vector<16x10xf32> -> vector<16x10xf32>
    %c1 = arith.constant 1 : index
    %c0_5 = arith.constant 0 : index
    %c0_6 = arith.constant 0 : index
    %5 = vector.load %arg1[%c1, %c0_5, %c0_6] : memref<2x16x32xf32, #tpu.memory_space<vmem>>, vector<1x16x32xf32>
    %6 = vector.shape_cast %5 : vector<1x16x32xf32> to vector<16x32xf32>
    %c0_7 = arith.constant 0 : index
    %c0_8 = arith.constant 0 : index
    %c0_9 = arith.constant 0 : index
    %7 = vector.load %arg3[%c0_7, %c0_8, %c0_9] : memref<1x32x10xf32, #tpu.memory_space<vmem>>, vector<1x32x10xf32>
    %8 = vector.shape_cast %7 : vector<1x32x10xf32> to vector<32x10xf32>
    %cst_10 = arith.constant dense<0.000000e+00> : vector<16x10xf32>
    %9 = tpu.matmul %6, %8, %cst_10 {dimension_numbers = #tpu.dot_dimension_numbers<[1], [0], [0], [1], [0, 0, 1, 1], [], []>} : vector<16x32xf32>, vector<32x10xf32>, vector<16x10xf32> -> vector<16x10xf32>
    %10 = arith.addf %4, %9 : vector<16x10xf32>
    %c0_11 = arith.constant 0 : index
    %c0_12 = arith.constant 0 : index
    %c0_13 = arith.constant 0 : index
    %11 = vector.load %arg4[%c0_11, %c0_12, %c0_13] : memref<1x1x10xf32, #tpu.memory_space<vmem>>, vector<1x1x10xf32>
    %12 = vector.shape_cast %11 : vector<1x1x10xf32> to vector<1x10xf32>
    %13 = vector.broadcast %12 : vector<1x10xf32> to vector<16x10xf32>
    %14 = arith.addf %10, %13 : vector<16x10xf32>
    %c0_14 = arith.constant 0 : index
    %c0_15 = arith.constant 0 : index
    %c0_16 = arith.constant 0 : index
    %15 = vector.load %arg5[%c0_14, %c0_15, %c0_16] : memref<1x16x10xf32, #tpu.memory_space<vmem>>, vector<1x16x10xf32>
    %16 = vector.shape_cast %15 : vector<1x16x10xf32> to vector<16x10xf32>
    %17 = vector.shape_cast %14 : vector<16x10xf32> to vector<1x16x10xf32>
    tpu.vector_store %arg5[%c0_14, %c0_15, %c0_16], %17 {strides = array<i32>} : memref<1x16x10xf32, #tpu.memory_space<vmem>>, vector<1x16x10xf32>,
    return
  }
  func.func @transform_0(%arg0: i32) -> (i32, i32, i32) {
    %c0_i32 = arith.constant 0 : i32
    %c0_i32_0 = arith.constant 0 : i32
    %c0_i32_1 = arith.constant 0 : i32
    %c0_i32_2 = arith.constant 0 : i32
    return %c0_i32, %c0_i32_0, %c0_i32_1 : i32, i32, i32
  }
  func.func @transform_1(%arg0: i32) -> (i32, i32, i32) {
    %c0_i32 = arith.constant 0 : i32
    %c0_i32_0 = arith.constant 0 : i32
    %c0_i32_1 = arith.constant 0 : i32
    return %arg0, %c0_i32, %c0_i32_0 : i32, i32, i32
  }
  func.func @transform_2(%arg0: i32) -> (i32, i32, i32) {
    %c0_i32 = arith.constant 0 : i32
    %c0_i32_0 = arith.constant 0 : i32
    %c0_i32_1 = arith.constant 0 : i32
    return %arg0, %c0_i32, %c0_i32_0 : i32, i32, i32
  }
  func.func @transform_3(%arg0: i32) -> (i32, i32, i32) {
    %c0_i32 = arith.constant 0 : i32
    %c0_i32_0 = arith.constant 0 : i32
    %c0_i32_1 = arith.constant 0 : i32
    return %arg0, %c0_i32, %c0_i32_0 : i32, i32, i32
  }
  func.func @transform_4(%arg0: i32) -> (i32, i32, i32) {
    %c0_i32 = arith.constant 0 : i32
    %c0_i32_0 = arith.constant 0 : i32
    %c0_i32_1 = arith.constant 0 : i32
    return %arg0, %c0_i32, %c0_i32_0 : i32, i32, i32
  }
}

module attributes {stable_mosaic.version = 11 : i64} {
  func.func @_dual_linear_kernel(%arg0: i32, %arg1: memref<2x2x32xf32, #tpu.memory_space<vmem>>, %arg2: memref<1x32x5xf32, #tpu.memory_space<vmem>>, %arg3: memref<1x32x5xf32, #tpu.memory_space<vmem>>, %arg4: memref<1x1x5xf32, #tpu.memory_space<vmem>>, %arg5: memref<1x2x5xf32, #tpu.memory_space<vmem>>) attributes {dimension_semantics = [#tpu.dimension_semantics<parallel>], iteration_bounds = array<i64: 1>, scalar_prefetch = 0 : i64, scratch_operands = 0 : i64, tpu.core_type = #tpu.core_type<tc>, window_params = [{pipeline_mode = #tpu.pipeline_mode<synchronous>, transform_indices = @transform_0, window_bounds = array<i64: 2, 2, 32>}, {transform_indices = @transform_1, window_bounds = array<i64: 1, 32, 5>}, {transform_indices = @transform_2, window_bounds = array<i64: 1, 32, 5>}, {transform_indices = @transform_3, window_bounds = array<i64: 1, 1, 5>}, {transform_indices = @transform_4, window_bounds = array<i64: 1, 2, 5>}]} {
    %c0 = arith.constant 0 : index
    %c0_0 = arith.constant 0 : index
    %c0_1 = arith.constant 0 : index
    %0 = vector.load %arg1[%c0, %c0_0, %c0_1] : memref<2x2x32xf32, #tpu.memory_space<vmem>>, vector<1x2x32xf32>
    %1 = vector.shape_cast %0 : vector<1x2x32xf32> to vector<2x32xf32>
    %c0_2 = arith.constant 0 : index
    %c0_3 = arith.constant 0 : index
    %c0_4 = arith.constant 0 : index
    %2 = vector.load %arg2[%c0_2, %c0_3, %c0_4] : memref<1x32x5xf32, #tpu.memory_space<vmem>>, vector<1x32x5xf32>
    %3 = vector.shape_cast %2 : vector<1x32x5xf32> to vector<32x5xf32>
    %cst = arith.constant dense<0.000000e+00> : vector<2x5xf32>
    %4 = tpu.matmul %1, %3, %cst {dimension_numbers = #tpu.dot_dimension_numbers<[1], [0], [0], [1], [0, 0, 1, 1], [], []>} : vector<2x32xf32>, vector<32x5xf32>, vector<2x5xf32> -> vector<2x5xf32>
    %c1 = arith.constant 1 : index
    %c0_5 = arith.constant 0 : index
    %c0_6 = arith.constant 0 : index
    %5 = vector.load %arg1[%c1, %c0_5, %c0_6] : memref<2x2x32xf32, #tpu.memory_space<vmem>>, vector<1x2x32xf32>
    %6 = vector.shape_cast %5 : vector<1x2x32xf32> to vector<2x32xf32>
    %c0_7 = arith.constant 0 : index
    %c0_8 = arith.constant 0 : index
    %c0_9 = arith.constant 0 : index
    %7 = vector.load %arg3[%c0_7, %c0_8, %c0_9] : memref<1x32x5xf32, #tpu.memory_space<vmem>>, vector<1x32x5xf32>
    %8 = vector.shape_cast %7 : vector<1x32x5xf32> to vector<32x5xf32>
    %cst_10 = arith.constant dense<0.000000e+00> : vector<2x5xf32>
    %9 = tpu.matmul %6, %8, %cst_10 {dimension_numbers = #tpu.dot_dimension_numbers<[1], [0], [0], [1], [0, 0, 1, 1], [], []>} : vector<2x32xf32>, vector<32x5xf32>, vector<2x5xf32> -> vector<2x5xf32>
    %10 = arith.addf %4, %9 : vector<2x5xf32>
    %c0_11 = arith.constant 0 : index
    %c0_12 = arith.constant 0 : index
    %c0_13 = arith.constant 0 : index
    %11 = vector.load %arg4[%c0_11, %c0_12, %c0_13] : memref<1x1x5xf32, #tpu.memory_space<vmem>>, vector<1x1x5xf32>
    %12 = vector.shape_cast %11 : vector<1x1x5xf32> to vector<1x5xf32>
    %13 = vector.broadcast %12 : vector<1x5xf32> to vector<2x5xf32>
    %14 = arith.addf %10, %13 : vector<2x5xf32>
    %c0_14 = arith.constant 0 : index
    %c0_15 = arith.constant 0 : index
    %c0_16 = arith.constant 0 : index
    %15 = vector.load %arg5[%c0_14, %c0_15, %c0_16] : memref<1x2x5xf32, #tpu.memory_space<vmem>>, vector<1x2x5xf32>
    %16 = vector.shape_cast %15 : vector<1x2x5xf32> to vector<2x5xf32>
    %17 = vector.shape_cast %14 : vector<2x5xf32> to vector<1x2x5xf32>
    tpu.vector_store %arg5[%c0_14, %c0_15, %c0_16], %17 {strides = array<i32>} : memref<1x2x5xf32, #tpu.memory_space<vmem>>, vector<1x2x5xf32>,
    return
  }
  func.func @transform_0(%arg0: i32) -> (i32, i32, i32) {
    %c0_i32 = arith.constant 0 : i32
    %c0_i32_0 = arith.constant 0 : i32
    %c0_i32_1 = arith.constant 0 : i32
    %c0_i32_2 = arith.constant 0 : i32
    return %c0_i32, %c0_i32_0, %c0_i32_1 : i32, i32, i32
  }
  func.func @transform_1(%arg0: i32) -> (i32, i32, i32) {
    %c0_i32 = arith.constant 0 : i32
    %c0_i32_0 = arith.constant 0 : i32
    %c0_i32_1 = arith.constant 0 : i32
    return %arg0, %c0_i32, %c0_i32_0 : i32, i32, i32
  }
  func.func @transform_2(%arg0: i32) -> (i32, i32, i32) {
    %c0_i32 = arith.constant 0 : i32
    %c0_i32_0 = arith.constant 0 : i32
    %c0_i32_1 = arith.constant 0 : i32
    return %arg0, %c0_i32, %c0_i32_0 : i32, i32, i32
  }
  func.func @transform_3(%arg0: i32) -> (i32, i32, i32) {
    %c0_i32 = arith.constant 0 : i32
    %c0_i32_0 = arith.constant 0 : i32
    %c0_i32_1 = arith.constant 0 : i32
    return %arg0, %c0_i32, %c0_i32_0 : i32, i32, i32
  }
  func.func @transform_4(%arg0: i32) -> (i32, i32, i32) {
    %c0_i32 = arith.constant 0 : i32
    %c0_i32_0 = arith.constant 0 : i32
    %c0_i32_1 = arith.constant 0 : i32
    return %arg0, %c0_i32, %c0_i32_0 : i32, i32, i32
  }
}

</mosaic_0001>

<llo_original>
// kernel: memnet_plus_forward.13
$region0: #{memnet_plus_forward.13}
  #allocation0 [shape = 'u32[]', space=smem, size = 0x4, offset = 0x4, fixed_abs, tag = 'smem constant byte address 0x4 - core index']
  #allocation1 [shape = 'u32[144,128]{1,0:T(1,128)}', space=vmem, size = 0x12000, scoped, tag = 'internal scratch']
  %s0 = inlined_call_operand.vmem [shape: f32[16,32], index: 0, kind: input, shape index: {}]
  %s1 = inlined_call_operand.vmem [shape: f32[2,32,48], index: 1, kind: input, shape index: {}]
  %s2 = inlined_call_operand.vmem [shape: f32[2,1,48], index: 2, kind: input, shape index: {}]
  %s3 = inlined_call_operand.vmem [shape: f32[2,16,48], index: 3, kind: output, shape index: {}]
  %s4 = sld [smem:[#allocation0]]
  $region45: #{memnet_plus_forward.13} parent=0
    _
  %s6 = ssub.s32 1, %s4
  %s7 = scalar_select 0, %s6, %s4
  loop: start=0, step=1, limit=4
  $region2: #{memnet_plus_forward.13} parent=0 // loop_pre_header
    _
  $region3: #{memnet_plus_forward.13} parent=0 // loop_header
    %s9 = sphi 0, %s13
    %p10 = scmp.ge.s32.totalorder %s9, 4
    %s17 = sphi 0, %s17
    %s19 = sphi 0, %s17
    %s20 = sphi 0, %s19
    %s34 = sphi 0, %s20
    %s40 = sphi 0, %s42
    %s43 = sphi 0, %s40
    %s44 = sphi 0, %s43
    %s60 = sphi 0, %s44
    %s66 = sphi 0, %s68
    %s69 = sphi 0, %s66
    %s70 = sphi 0, %s69
    %s86 = sphi 0, %s70
    %s92 = sphi 0, %s94
    %s95 = sphi 0, %s92
    %s96 = sphi 0, %s95
    %s112 = sphi 0, %s96
  $region4: #{memnet_plus_forward.13} parent=0 // loop_header_branch
    %12 = sbr.rel (%p10) target = $region8
  $region5: #{memnet_plus_forward.13} parent=0 // loop_body
    %s14 = ssub.s32 %s9, 1
    %s15 = ssub.s32 %s9, 2
    %s16 = sadd.s32 %s9, 1
    %s18 = sadd.s32 %s17, 1
    %p21 = scmp.eq.s32.totalorder %s9, 1
    %p22 = scmp.ne.s32.totalorder %s17, %s19
    %p23 = scmp.eq.s32.totalorder %s9, 0
    %p24 = por %p22, %p23
    %p25 = scmp.ne.s32.totalorder %s17, %s19
    %p26 = scmp.eq.s32.totalorder %s14, 1
    %p27 = por %p25, %p26
    %p28 = scmp.ne.s32.totalorder %s19, %s20
    %p29 = scmp.eq.s32.totalorder %s14, 0
    %p30 = por %p28, %p29
    %p31 = scmp.ne.s32.totalorder %s19, %s20
    %p32 = scmp.eq.s32.totalorder %s15, 1
    %p33 = por %p31, %p32
    %p35 = scmp.ne.s32.totalorder %s20, %s34
    %p36 = scmp.eq.s32.totalorder %s15, 0
    %p37 = por %p35, %p36
    %s38 = ssub.s32 %s9, %s16
    %p39 = scmp.eq.s32.totalorder %s38, 0
    %s41 = sadd.s32 %s40, 1
    %s42 = scalar_select %p39, %s40, %s41
    %p45 = pneg %p39
    %p46 = scmp.eq.s32.totalorder %s9, 1
    %p47 = por %p45, %p46
    %p48 = scmp.ne.s32.totalorder %s40, %s43
    %p49 = scmp.eq.s32.totalorder %s9, 0
    %p50 = por %p48, %p49
    %p51 = scmp.ne.s32.totalorder %s40, %s43
    %p52 = scmp.eq.s32.totalorder %s14, 1
    %p53 = por %p51, %p52
    %p54 = scmp.ne.s32.totalorder %s43, %s44
    %p55 = scmp.eq.s32.totalorder %s14, 0
    %p56 = por %p54, %p55
    %p57 = scmp.ne.s32.totalorder %s43, %s44
    %p58 = scmp.eq.s32.totalorder %s15, 1
    %p59 = por %p57, %p58
    %p61 = scmp.ne.s32.totalorder %s44, %s60
    %p62 = scmp.eq.s32.totalorder %s15, 0
    %p63 = por %p61, %p62
    %s64 = ssub.s32 %s9, %s16
    %p65 = scmp.eq.s32.totalorder %s64, 0
    %s67 = sadd.s32 %s66, 1
    %s68 = scalar_select %p65, %s66, %s67
    %p71 = pneg %p65
    %p72 = scmp.eq.s32.totalorder %s9, 1
    %p73 = por %p71, %p72
    %p74 = scmp.ne.s32.totalorder %s66, %s69
    %p75 = scmp.eq.s32.totalorder %s9, 0
    %p76 = por %p74, %p75
    %p77 = scmp.ne.s32.totalorder %s66, %s69
    %p78 = scmp.eq.s32.totalorder %s14, 1
    %p79 = por %p77, %p78
    %p80 = scmp.ne.s32.totalorder %s69, %s70
    %p81 = scmp.eq.s32.totalorder %s14, 0
    %p82 = por %p80, %p81
    %p83 = scmp.ne.s32.totalorder %s69, %s70
    %p84 = scmp.eq.s32.totalorder %s15, 1
    %p85 = por %p83, %p84
    %p87 = scmp.ne.s32.totalorder %s70, %s86
    %p88 = scmp.eq.s32.totalorder %s15, 0
    %p89 = por %p87, %p88
    %s90 = ssub.s32 %s9, %s16
    %p91 = scmp.eq.s32.totalorder %s90, 0
    %s93 = sadd.s32 %s92, 1
    %s94 = scalar_select %p91, %s92, %s93
    %p97 = pneg %p91
    %p98 = scmp.eq.s32.totalorder %s9, 1
    %p99 = por %p97, %p98
    %p100 = scmp.ne.s32.totalorder %s92, %s95
    %p101 = scmp.eq.s32.totalorder %s9, 0
    %p102 = por %p100, %p101
    %p103 = scmp.ne.s32.totalorder %s92, %s95
    %p104 = scmp.eq.s32.totalorder %s14, 1
    %p105 = por %p103, %p104
    %p106 = scmp.ne.s32.totalorder %s95, %s96
    %p107 = scmp.eq.s32.totalorder %s14, 0
    %p108 = por %p106, %p107
    %p109 = scmp.ne.s32.totalorder %s95, %s96
    %p110 = scmp.eq.s32.totalorder %s15, 1
    %p111 = por %p109, %p110
    %p113 = scmp.ne.s32.totalorder %s96, %s112
    %p114 = scmp.eq.s32.totalorder %s15, 0
    %p115 = por %p113, %p114
    %p116 = scmp.le.s32.totalorder 1, %s9
    %p117 = scmp.lt.s32.totalorder %s9, 3
    %p118 = pnand %p116, %p117
    %p119 = pneg %p118
    // Predicated region
    $region9: #{memnet_plus_forward.13} parent=5 // pred_check
      _
    $region10: #{memnet_plus_forward.13} parent=5 // pred_check_branch
      %121 = sbr.rel (%p118) target = $region12
    $region11: #{memnet_plus_forward.13} parent=5 // pred_region
      %s122 = ssub.s32 %s9, 1
      // Predicated region
      $region13: #{memnet_plus_forward.13} parent=11 // pred_check
        %p123 = pneg %p30
      $region14: #{memnet_plus_forward.13} parent=11 // pred_check_branch
        %125 = sbr.rel (%p123) target = $region16
      $region15: #{memnet_plus_forward.13} parent=11 // pred_region
        _
      $region16: #{memnet_plus_forward.13} parent=11 // pred_fallthru
        _
    $region12: #{memnet_plus_forward.13} parent=5 // pred_fallthru
      _
    %p126 = scmp.lt.s32.totalorder %s9, 2
    // Predicated region
    $region17: #{memnet_plus_forward.13} parent=5 // pred_check
      %p127 = pneg %p126
    $region18: #{memnet_plus_forward.13} parent=5 // pred_check_branch
      %129 = sbr.rel (%p127) target = $region20
    $region19: #{memnet_plus_forward.13} parent=5 // pred_region
      // Predicated region
      $region21: #{memnet_plus_forward.13} parent=19 // pred_check
        %p130 = pneg %p50
      $region22: #{memnet_plus_forward.13} parent=19 // pred_check_branch
        %132 = sbr.rel (%p130) target = $region24
      $region23: #{memnet_plus_forward.13} parent=19 // pred_region
        %p133 = scmp.lt.s32.totalorder %s9, 1
        %s134 = scalar_select %p133, %s9, 1
        %s135 = smul.addr %s134, 4
        %s136 = smul.addr %s135, 8
        %s137 = scalar_lea.vmem %s1, %s136
      $region24: #{memnet_plus_forward.13} parent=19 // pred_fallthru
        _
      // Predicated region
      $region25: #{memnet_plus_forward.13} parent=19 // pred_check
        %p138 = pneg %p76
      $region26: #{memnet_plus_forward.13} parent=19 // pred_check_branch
        %140 = sbr.rel (%p138) target = $region28
      $region27: #{memnet_plus_forward.13} parent=19 // pred_region
        %p141 = scmp.lt.s32.totalorder %s9, 1
        %s142 = scalar_select %p141, %s9, 1
        %s143 = scalar_lea.vmem %s2, %s142
      $region28: #{memnet_plus_forward.13} parent=19 // pred_fallthru
        _
    $region20: #{memnet_plus_forward.13} parent=5 // pred_fallthru
      _
    %p144 = scmp.le.s32.totalorder 1, %s9
    %p145 = scmp.lt.s32.totalorder %s9, 3
    %p146 = pnand %p144, %p145
    %p147 = pneg %p146
    // Predicated region
    $region29: #{memnet_plus_forward.13} parent=5 // pred_check
      _
    $region30: #{memnet_plus_forward.13} parent=5 // pred_check_branch
      %149 = sbr.rel (%p146) target = $region32
    $region31: #{memnet_plus_forward.13} parent=5 // pred_region
      %s150 = ssub.s32 %s9, 1
      %p151 = pneg %p30
      %p152 = pneg %p27
      %p153 = scmp.lt.s32.totalorder %s14, 1
      %s154 = scalar_select %p153, %s14, 1
      %s155 = smul.addr %s154, 4
      %s156 = smul.addr %s155, 8
      %s157 = scalar_lea.vmem %s1, %s156
      %p158 = pneg %p56
      %p159 = pneg %p53
      %p160 = scmp.lt.s32.totalorder %s14, 1
      %s161 = scalar_select %p160, %s14, 1
      %s162 = scalar_lea.vmem %s2, %s161
      %p163 = pneg %p82
      %p164 = pneg %p79
      %p165 = pneg %p108
      %p166 = pneg %p105
      %p167 = scmp.lt.s32.totalorder %s14, 1
      %s168 = scalar_select %p167, %s14, 1
      %s169 = smul.addr %s168, 2
      %s170 = smul.addr %s169, 8
      %s171 = scalar_lea.vmem %s3, %s170
      %p172 = scmp.lt.s32.totalorder %s14, 1
      %s173 = scalar_select %p172, %s14, 1
      %s174 = smul.addr %s173, 4
      %s175 = smul.addr %s174, 8
      %s176 = scalar_lea.vmem %s1, %s175
      %p177 = scmp.lt.s32.totalorder %s14, 1
      %s178 = scalar_select %p177, %s14, 1
      %s179 = scalar_lea.vmem %s2, %s178
      %p180 = scmp.lt.s32.totalorder %s14, 1
      %s181 = scalar_select %p180, %s14, 1
      %s182 = smul.addr %s181, 2
      %s183 = smul.addr %s182, 8
      %s184 = scalar_lea.vmem %s3, %s183
      %v185 = vld [vmem:[%s0] sm:$0xff]
      %v186 = vld [vmem:[%s0 + $0x8] sm:$0xff]
      %v187 = vld [vmem:[%s176] sm:$0xff]
      %v188 = vld [vmem:[%s176 + $0x8] sm:$0xff]
      %v189 = vld [vmem:[%s176 + $0x10] sm:$0xff]
      %v190 = vld [vmem:[%s176 + $0x18] sm:$0xff]
      %v191 = vld [vmem:[%s179] sm:$0x1]
      %v193 = vlaneseq
      %v194 = vshrl.u32 %v193, 7
      %v195 = vsub.s32 0, %v194
      %v196 = vrot.slane %v191, %v195
      %vm198 = vcmask 261120
      %v200 = vsel %vm198, %v185, 0
      %v203 = vsel %vm198, %v186, 0
      %205 = vmatprep.subr.mxu0 0.0
      %206 = vmatpush1.msra.mxu0 %v187
      %207 = vmatprep.subr.mxu0 0.0
      %208 = vmatpush1.msra.mxu0 %v188
      %209 = vmatprep.subr.mxu0 0.0
      %210 = vmatpush1.msra.mxu0 %v189
      %211 = vmatprep.subr.mxu0 0.0
      %212 = vmatpush1.msra.mxu0 %v190
      %213 = vmatprep.subr.mxu0 0.0
      %214 = vmatpush1.msra.mxu0 0.0
      %215 = vmatprep.subr.mxu0 0.0
      %216 = vmatpush1.msra.mxu0 0.0
      %217 = vmatprep.subr.mxu0 0.0
      %218 = vmatpush1.msra.mxu0 0.0
      %219 = vmatprep.subr.mxu0 0.0
      %220 = vmatpush1.msra.mxu0 0.0
      %221 = vmatprep.subr.mxu0 0.0
      %222 = vmatpush1.msra.mxu0 0.0
      %223 = vmatprep.subr.mxu0 0.0
      %224 = vmatpush1.msra.mxu0 0.0
      %225 = vmatprep.subr.mxu0 0.0
      %226 = vmatpush1.msra.mxu0 0.0
      %227 = vmatprep.subr.mxu0 0.0
      %228 = vmatpush1.msra.mxu0 0.0
      %229 = vmatprep.subr.mxu0 0.0
      %230 = vmatpush1.msra.mxu0 0.0
      %231 = vmatprep.subr.mxu0 0.0
      %232 = vmatpush1.msra.mxu0 0.0
      %233 = vmatprep.subr.mxu0 0.0
      %234 = vmatpush1.msra.mxu0 0.0
      %235 = vmatprep.subr.mxu0 0.0
      %236 = vmatpush1.msra.mxu0 0.0
      %237 = vmatprep.subr.mxu0 0.0
      %238 = vmatpush1.msra.mxu0 0.0
      %239 = vmatprep.subr.mxu0 0.0
      %240 = vmatpush1.msra.mxu0 0.0
      %241 = vmatprep.subr.mxu0 0.0
      %242 = vmatpush1.msra.mxu0 0.0
      %243 = vmatprep.subr.mxu0 0.0
      %244 = vmatpush1.msra.mxu0 0.0
      %245 = vmatprep.subr.mxu0 0.0
      %246 = vmatpush1.msra.mxu0 0.0
      %247 = vmatprep.subr.mxu0 0.0
      %248 = vmatpush1.msra.mxu0 0.0
      %249 = vmatprep.subr.mxu0 0.0
      %250 = vmatpush1.msra.mxu0 0.0
      %251 = vmatprep.subr.mxu0 0.0
      %252 = vmatpush1.msra.mxu0 0.0
      %253 = vmatprep.subr.mxu0 0.0
      %254 = vmatpush1.msra.mxu0 0.0
      %255 = vmatprep.subr.mxu0 0.0
      %256 = vmatpush1.msra.mxu0 0.0
      %257 = vmatprep.subr.mxu0 0.0
      %258 = vmatpush1.msra.mxu0 0.0
      %259 = vmatprep.subr.mxu0 0.0
      %260 = vmatpush1.msra.mxu0 0.0
      %261 = vmatprep.subr.mxu0 0.0
      %262 = vmatpush1.msra.mxu0 0.0
      %263 = vmatprep.subr.mxu0 0.0
      %264 = vmatpush1.msra.mxu0 0.0
      %265 = vmatprep.subr.mxu0 0.0
      %266 = vmatpush1.msra.mxu0 0.0
      %267 = vmatprep.subr.mxu0 0.0
      %268 = vmatpush1.msra.mxu0 0.0
      %269 = vmatprep.mubr.f32.mxu0 0.0
      %270 = vmatmul.mubr.f32.gmra.mrb[0].mxu0 %v200
      %v271 = vpop.f32.mrb[0].mxu0
      %v272 = vadd.f32 %v196, %v271
      %v273 = vpop.f32.mrb[0].mxu0
      %274 = vmatprep.mubr.f32.mxu0 0.0
      %275 = vmatmul.mubr.f32.gmra.mrb[0].mxu0 %v203
      %v276 = vpop.f32.mrb[0].mxu0
      %v277 = vadd.f32 %v196, %v276
      %v278 = vpop.f32.mrb[0].mxu0
      %279 = vdwg.mxu0
      %vm280 = vcmask 392192
      %281 = vst.msk [vmem:[%s184] sm:$0xff] %vm280, %v272
      %282 = vst.msk [vmem:[%s184 + $0x8] sm:$0xff] %vm280, %v277
      %p283 = scmp.lt.s32.totalorder %s14, 1
      %s284 = scalar_select %p283, %s14, 1
      %s285 = smul.addr %s284, 2
      %s286 = smul.addr %s285, 8
      %s287 = scalar_lea.vmem %s3, %s286
      // Predicated region
      $region33: #{memnet_plus_forward.13} parent=31 // pred_check
        %p288 = pneg %p105
      $region34: #{memnet_plus_forward.13} parent=31 // pred_check_branch
        %290 = sbr.rel (%p288) target = $region36
      $region35: #{memnet_plus_forward.13} parent=31 // pred_region
        _
      $region36: #{memnet_plus_forward.13} parent=31 // pred_fallthru
        _
    $region32: #{memnet_plus_forward.13} parent=5 // pred_fallthru
      _
    %p291 = scmp.le.s32.totalorder 2, %s9
    // Predicated region
    $region37: #{memnet_plus_forward.13} parent=5 // pred_check
      %p292 = pneg %p291
    $region38: #{memnet_plus_forward.13} parent=5 // pred_check_branch
      %294 = sbr.rel (%p292) target = $region40
    $region39: #{memnet_plus_forward.13} parent=5 // pred_region
      %s295 = ssub.s32 %s9, 2
      // Predicated region
      $region41: #{memnet_plus_forward.13} parent=39 // pred_check
        %p296 = pneg %p111
      $region42: #{memnet_plus_forward.13} parent=39 // pred_check_branch
        %298 = sbr.rel (%p296) target = $region44
      $region43: #{memnet_plus_forward.13} parent=39 // pred_region
        %p299 = scmp.lt.s32.totalorder %s15, 1
        %s300 = scalar_select %p299, %s15, 1
        %s301 = smul.addr %s300, 2
        %s302 = smul.addr %s301, 8
        %s303 = scalar_lea.vmem %s3, %s302
      $region44: #{memnet_plus_forward.13} parent=39 // pred_fallthru
        _
    $region40: #{memnet_plus_forward.13} parent=5 // pred_fallthru
      _
  $region6: #{memnet_plus_forward.13} parent=0 // loop_footer
    %s13 = sadd.s32 1, %s9
  $region7: #{memnet_plus_forward.13} parent=0 // loop_footer_branch
    %8 = sbr.rel target = $region3
  $region8: #{memnet_plus_forward.13} parent=0 // loop_exit
    _

// kernel: memnet_plus_forward.14
$region0: #{memnet_plus_forward.14}
  #allocation0 [shape = 'u32[]', space=smem, size = 0x4, offset = 0x4, fixed_abs, tag = 'smem constant byte address 0x4 - core index']
  #allocation1 [shape = 'u32[144,128]{1,0:T(1,128)}', space=vmem, size = 0x12000, scoped, tag = 'internal scratch']
  %s0 = inlined_call_operand.vmem [shape: f32[2,8,2,48], index: 0, kind: input, shape index: {}]
  %s1 = inlined_call_operand.vmem [shape: f32[8,2,1], index: 1, kind: input, shape index: {}]
  %s2 = inlined_call_operand.vmem [shape: f32[2,16,48], index: 2, kind: input, shape index: {}]
  %s3 = inlined_call_operand.vmem [shape: f32[2,1,48], index: 3, kind: input, shape index: {}]
  %s4 = inlined_call_operand.vmem [shape: f32[2,2,16], index: 4, kind: output, shape index: {}]
  %s5 = sld [smem:[#allocation0]]
  $region56: #{memnet_plus_forward.14} parent=0
    _
  %s7 = ssub.s32 1, %s5
  %s8 = scalar_select 0, %s7, %s5
  loop: start=0, step=1, limit=4
  $region2: #{memnet_plus_forward.14} parent=0 // loop_pre_header
    _
  $region3: #{memnet_plus_forward.14} parent=0 // loop_header
    %s10 = sphi 0, %s14
    %p11 = scmp.ge.s32.totalorder %s10, 4
    %s20 = sphi 0, %s22
    %s23 = sphi 0, %s20
    %s24 = sphi 0, %s23
    %s40 = sphi 0, %s24
    %s44 = sphi 0, %s44
    %s46 = sphi 0, %s44
    %s47 = sphi 0, %s46
    %s61 = sphi 0, %s47
    %s67 = sphi 0, %s69
    %s70 = sphi 0, %s67
    %s71 = sphi 0, %s70
    %s87 = sphi 0, %s71
    %s93 = sphi 0, %s95
    %s96 = sphi 0, %s93
    %s97 = sphi 0, %s96
    %s113 = sphi 0, %s97
    %s119 = sphi 0, %s121
    %s122 = sphi 0, %s119
    %s123 = sphi 0, %s122
    %s139 = sphi 0, %s123
  $region4: #{memnet_plus_forward.14} parent=0 // loop_header_branch
    %13 = sbr.rel (%p11) target = $region8
  $region5: #{memnet_plus_forward.14} parent=0 // loop_body
    %s15 = ssub.s32 %s10, 1
    %s16 = ssub.s32 %s10, 2
    %s17 = sadd.s32 %s10, 1
    %s18 = ssub.s32 %s10, %s17
    %p19 = scmp.eq.s32.totalorder %s18, 0
    %s21 = sadd.s32 %s20, 1
    %s22 = scalar_select %p19, %s20, %s21
    %p25 = pneg %p19
    %p26 = scmp.eq.s32.totalorder %s10, 1
    %p27 = por %p25, %p26
    %p28 = scmp.ne.s32.totalorder %s20, %s23
    %p29 = scmp.eq.s32.totalorder %s10, 0
    %p30 = por %p28, %p29
    %p31 = scmp.ne.s32.totalorder %s20, %s23
    %p32 = scmp.eq.s32.totalorder %s15, 1
    %p33 = por %p31, %p32
    %p34 = scmp.ne.s32.totalorder %s23, %s24
    %p35 = scmp.eq.s32.totalorder %s15, 0
    %p36 = por %p34, %p35
    %p37 = scmp.ne.s32.totalorder %s23, %s24
    %p38 = scmp.eq.s32.totalorder %s16, 1
    %p39 = por %p37, %p38
    %p41 = scmp.ne.s32.totalorder %s24, %s40
    %p42 = scmp.eq.s32.totalorder %s16, 0
    %p43 = por %p41, %p42
    %s45 = sadd.s32 %s44, 1
    %p48 = scmp.eq.s32.totalorder %s10, 1
    %p49 = scmp.ne.s32.totalorder %s44, %s46
    %p50 = scmp.eq.s32.totalorder %s10, 0
    %p51 = por %p49, %p50
    %p52 = scmp.ne.s32.totalorder %s44, %s46
    %p53 = scmp.eq.s32.totalorder %s15, 1
    %p54 = por %p52, %p53
    %p55 = scmp.ne.s32.totalorder %s46, %s47
    %p56 = scmp.eq.s32.totalorder %s15, 0
    %p57 = por %p55, %p56
    %p58 = scmp.ne.s32.totalorder %s46, %s47
    %p59 = scmp.eq.s32.totalorder %s16, 1
    %p60 = por %p58, %p59
    %p62 = scmp.ne.s32.totalorder %s47, %s61
    %p63 = scmp.eq.s32.totalorder %s16, 0
    %p64 = por %p62, %p63
    %s65 = ssub.s32 %s10, %s17
    %p66 = scmp.eq.s32.totalorder %s65, 0
    %s68 = sadd.s32 %s67, 1
    %s69 = scalar_select %p66, %s67, %s68
    %p72 = pneg %p66
    %p73 = scmp.eq.s32.totalorder %s10, 1
    %p74 = por %p72, %p73
    %p75 = scmp.ne.s32.totalorder %s67, %s70
    %p76 = scmp.eq.s32.totalorder %s10, 0
    %p77 = por %p75, %p76
    %p78 = scmp.ne.s32.totalorder %s67, %s70
    %p79 = scmp.eq.s32.totalorder %s15, 1
    %p80 = por %p78, %p79
    %p81 = scmp.ne.s32.totalorder %s70, %s71
    %p82 = scmp.eq.s32.totalorder %s15, 0
    %p83 = por %p81, %p82
    %p84 = scmp.ne.s32.totalorder %s70, %s71
    %p85 = scmp.eq.s32.totalorder %s16, 1
    %p86 = por %p84, %p85
    %p88 = scmp.ne.s32.totalorder %s71, %s87
    %p89 = scmp.eq.s32.totalorder %s16, 0
    %p90 = por %p88, %p89
    %s91 = ssub.s32 %s10, %s17
    %p92 = scmp.eq.s32.totalorder %s91, 0
    %s94 = sadd.s32 %s93, 1
    %s95 = scalar_select %p92, %s93, %s94
    %p98 = pneg %p92
    %p99 = scmp.eq.s32.totalorder %s10, 1
    %p100 = por %p98, %p99
    %p101 = scmp.ne.s32.totalorder %s93, %s96
    %p102 = scmp.eq.s32.totalorder %s10, 0
    %p103 = por %p101, %p102
    %p104 = scmp.ne.s32.totalorder %s93, %s96
    %p105 = scmp.eq.s32.totalorder %s15, 1
    %p106 = por %p104, %p105
    %p107 = scmp.ne.s32.totalorder %s96, %s97
    %p108 = scmp.eq.s32.totalorder %s15, 0
    %p109 = por %p107, %p108
    %p110 = scmp.ne.s32.totalorder %s96, %s97
    %p111 = scmp.eq.s32.totalorder %s16, 1
    %p112 = por %p110, %p111
    %p114 = scmp.ne.s32.totalorder %s97, %s113
    %p115 = scmp.eq.s32.totalorder %s16, 0
    %p116 = por %p114, %p115
    %s117 = ssub.s32 %s10, %s17
    %p118 = scmp.eq.s32.totalorder %s117, 0
    %s120 = sadd.s32 %s119, 1
    %s121 = scalar_select %p118, %s119, %s120
    %p124 = pneg %p118
    %p125 = scmp.eq.s32.totalorder %s10, 1
    %p126 = por %p124, %p125
    %p127 = scmp.ne.s32.totalorder %s119, %s122
    %p128 = scmp.eq.s32.totalorder %s10, 0
    %p129 = por %p127, %p128
    %p130 = scmp.ne.s32.totalorder %s119, %s122
    %p131 = scmp.eq.s32.totalorder %s15, 1
    %p132 = por %p130, %p131
    %p133 = scmp.ne.s32.totalorder %s122, %s123
    %p134 = scmp.eq.s32.totalorder %s15, 0
    %p135 = por %p133, %p134
    %p136 = scmp.ne.s32.totalorder %s122, %s123
    %p137 = scmp.eq.s32.totalorder %s16, 1
    %p138 = por %p136, %p137
    %p140 = scmp.ne.s32.totalorder %s123, %s139
    %p141 = scmp.eq.s32.totalorder %s16, 0
    %p142 = por %p140, %p141
    %p143 = scmp.le.s32.totalorder 1, %s10
    %p144 = scmp.lt.s32.totalorder %s10, 3
    %p145 = pnand %p143, %p144
    %p146 = pneg %p145
    // Predicated region
    $region9: #{memnet_plus_forward.14} parent=5 // pred_check
      _
    $region10: #{memnet_plus_forward.14} parent=5 // pred_check_branch
      %148 = sbr.rel (%p145) target = $region12
    $region11: #{memnet_plus_forward.14} parent=5 // pred_region
      %s149 = ssub.s32 %s10, 1
      // Predicated region
      $region13: #{memnet_plus_forward.14} parent=11 // pred_check
        %p150 = pneg %p57
      $region14: #{memnet_plus_forward.14} parent=11 // pred_check_branch
        %152 = sbr.rel (%p150) target = $region16
      $region15: #{memnet_plus_forward.14} parent=11 // pred_region
        _
      $region16: #{memnet_plus_forward.14} parent=11 // pred_fallthru
        _
    $region12: #{memnet_plus_forward.14} parent=5 // pred_fallthru
      _
    %p153 = scmp.lt.s32.totalorder %s10, 2
    // Predicated region
    $region17: #{memnet_plus_forward.14} parent=5 // pred_check
      %p154 = pneg %p153
    $region18: #{memnet_plus_forward.14} parent=5 // pred_check_branch
      %156 = sbr.rel (%p154) target = $region20
    $region19: #{memnet_plus_forward.14} parent=5 // pred_region
      // Predicated region
      $region21: #{memnet_plus_forward.14} parent=19 // pred_check
        %p157 = pneg %p30
      $region22: #{memnet_plus_forward.14} parent=19 // pred_check_branch
        %159 = sbr.rel (%p157) target = $region24
      $region23: #{memnet_plus_forward.14} parent=19 // pred_region
        %p160 = scmp.lt.s32.totalorder %s10, 1
        %s161 = scalar_select %p160, %s10, 1
        %s162 = smul.addr %s161, 8
        %s163 = smul.addr %s162, 2
        %s164 = scalar_lea.vmem %s0, %s163
      $region24: #{memnet_plus_forward.14} parent=19 // pred_fallthru
        _
      // Predicated region
      $region25: #{memnet_plus_forward.14} parent=19 // pred_check
        %p165 = pneg %p77
      $region26: #{memnet_plus_forward.14} parent=19 // pred_check_branch
        %167 = sbr.rel (%p165) target = $region28
      $region27: #{memnet_plus_forward.14} parent=19 // pred_region
        %p168 = scmp.lt.s32.totalorder %s10, 1
        %s169 = scalar_select %p168, %s10, 1
        %s170 = smul.addr %s169, 2
        %s171 = smul.addr %s170, 8
        %s172 = scalar_lea.vmem %s2, %s171
      $region28: #{memnet_plus_forward.14} parent=19 // pred_fallthru
        _
      // Predicated region
      $region29: #{memnet_plus_forward.14} parent=19 // pred_check
        %p173 = pneg %p103
      $region30: #{memnet_plus_forward.14} parent=19 // pred_check_branch
        %175 = sbr.rel (%p173) target = $region32
      $region31: #{memnet_plus_forward.14} parent=19 // pred_region
        %p176 = scmp.lt.s32.totalorder %s10, 1
        %s177 = scalar_select %p176, %s10, 1
        %s178 = scalar_lea.vmem %s3, %s177
      $region32: #{memnet_plus_forward.14} parent=19 // pred_fallthru
        _
    $region20: #{memnet_plus_forward.14} parent=5 // pred_fallthru
      _
    %p179 = scmp.le.s32.totalorder 1, %s10
    %p180 = scmp.lt.s32.totalorder %s10, 3
    %p181 = pnand %p179, %p180
    %p182 = pneg %p181
    // Predicated region
    $region33: #{memnet_plus_forward.14} parent=5 // pred_check
      _
    $region34: #{memnet_plus_forward.14} parent=5 // pred_check_branch
      %184 = sbr.rel (%p181) target = $region36
    $region35: #{memnet_plus_forward.14} parent=5 // pred_region
      %s185 = ssub.s32 %s10, 1
      %p186 = scmp.lt.s32.totalorder %s15, 1
      %s187 = scalar_select %p186, %s15, 1
      %s188 = smul.addr %s187, 8
      %s189 = smul.addr %s188, 2
      %s190 = scalar_lea.vmem %s0, %s189
      %p191 = pneg %p36
      %p192 = pneg %p33
      %p193 = pneg %p57
      %p194 = pneg %p54
      %p195 = scmp.lt.s32.totalorder %s15, 1
      %s196 = scalar_select %p195, %s15, 1
      %s197 = smul.addr %s196, 2
      %s198 = smul.addr %s197, 8
      %s199 = scalar_lea.vmem %s2, %s198
      %p200 = pneg %p83
      %p201 = pneg %p80
      %p202 = scmp.lt.s32.totalorder %s15, 1
      %s203 = scalar_select %p202, %s15, 1
      %s204 = scalar_lea.vmem %s3, %s203
      %p205 = pneg %p109
      %p206 = pneg %p106
      %p207 = pneg %p135
      %p208 = pneg %p132
      %p209 = scmp.lt.s32.totalorder %s15, 1
      %s210 = scalar_select %p209, %s15, 1
      %s211 = smul.addr %s210, 2
      %s212 = scalar_lea.vmem %s4, %s211
      %p213 = scmp.lt.s32.totalorder %s15, 1
      %s214 = scalar_select %p213, %s15, 1
      %s215 = smul.addr %s214, 8
      %s216 = smul.addr %s215, 2
      %s217 = scalar_lea.vmem %s0, %s216
      %p218 = scmp.lt.s32.totalorder %s15, 1
      %s219 = scalar_select %p218, %s15, 1
      %s220 = smul.addr %s219, 2
      %s221 = smul.addr %s220, 8
      %s222 = scalar_lea.vmem %s2, %s221
      %p223 = scmp.lt.s32.totalorder %s15, 1
      %s224 = scalar_select %p223, %s15, 1
      %s225 = scalar_lea.vmem %s3, %s224
      %p226 = scmp.lt.s32.totalorder %s15, 1
      %s227 = scalar_select %p226, %s15, 1
      %s228 = smul.addr %s227, 2
      %s229 = scalar_lea.vmem %s4, %s228
      loop: start=0, step=1, limit=8
      $region37: #{memnet_plus_forward.14} parent=35 // loop_pre_header
        _
      $region38: #{memnet_plus_forward.14} parent=35 // loop_header
        %s231 = sphi 0, %s235
        %p232 = scmp.ge.s32.totalorder %s231, 8
        %v236 = vphi 0.0, %v370
      $region39: #{memnet_plus_forward.14} parent=35 // loop_header_branch
        %234 = sbr.rel (%p232) target = $region43
      $region40: #{memnet_plus_forward.14} parent=35 // loop_body
        %s237 = smul.u32 %s231, 2
        %s238 = ssub.s32 7, %s237
        %s239 = smul.u32 %s15, %s238
        %s240 = sadd.s32 %s231, %s239
        %s241 = smul.u32 %s240, 2
        %s242 = scalar_lea.vmem %s217, %s241
        %v243 = vld [vmem:[%s242] sm:$0x3]
        %v244 = vld [vmem:[%s222] sm:$0xff]
        %v245 = vld [vmem:[%s222 + $0x8] sm:$0xff]
        %v246 = vld [vmem:[%s225] sm:$0x1]
        %v248 = vlaneseq
        %v249 = vshrl.u32 %v248, 7
        %v250 = vsub.s32 0, %v249
        %v251 = vrot.slane %v246, %v250
        %254 = vrot.lane.b32.xlu0 %v236, 112
        %v255 = vpop.permute.xlu0 %254
        %vm256 = vcmask 130048
        %v257 = vsel %vm256, %v255, 0
        %259 = vmatprep.subr.mxu0 0.0
        %260 = vmatpush1.msra.mxu0 %v244
        %261 = vmatprep.subr.mxu0 0.0
        %262 = vmatpush1.msra.mxu0 %v245
        %263 = vmatprep.subr.mxu0 0.0
        %264 = vmatpush1.msra.mxu0 0.0
        %265 = vmatprep.subr.mxu0 0.0
        %266 = vmatpush1.msra.mxu0 0.0
        %267 = vmatprep.subr.mxu0 0.0
        %268 = vmatpush1.msra.mxu0 0.0
        %269 = vmatprep.subr.mxu0 0.0
        %270 = vmatpush1.msra.mxu0 0.0
        %271 = vmatprep.subr.mxu0 0.0
        %272 = vmatpush1.msra.mxu0 0.0
        %273 = vmatprep.subr.mxu0 0.0
        %274 = vmatpush1.msra.mxu0 0.0
        %275 = vmatprep.subr.mxu0 0.0
        %276 = vmatpush1.msra.mxu0 0.0
        %277 = vmatprep.subr.mxu0 0.0
        %278 = vmatpush1.msra.mxu0 0.0
        %279 = vmatprep.subr.mxu0 0.0
        %280 = vmatpush1.msra.mxu0 0.0
        %281 = vmatprep.subr.mxu0 0.0
        %282 = vmatpush1.msra.mxu0 0.0
        %283 = vmatprep.subr.mxu0 0.0
        %284 = vmatpush1.msra.mxu0 0.0
        %285 = vmatprep.subr.mxu0 0.0
        %286 = vmatpush1.msra.mxu0 0.0
        %287 = vmatprep.subr.mxu0 0.0
        %288 = vmatpush1.msra.mxu0 0.0
        %289 = vmatprep.subr.mxu0 0.0
        %290 = vmatpush1.msra.mxu0 0.0
        %291 = vmatprep.subr.mxu0 0.0
        %292 = vmatpush1.msra.mxu0 0.0
        %293 = vmatprep.subr.mxu0 0.0
        %294 = vmatpush1.msra.mxu0 0.0
        %295 = vmatprep.subr.mxu0 0.0
        %296 = vmatpush1.msra.mxu0 0.0
        %297 = vmatprep.subr.mxu0 0.0
        %298 = vmatpush1.msra.mxu0 0.0
        %299 = vmatprep.subr.mxu0 0.0
        %300 = vmatpush1.msra.mxu0 0.0
        %301 = vmatprep.subr.mxu0 0.0
        %302 = vmatpush1.msra.mxu0 0.0
        %303 = vmatprep.subr.mxu0 0.0
        %304 = vmatpush1.msra.mxu0 0.0
        %305 = vmatprep.subr.mxu0 0.0
        %306 = vmatpush1.msra.mxu0 0.0
        %307 = vmatprep.subr.mxu0 0.0
        %308 = vmatpush1.msra.mxu0 0.0
        %309 = vmatprep.subr.mxu0 0.0
        %310 = vmatpush1.msra.mxu0 0.0
        %311 = vmatprep.subr.mxu0 0.0
        %312 = vmatpush1.msra.mxu0 0.0
        %313 = vmatprep.subr.mxu0 0.0
        %314 = vmatpush1.msra.mxu0 0.0
        %315 = vmatprep.subr.mxu0 0.0
        %316 = vmatpush1.msra.mxu0 0.0
        %317 = vmatprep.subr.mxu0 0.0
        %318 = vmatpush1.msra.mxu0 0.0
        %319 = vmatprep.subr.mxu0 0.0
        %320 = vmatpush1.msra.mxu0 0.0
        %321 = vmatprep.subr.mxu0 0.0
        %322 = vmatpush1.msra.mxu0 0.0
        %323 = vmatprep.mubr.f32.mxu0 0.0
        %324 = vmatmul.mubr.f32.gmra.mrb[0].mxu0 %v257
        %v325 = vpop.f32.mrb[0].mxu0
        %v326 = vadd.f32 %v251, %v325
        %v327 = vpop.f32.mrb[0].mxu0
        %328 = vdwg.mxu0
        %v329 = vadd.f32 %v243, %v326
        %v330 = vxor.u32 %v329, 2147483648
        %v331 = vmul.f32 %v330, 1.442695
        %v332 = vpow.pop %v331
        %v333 = vadd.f32 %v332, 1.0
        %v334 = vrcp.pop %v333
        %v335 = vmul.f32 1.0, %v334
        %337 = vrot.lane.b32.xlu0 %v326, 96
        %v338 = vpop.permute.xlu0 %337
        %v340 = vmul.f32 %v335, %v338
        %342 = vrot.lane.b32.xlu0 %v340, 32
        %v343 = vpop.permute.xlu0 %342
        %v345 = vadd.f32 %v243, %v343
        %v346 = vtanh.pop %v345
        %v347 = vsub.f32 1.0, %v335
        %349 = vrot.lane.b32.xlu0 %v346, 112
        %v350 = vpop.permute.xlu0 %349
        %v352 = vmul.f32 %v347, %v350
        %v353 = vmul.f32 %v335, %v236
        %v354 = vadd.f32 %v352, %v353
        %s355 = scalar_lea.vmem %s1, %s241
        %v356 = vld [vmem:[%s355] sm:$0x3]
        %358 = vset.pattern.permute.xlu0 0
        %359 = vperm.xlu0 %358, %v356
        %v360 = vpop.permute.xlu0 %359
        %v362 = vmul.f32 %v360, %v354
        %v363 = vsub.f32 1.0, %v356
        %365 = vset.pattern.permute.xlu0 0
        %366 = vperm.xlu0 %365, %v363
        %v367 = vpop.permute.xlu0 %366
        %v369 = vmul.f32 %v367, %v236
        %v370 = vadd.f32 %v362, %v369
      $region41: #{memnet_plus_forward.14} parent=35 // loop_footer
        %s235 = sadd.s32 1, %s231
      $region42: #{memnet_plus_forward.14} parent=35 // loop_footer_branch
        %230 = sbr.rel target = $region38
      $region43: #{memnet_plus_forward.14} parent=35 // loop_exit
        _
      %372 = vrot.lane.b32.xlu0 %v236, 112
      %v373 = vpop.permute.xlu0 %372
      %vm375 = vcmask 123904
      %376 = vst.msk [vmem:[%s229] sm:$0x3] %vm375, %v373
      %p377 = scmp.lt.s32.totalorder %s15, 1
      %s378 = scalar_select %p377, %s15, 1
      %s379 = smul.addr %s378, 2
      %s380 = scalar_lea.vmem %s4, %s379
      // Predicated region
      $region44: #{memnet_plus_forward.14} parent=35 // pred_check
        %p381 = pneg %p132
      $region45: #{memnet_plus_forward.14} parent=35 // pred_check_branch
        %383 = sbr.rel (%p381) target = $region47
      $region46: #{memnet_plus_forward.14} parent=35 // pred_region
        _
      $region47: #{memnet_plus_forward.14} parent=35 // pred_fallthru
        _
    $region36: #{memnet_plus_forward.14} parent=5 // pred_fallthru
      _
    %p384 = scmp.le.s32.totalorder 2, %s10
    // Predicated region
    $region48: #{memnet_plus_forward.14} parent=5 // pred_check
      %p385 = pneg %p384
    $region49: #{memnet_plus_forward.14} parent=5 // pred_check_branch
      %387 = sbr.rel (%p385) target = $region51
    $region50: #{memnet_plus_forward.14} parent=5 // pred_region
      %s388 = ssub.s32 %s10, 2
      // Predicated region
      $region52: #{memnet_plus_forward.14} parent=50 // pred_check
        %p389 = pneg %p138
      $region53: #{memnet_plus_forward.14} parent=50 // pred_check_branch
        %391 = sbr.rel (%p389) target = $region55
      $region54: #{memnet_plus_forward.14} parent=50 // pred_region
        %p392 = scmp.lt.s32.totalorder %s16, 1
        %s393 = scalar_select %p392, %s16, 1
        %s394 = smul.addr %s393, 2
        %s395 = scalar_lea.vmem %s4, %s394
      $region55: #{memnet_plus_forward.14} parent=50 // pred_fallthru
        _
    $region51: #{memnet_plus_forward.14} parent=5 // pred_fallthru
      _
  $region6: #{memnet_plus_forward.14} parent=0 // loop_footer
    %s14 = sadd.s32 1, %s10
  $region7: #{memnet_plus_forward.14} parent=0 // loop_footer_branch
    %9 = sbr.rel target = $region3
  $region8: #{memnet_plus_forward.14} parent=0 // loop_exit
    _

// kernel: memnet_plus_forward.11
$region0: #{memnet_plus_forward.11}
  #allocation0 [shape = 'u32[]', space=smem, size = 0x4, offset = 0x4, fixed_abs, tag = 'smem constant byte address 0x4 - core index']
  #allocation1 [shape = 'u32[144,128]{1,0:T(1,128)}', space=vmem, size = 0x12000, scoped, tag = 'internal scratch']
  %s0 = inlined_call_operand.vmem [shape: f32[48,32], index: 0, kind: input, shape index: {}]
  %s1 = inlined_call_operand.vmem [shape: f32[2,32,48], index: 1, kind: input, shape index: {}]
  %s2 = inlined_call_operand.vmem [shape: f32[2,1,48], index: 2, kind: input, shape index: {}]
  %s3 = inlined_call_operand.vmem [shape: f32[2,48,48], index: 3, kind: output, shape index: {}]
  %s4 = sld [smem:[#allocation0]]
  $region45: #{memnet_plus_forward.11} parent=0
    _
  %s6 = ssub.s32 1, %s4
  %s7 = scalar_select 0, %s6, %s4
  loop: start=0, step=1, limit=4
  $region2: #{memnet_plus_forward.11} parent=0 // loop_pre_header
    _
  $region3: #{memnet_plus_forward.11} parent=0 // loop_header
    %s9 = sphi 0, %s13
    %p10 = scmp.ge.s32.totalorder %s9, 4
    %s17 = sphi 0, %s17
    %s19 = sphi 0, %s17
    %s20 = sphi 0, %s19
    %s34 = sphi 0, %s20
    %s40 = sphi 0, %s42
    %s43 = sphi 0, %s40
    %s44 = sphi 0, %s43
    %s60 = sphi 0, %s44
    %s66 = sphi 0, %s68
    %s69 = sphi 0, %s66
    %s70 = sphi 0, %s69
    %s86 = sphi 0, %s70
    %s92 = sphi 0, %s94
    %s95 = sphi 0, %s92
    %s96 = sphi 0, %s95
    %s112 = sphi 0, %s96
  $region4: #{memnet_plus_forward.11} parent=0 // loop_header_branch
    %12 = sbr.rel (%p10) target = $region8
  $region5: #{memnet_plus_forward.11} parent=0 // loop_body
    %s14 = ssub.s32 %s9, 1
    %s15 = ssub.s32 %s9, 2
    %s16 = sadd.s32 %s9, 1
    %s18 = sadd.s32 %s17, 1
    %p21 = scmp.eq.s32.totalorder %s9, 1
    %p22 = scmp.ne.s32.totalorder %s17, %s19
    %p23 = scmp.eq.s32.totalorder %s9, 0
    %p24 = por %p22, %p23
    %p25 = scmp.ne.s32.totalorder %s17, %s19
    %p26 = scmp.eq.s32.totalorder %s14, 1
    %p27 = por %p25, %p26
    %p28 = scmp.ne.s32.totalorder %s19, %s20
    %p29 = scmp.eq.s32.totalorder %s14, 0
    %p30 = por %p28, %p29
    %p31 = scmp.ne.s32.totalorder %s19, %s20
    %p32 = scmp.eq.s32.totalorder %s15, 1
    %p33 = por %p31, %p32
    %p35 = scmp.ne.s32.totalorder %s20, %s34
    %p36 = scmp.eq.s32.totalorder %s15, 0
    %p37 = por %p35, %p36
    %s38 = ssub.s32 %s9, %s16
    %p39 = scmp.eq.s32.totalorder %s38, 0
    %s41 = sadd.s32 %s40, 1
    %s42 = scalar_select %p39, %s40, %s41
    %p45 = pneg %p39
    %p46 = scmp.eq.s32.totalorder %s9, 1
    %p47 = por %p45, %p46
    %p48 = scmp.ne.s32.totalorder %s40, %s43
    %p49 = scmp.eq.s32.totalorder %s9, 0
    %p50 = por %p48, %p49
    %p51 = scmp.ne.s32.totalorder %s40, %s43
    %p52 = scmp.eq.s32.totalorder %s14, 1
    %p53 = por %p51, %p52
    %p54 = scmp.ne.s32.totalorder %s43, %s44
    %p55 = scmp.eq.s32.totalorder %s14, 0
    %p56 = por %p54, %p55
    %p57 = scmp.ne.s32.totalorder %s43, %s44
    %p58 = scmp.eq.s32.totalorder %s15, 1
    %p59 = por %p57, %p58
    %p61 = scmp.ne.s32.totalorder %s44, %s60
    %p62 = scmp.eq.s32.totalorder %s15, 0
    %p63 = por %p61, %p62
    %s64 = ssub.s32 %s9, %s16
    %p65 = scmp.eq.s32.totalorder %s64, 0
    %s67 = sadd.s32 %s66, 1
    %s68 = scalar_select %p65, %s66, %s67
    %p71 = pneg %p65
    %p72 = scmp.eq.s32.totalorder %s9, 1
    %p73 = por %p71, %p72
    %p74 = scmp.ne.s32.totalorder %s66, %s69
    %p75 = scmp.eq.s32.totalorder %s9, 0
    %p76 = por %p74, %p75
    %p77 = scmp.ne.s32.totalorder %s66, %s69
    %p78 = scmp.eq.s32.totalorder %s14, 1
    %p79 = por %p77, %p78
    %p80 = scmp.ne.s32.totalorder %s69, %s70
    %p81 = scmp.eq.s32.totalorder %s14, 0
    %p82 = por %p80, %p81
    %p83 = scmp.ne.s32.totalorder %s69, %s70
    %p84 = scmp.eq.s32.totalorder %s15, 1
    %p85 = por %p83, %p84
    %p87 = scmp.ne.s32.totalorder %s70, %s86
    %p88 = scmp.eq.s32.totalorder %s15, 0
    %p89 = por %p87, %p88
    %s90 = ssub.s32 %s9, %s16
    %p91 = scmp.eq.s32.totalorder %s90, 0
    %s93 = sadd.s32 %s92, 1
    %s94 = scalar_select %p91, %s92, %s93
    %p97 = pneg %p91
    %p98 = scmp.eq.s32.totalorder %s9, 1
    %p99 = por %p97, %p98
    %p100 = scmp.ne.s32.totalorder %s92, %s95
    %p101 = scmp.eq.s32.totalorder %s9, 0
    %p102 = por %p100, %p101
    %p103 = scmp.ne.s32.totalorder %s92, %s95
    %p104 = scmp.eq.s32.totalorder %s14, 1
    %p105 = por %p103, %p104
    %p106 = scmp.ne.s32.totalorder %s95, %s96
    %p107 = scmp.eq.s32.totalorder %s14, 0
    %p108 = por %p106, %p107
    %p109 = scmp.ne.s32.totalorder %s95, %s96
    %p110 = scmp.eq.s32.totalorder %s15, 1
    %p111 = por %p109, %p110
    %p113 = scmp.ne.s32.totalorder %s96, %s112
    %p114 = scmp.eq.s32.totalorder %s15, 0
    %p115 = por %p113, %p114
    %p116 = scmp.le.s32.totalorder 1, %s9
    %p117 = scmp.lt.s32.totalorder %s9, 3
    %p118 = pnand %p116, %p117
    %p119 = pneg %p118
    // Predicated region
    $region9: #{memnet_plus_forward.11} parent=5 // pred_check
      _
    $region10: #{memnet_plus_forward.11} parent=5 // pred_check_branch
      %121 = sbr.rel (%p118) target = $region12
    $region11: #{memnet_plus_forward.11} parent=5 // pred_region
      %s122 = ssub.s32 %s9, 1
      // Predicated region
      $region13: #{memnet_plus_forward.11} parent=11 // pred_check
        %p123 = pneg %p30
      $region14: #{memnet_plus_forward.11} parent=11 // pred_check_branch
        %125 = sbr.rel (%p123) target = $region16
      $region15: #{memnet_plus_forward.11} parent=11 // pred_region
        _
      $region16: #{memnet_plus_forward.11} parent=11 // pred_fallthru
        _
    $region12: #{memnet_plus_forward.11} parent=5 // pred_fallthru
      _
    %p126 = scmp.lt.s32.totalorder %s9, 2
    // Predicated region
    $region17: #{memnet_plus_forward.11} parent=5 // pred_check
      %p127 = pneg %p126
    $region18: #{memnet_plus_forward.11} parent=5 // pred_check_branch
      %129 = sbr.rel (%p127) target = $region20
    $region19: #{memnet_plus_forward.11} parent=5 // pred_region
      // Predicated region
      $region21: #{memnet_plus_forward.11} parent=19 // pred_check
        %p130 = pneg %p50
      $region22: #{memnet_plus_forward.11} parent=19 // pred_check_branch
        %132 = sbr.rel (%p130) target = $region24
      $region23: #{memnet_plus_forward.11} parent=19 // pred_region
        %p133 = scmp.lt.s32.totalorder %s9, 1
        %s134 = scalar_select %p133, %s9, 1
        %s135 = smul.addr %s134, 4
        %s136 = smul.addr %s135, 8
        %s137 = scalar_lea.vmem %s1, %s136
      $region24: #{memnet_plus_forward.11} parent=19 // pred_fallthru
        _
      // Predicated region
      $region25: #{memnet_plus_forward.11} parent=19 // pred_check
        %p138 = pneg %p76
      $region26: #{memnet_plus_forward.11} parent=19 // pred_check_branch
        %140 = sbr.rel (%p138) target = $region28
      $region27: #{memnet_plus_forward.11} parent=19 // pred_region
        %p141 = scmp.lt.s32.totalorder %s9, 1
        %s142 = scalar_select %p141, %s9, 1
        %s143 = scalar_lea.vmem %s2, %s142
      $region28: #{memnet_plus_forward.11} parent=19 // pred_fallthru
        _
    $region20: #{memnet_plus_forward.11} parent=5 // pred_fallthru
      _
    %p144 = scmp.le.s32.totalorder 1, %s9
    %p145 = scmp.lt.s32.totalorder %s9, 3
    %p146 = pnand %p144, %p145
    %p147 = pneg %p146
    // Predicated region
    $region29: #{memnet_plus_forward.11} parent=5 // pred_check
      _
    $region30: #{memnet_plus_forward.11} parent=5 // pred_check_branch
      %149 = sbr.rel (%p146) target = $region32
    $region31: #{memnet_plus_forward.11} parent=5 // pred_region
      %s150 = ssub.s32 %s9, 1
      %p151 = pneg %p30
      %p152 = pneg %p27
      %p153 = scmp.lt.s32.totalorder %s14, 1
      %s154 = scalar_select %p153, %s14, 1
      %s155 = smul.addr %s154, 4
      %s156 = smul.addr %s155, 8
      %s157 = scalar_lea.vmem %s1, %s156
      %p158 = pneg %p56
      %p159 = pneg %p53
      %p160 = scmp.lt.s32.totalorder %s14, 1
      %s161 = scalar_select %p160, %s14, 1
      %s162 = scalar_lea.vmem %s2, %s161
      %p163 = pneg %p82
      %p164 = pneg %p79
      %p165 = pneg %p108
      %p166 = pneg %p105
      %p167 = scmp.lt.s32.totalorder %s14, 1
      %s168 = scalar_select %p167, %s14, 1
      %s169 = smul.addr %s168, 6
      %s170 = smul.addr %s169, 8
      %s171 = scalar_lea.vmem %s3, %s170
      %p172 = scmp.lt.s32.totalorder %s14, 1
      %s173 = scalar_select %p172, %s14, 1
      %s174 = smul.addr %s173, 4
      %s175 = smul.addr %s174, 8
      %s176 = scalar_lea.vmem %s1, %s175
      %p177 = scmp.lt.s32.totalorder %s14, 1
      %s178 = scalar_select %p177, %s14, 1
      %s179 = scalar_lea.vmem %s2, %s178
      %p180 = scmp.lt.s32.totalorder %s14, 1
      %s181 = scalar_select %p180, %s14, 1
      %s182 = smul.addr %s181, 6
      %s183 = smul.addr %s182, 8
      %s184 = scalar_lea.vmem %s3, %s183
      %v185 = vld [vmem:[%s0] sm:$0xff]
      %v186 = vld [vmem:[%s0 + $0x8] sm:$0xff]
      %v187 = vld [vmem:[%s0 + $0x10] sm:$0xff]
      %v188 = vld [vmem:[%s0 + $0x18] sm:$0xff]
      %v189 = vld [vmem:[%s0 + $0x20] sm:$0xff]
      %v190 = vld [vmem:[%s0 + $0x28] sm:$0xff]
      %v191 = vld [vmem:[%s176] sm:$0xff]
      %v192 = vld [vmem:[%s176 + $0x8] sm:$0xff]
      %v193 = vld [vmem:[%s176 + $0x10] sm:$0xff]
      %v194 = vld [vmem:[%s176 + $0x18] sm:$0xff]
      %v195 = vld [vmem:[%s179] sm:$0x1]
      %v197 = vlaneseq
      %v198 = vshrl.u32 %v197, 7
      %v199 = vsub.s32 0, %v198
      %v200 = vrot.slane %v195, %v199
      %vm202 = vcmask 261120
      %v204 = vsel %vm202, %v185, 0
      %v207 = vsel %vm202, %v186, 0
      %v210 = vsel %vm202, %v187, 0
      %v213 = vsel %vm202, %v188, 0
      %v216 = vsel %vm202, %v189, 0
      %v219 = vsel %vm202, %v190, 0
      %221 = vmatprep.subr.mxu0 0.0
      %222 = vmatpush1.msra.mxu0 %v191
      %223 = vmatprep.subr.mxu0 0.0
      %224 = vmatpush1.msra.mxu0 %v192
      %225 = vmatprep.subr.mxu0 0.0
      %226 = vmatpush1.msra.mxu0 %v193
      %227 = vmatprep.subr.mxu0 0.0
      %228 = vmatpush1.msra.mxu0 %v194
      %229 = vmatprep.subr.mxu0 0.0
      %230 = vmatpush1.msra.mxu0 0.0
      %231 = vmatprep.subr.mxu0 0.0
      %232 = vmatpush1.msra.mxu0 0.0
      %233 = vmatprep.subr.mxu0 0.0
      %234 = vmatpush1.msra.mxu0 0.0
      %235 = vmatprep.subr.mxu0 0.0
      %236 = vmatpush1.msra.mxu0 0.0
      %237 = vmatprep.subr.mxu0 0.0
      %238 = vmatpush1.msra.mxu0 0.0
      %239 = vmatprep.subr.mxu0 0.0
      %240 = vmatpush1.msra.mxu0 0.0
      %241 = vmatprep.subr.mxu0 0.0
      %242 = vmatpush1.msra.mxu0 0.0
      %243 = vmatprep.subr.mxu0 0.0
      %244 = vmatpush1.msra.mxu0 0.0
      %245 = vmatprep.subr.mxu0 0.0
      %246 = vmatpush1.msra.mxu0 0.0
      %247 = vmatprep.subr.mxu0 0.0
      %248 = vmatpush1.msra.mxu0 0.0
      %249 = vmatprep.subr.mxu0 0.0
      %250 = vmatpush1.msra.mxu0 0.0
      %251 = vmatprep.subr.mxu0 0.0
      %252 = vmatpush1.msra.mxu0 0.0
      %253 = vmatprep.subr.mxu0 0.0
      %254 = vmatpush1.msra.mxu0 0.0
      %255 = vmatprep.subr.mxu0 0.0
      %256 = vmatpush1.msra.mxu0 0.0
      %257 = vmatprep.subr.mxu0 0.0
      %258 = vmatpush1.msra.mxu0 0.0
      %259 = vmatprep.subr.mxu0 0.0
      %260 = vmatpush1.msra.mxu0 0.0
      %261 = vmatprep.subr.mxu0 0.0
      %262 = vmatpush1.msra.mxu0 0.0
      %263 = vmatprep.subr.mxu0 0.0
      %264 = vmatpush1.msra.mxu0 0.0
      %265 = vmatprep.subr.mxu0 0.0
      %266 = vmatpush1.msra.mxu0 0.0
      %267 = vmatprep.subr.mxu0 0.0
      %268 = vmatpush1.msra.mxu0 0.0
      %269 = vmatprep.subr.mxu0 0.0
      %270 = vmatpush1.msra.mxu0 0.0
      %271 = vmatprep.subr.mxu0 0.0
      %272 = vmatpush1.msra.mxu0 0.0
      %273 = vmatprep.subr.mxu0 0.0
      %274 = vmatpush1.msra.mxu0 0.0
      %275 = vmatprep.subr.mxu0 0.0
      %276 = vmatpush1.msra.mxu0 0.0
      %277 = vmatprep.subr.mxu0 0.0
      %278 = vmatpush1.msra.mxu0 0.0
      %279 = vmatprep.subr.mxu0 0.0
      %280 = vmatpush1.msra.mxu0 0.0
      %281 = vmatprep.subr.mxu0 0.0
      %282 = vmatpush1.msra.mxu0 0.0
      %283 = vmatprep.subr.mxu0 0.0
      %284 = vmatpush1.msra.mxu0 0.0
      %285 = vmatprep.mubr.f32.mxu0 0.0
      %286 = vmatmul.mubr.f32.gmra.mrb[0].mxu0 %v204
      %v287 = vpop.f32.mrb[0].mxu0
      %v288 = vadd.f32 %v200, %v287
      %v289 = vpop.f32.mrb[0].mxu0
      %290 = vmatprep.mubr.f32.mxu0 0.0
      %291 = vmatmul.mubr.f32.gmra.mrb[0].mxu0 %v207
      %v292 = vpop.f32.mrb[0].mxu0
      %v293 = vadd.f32 %v200, %v292
      %v294 = vpop.f32.mrb[0].mxu0
      %295 = vmatprep.mubr.f32.mxu0 0.0
      %296 = vmatmul.mubr.f32.gmra.mrb[0].mxu0 %v210
      %v297 = vpop.f32.mrb[0].mxu0
      %v298 = vadd.f32 %v200, %v297
      %v299 = vpop.f32.mrb[0].mxu0
      %300 = vmatprep.mubr.f32.mxu0 0.0
      %301 = vmatmul.mubr.f32.gmra.mrb[0].mxu0 %v213
      %v302 = vpop.f32.mrb[0].mxu0
      %v303 = vadd.f32 %v200, %v302
      %v304 = vpop.f32.mrb[0].mxu0
      %305 = vmatprep.mubr.f32.mxu0 0.0
      %306 = vmatmul.mubr.f32.gmra.mrb[0].mxu0 %v216
      %v307 = vpop.f32.mrb[0].mxu0
      %v308 = vadd.f32 %v200, %v307
      %v309 = vpop.f32.mrb[0].mxu0
      %310 = vmatprep.mubr.f32.mxu0 0.0
      %311 = vmatmul.mubr.f32.gmra.mrb[0].mxu0 %v219
      %v312 = vpop.f32.mrb[0].mxu0
      %v313 = vadd.f32 %v200, %v312
      %v314 = vpop.f32.mrb[0].mxu0
      %315 = vdwg.mxu0
      %vm316 = vcmask 392192
      %317 = vst.msk [vmem:[%s184] sm:$0xff] %vm316, %v288
      %318 = vst.msk [vmem:[%s184 + $0x8] sm:$0xff] %vm316, %v293
      %319 = vst.msk [vmem:[%s184 + $0x10] sm:$0xff] %vm316, %v298
      %320 = vst.msk [vmem:[%s184 + $0x18] sm:$0xff] %vm316, %v303
      %321 = vst.msk [vmem:[%s184 + $0x20] sm:$0xff] %vm316, %v308
      %322 = vst.msk [vmem:[%s184 + $0x28] sm:$0xff] %vm316, %v313
      %p323 = scmp.lt.s32.totalorder %s14, 1
      %s324 = scalar_select %p323, %s14, 1
      %s325 = smul.addr %s324, 6
      %s326 = smul.addr %s325, 8
      %s327 = scalar_lea.vmem %s3, %s326
      // Predicated region
      $region33: #{memnet_plus_forward.11} parent=31 // pred_check
        %p328 = pneg %p105
      $region34: #{memnet_plus_forward.11} parent=31 // pred_check_branch
        %330 = sbr.rel (%p328) target = $region36
      $region35: #{memnet_plus_forward.11} parent=31 // pred_region
        _
      $region36: #{memnet_plus_forward.11} parent=31 // pred_fallthru
        _
    $region32: #{memnet_plus_forward.11} parent=5 // pred_fallthru
      _
    %p331 = scmp.le.s32.totalorder 2, %s9
    // Predicated region
    $region37: #{memnet_plus_forward.11} parent=5 // pred_check
      %p332 = pneg %p331
    $region38: #{memnet_plus_forward.11} parent=5 // pred_check_branch
      %334 = sbr.rel (%p332) target = $region40
    $region39: #{memnet_plus_forward.11} parent=5 // pred_region
      %s335 = ssub.s32 %s9, 2
      // Predicated region
      $region41: #{memnet_plus_forward.11} parent=39 // pred_check
        %p336 = pneg %p111
      $region42: #{memnet_plus_forward.11} parent=39 // pred_check_branch
        %338 = sbr.rel (%p336) target = $region44
      $region43: #{memnet_plus_forward.11} parent=39 // pred_region
        %p339 = scmp.lt.s32.totalorder %s15, 1
        %s340 = scalar_select %p339, %s15, 1
        %s341 = smul.addr %s340, 6
        %s342 = smul.addr %s341, 8
        %s343 = scalar_lea.vmem %s3, %s342
      $region44: #{memnet_plus_forward.11} parent=39 // pred_fallthru
        _
    $region40: #{memnet_plus_forward.11} parent=5 // pred_fallthru
      _
  $region6: #{memnet_plus_forward.11} parent=0 // loop_footer
    %s13 = sadd.s32 1, %s9
  $region7: #{memnet_plus_forward.11} parent=0 // loop_footer_branch
    %8 = sbr.rel target = $region3
  $region8: #{memnet_plus_forward.11} parent=0 // loop_exit
    _

// kernel: memnet_plus_forward.12
$region0: #{memnet_plus_forward.12}
  #allocation0 [shape = 'u32[]', space=smem, size = 0x4, offset = 0x4, fixed_abs, tag = 'smem constant byte address 0x4 - core index']
  #allocation1 [shape = 'u32[144,128]{1,0:T(1,128)}', space=vmem, size = 0x12000, scoped, tag = 'internal scratch']
  %s0 = inlined_call_operand.vmem [shape: f32[2,8,6,48], index: 0, kind: input, shape index: {}]
  %s1 = inlined_call_operand.vmem [shape: f32[8,6,1], index: 1, kind: input, shape index: {}]
  %s2 = inlined_call_operand.vmem [shape: f32[2,16,48], index: 2, kind: input, shape index: {}]
  %s3 = inlined_call_operand.vmem [shape: f32[2,1,48], index: 3, kind: input, shape index: {}]
  %s4 = inlined_call_operand.vmem [shape: f32[2,6,16], index: 4, kind: output, shape index: {}]
  %s5 = sld [smem:[#allocation0]]
  $region56: #{memnet_plus_forward.12} parent=0
    _
  %s7 = ssub.s32 1, %s5
  %s8 = scalar_select 0, %s7, %s5
  loop: start=0, step=1, limit=4
  $region2: #{memnet_plus_forward.12} parent=0 // loop_pre_header
    _
  $region3: #{memnet_plus_forward.12} parent=0 // loop_header
    %s10 = sphi 0, %s14
    %p11 = scmp.ge.s32.totalorder %s10, 4
    %s20 = sphi 0, %s22
    %s23 = sphi 0, %s20
    %s24 = sphi 0, %s23
    %s40 = sphi 0, %s24
    %s44 = sphi 0, %s44
    %s46 = sphi 0, %s44
    %s47 = sphi 0, %s46
    %s61 = sphi 0, %s47
    %s67 = sphi 0, %s69
    %s70 = sphi 0, %s67
    %s71 = sphi 0, %s70
    %s87 = sphi 0, %s71
    %s93 = sphi 0, %s95
    %s96 = sphi 0, %s93
    %s97 = sphi 0, %s96
    %s113 = sphi 0, %s97
    %s119 = sphi 0, %s121
    %s122 = sphi 0, %s119
    %s123 = sphi 0, %s122
    %s139 = sphi 0, %s123
  $region4: #{memnet_plus_forward.12} parent=0 // loop_header_branch
    %13 = sbr.rel (%p11) target = $region8
  $region5: #{memnet_plus_forward.12} parent=0 // loop_body
    %s15 = ssub.s32 %s10, 1
    %s16 = ssub.s32 %s10, 2
    %s17 = sadd.s32 %s10, 1
    %s18 = ssub.s32 %s10, %s17
    %p19 = scmp.eq.s32.totalorder %s18, 0
    %s21 = sadd.s32 %s20, 1
    %s22 = scalar_select %p19, %s20, %s21
    %p25 = pneg %p19
    %p26 = scmp.eq.s32.totalorder %s10, 1
    %p27 = por %p25, %p26
    %p28 = scmp.ne.s32.totalorder %s20, %s23
    %p29 = scmp.eq.s32.totalorder %s10, 0
    %p30 = por %p28, %p29
    %p31 = scmp.ne.s32.totalorder %s20, %s23
    %p32 = scmp.eq.s32.totalorder %s15, 1
    %p33 = por %p31, %p32
    %p34 = scmp.ne.s32.totalorder %s23, %s24
    %p35 = scmp.eq.s32.totalorder %s15, 0
    %p36 = por %p34, %p35
    %p37 = scmp.ne.s32.totalorder %s23, %s24
    %p38 = scmp.eq.s32.totalorder %s16, 1
    %p39 = por %p37, %p38
    %p41 = scmp.ne.s32.totalorder %s24, %s40
    %p42 = scmp.eq.s32.totalorder %s16, 0
    %p43 = por %p41, %p42
    %s45 = sadd.s32 %s44, 1
    %p48 = scmp.eq.s32.totalorder %s10, 1
    %p49 = scmp.ne.s32.totalorder %s44, %s46
    %p50 = scmp.eq.s32.totalorder %s10, 0
    %p51 = por %p49, %p50
    %p52 = scmp.ne.s32.totalorder %s44, %s46
    %p53 = scmp.eq.s32.totalorder %s15, 1
    %p54 = por %p52, %p53
    %p55 = scmp.ne.s32.totalorder %s46, %s47
    %p56 = scmp.eq.s32.totalorder %s15, 0
    %p57 = por %p55, %p56
    %p58 = scmp.ne.s32.totalorder %s46, %s47
    %p59 = scmp.eq.s32.totalorder %s16, 1
    %p60 = por %p58, %p59
    %p62 = scmp.ne.s32.totalorder %s47, %s61
    %p63 = scmp.eq.s32.totalorder %s16, 0
    %p64 = por %p62, %p63
    %s65 = ssub.s32 %s10, %s17
    %p66 = scmp.eq.s32.totalorder %s65, 0
    %s68 = sadd.s32 %s67, 1
    %s69 = scalar_select %p66, %s67, %s68
    %p72 = pneg %p66
    %p73 = scmp.eq.s32.totalorder %s10, 1
    %p74 = por %p72, %p73
    %p75 = scmp.ne.s32.totalorder %s67, %s70
    %p76 = scmp.eq.s32.totalorder %s10, 0
    %p77 = por %p75, %p76
    %p78 = scmp.ne.s32.totalorder %s67, %s70
    %p79 = scmp.eq.s32.totalorder %s15, 1
    %p80 = por %p78, %p79
    %p81 = scmp.ne.s32.totalorder %s70, %s71
    %p82 = scmp.eq.s32.totalorder %s15, 0
    %p83 = por %p81, %p82
    %p84 = scmp.ne.s32.totalorder %s70, %s71
    %p85 = scmp.eq.s32.totalorder %s16, 1
    %p86 = por %p84, %p85
    %p88 = scmp.ne.s32.totalorder %s71, %s87
    %p89 = scmp.eq.s32.totalorder %s16, 0
    %p90 = por %p88, %p89
    %s91 = ssub.s32 %s10, %s17
    %p92 = scmp.eq.s32.totalorder %s91, 0
    %s94 = sadd.s32 %s93, 1
    %s95 = scalar_select %p92, %s93, %s94
    %p98 = pneg %p92
    %p99 = scmp.eq.s32.totalorder %s10, 1
    %p100 = por %p98, %p99
    %p101 = scmp.ne.s32.totalorder %s93, %s96
    %p102 = scmp.eq.s32.totalorder %s10, 0
    %p103 = por %p101, %p102
    %p104 = scmp.ne.s32.totalorder %s93, %s96
    %p105 = scmp.eq.s32.totalorder %s15, 1
    %p106 = por %p104, %p105
    %p107 = scmp.ne.s32.totalorder %s96, %s97
    %p108 = scmp.eq.s32.totalorder %s15, 0
    %p109 = por %p107, %p108
    %p110 = scmp.ne.s32.totalorder %s96, %s97
    %p111 = scmp.eq.s32.totalorder %s16, 1
    %p112 = por %p110, %p111
    %p114 = scmp.ne.s32.totalorder %s97, %s113
    %p115 = scmp.eq.s32.totalorder %s16, 0
    %p116 = por %p114, %p115
    %s117 = ssub.s32 %s10, %s17
    %p118 = scmp.eq.s32.totalorder %s117, 0
    %s120 = sadd.s32 %s119, 1
    %s121 = scalar_select %p118, %s119, %s120
    %p124 = pneg %p118
    %p125 = scmp.eq.s32.totalorder %s10, 1
    %p126 = por %p124, %p125
    %p127 = scmp.ne.s32.totalorder %s119, %s122
    %p128 = scmp.eq.s32.totalorder %s10, 0
    %p129 = por %p127, %p128
    %p130 = scmp.ne.s32.totalorder %s119, %s122
    %p131 = scmp.eq.s32.totalorder %s15, 1
    %p132 = por %p130, %p131
    %p133 = scmp.ne.s32.totalorder %s122, %s123
    %p134 = scmp.eq.s32.totalorder %s15, 0
    %p135 = por %p133, %p134
    %p136 = scmp.ne.s32.totalorder %s122, %s123
    %p137 = scmp.eq.s32.totalorder %s16, 1
    %p138 = por %p136, %p137
    %p140 = scmp.ne.s32.totalorder %s123, %s139
    %p141 = scmp.eq.s32.totalorder %s16, 0
    %p142 = por %p140, %p141
    %p143 = scmp.le.s32.totalorder 1, %s10
    %p144 = scmp.lt.s32.totalorder %s10, 3
    %p145 = pnand %p143, %p144
    %p146 = pneg %p145
    // Predicated region
    $region9: #{memnet_plus_forward.12} parent=5 // pred_check
      _
    $region10: #{memnet_plus_forward.12} parent=5 // pred_check_branch
      %148 = sbr.rel (%p145) target = $region12
    $region11: #{memnet_plus_forward.12} parent=5 // pred_region
      %s149 = ssub.s32 %s10, 1
      // Predicated region
      $region13: #{memnet_plus_forward.12} parent=11 // pred_check
        %p150 = pneg %p57
      $region14: #{memnet_plus_forward.12} parent=11 // pred_check_branch
        %152 = sbr.rel (%p150) target = $region16
      $region15: #{memnet_plus_forward.12} parent=11 // pred_region
        _
      $region16: #{memnet_plus_forward.12} parent=11 // pred_fallthru
        _
    $region12: #{memnet_plus_forward.12} parent=5 // pred_fallthru
      _
    %p153 = scmp.lt.s32.totalorder %s10, 2
    // Predicated region
    $region17: #{memnet_plus_forward.12} parent=5 // pred_check
      %p154 = pneg %p153
    $region18: #{memnet_plus_forward.12} parent=5 // pred_check_branch
      %156 = sbr.rel (%p154) target = $region20
    $region19: #{memnet_plus_forward.12} parent=5 // pred_region
      // Predicated region
      $region21: #{memnet_plus_forward.12} parent=19 // pred_check
        %p157 = pneg %p30
      $region22: #{memnet_plus_forward.12} parent=19 // pred_check_branch
        %159 = sbr.rel (%p157) target = $region24
      $region23: #{memnet_plus_forward.12} parent=19 // pred_region
        %p160 = scmp.lt.s32.totalorder %s10, 1
        %s161 = scalar_select %p160, %s10, 1
        %s162 = smul.addr %s161, 8
        %s163 = smul.addr %s162, 8
        %s164 = scalar_lea.vmem %s0, %s163
      $region24: #{memnet_plus_forward.12} parent=19 // pred_fallthru
        _
      // Predicated region
      $region25: #{memnet_plus_forward.12} parent=19 // pred_check
        %p165 = pneg %p77
      $region26: #{memnet_plus_forward.12} parent=19 // pred_check_branch
        %167 = sbr.rel (%p165) target = $region28
      $region27: #{memnet_plus_forward.12} parent=19 // pred_region
        %p168 = scmp.lt.s32.totalorder %s10, 1
        %s169 = scalar_select %p168, %s10, 1
        %s170 = smul.addr %s169, 2
        %s171 = smul.addr %s170, 8
        %s172 = scalar_lea.vmem %s2, %s171
      $region28: #{memnet_plus_forward.12} parent=19 // pred_fallthru
        _
      // Predicated region
      $region29: #{memnet_plus_forward.12} parent=19 // pred_check
        %p173 = pneg %p103
      $region30: #{memnet_plus_forward.12} parent=19 // pred_check_branch
        %175 = sbr.rel (%p173) target = $region32
      $region31: #{memnet_plus_forward.12} parent=19 // pred_region
        %p176 = scmp.lt.s32.totalorder %s10, 1
        %s177 = scalar_select %p176, %s10, 1
        %s178 = scalar_lea.vmem %s3, %s177
      $region32: #{memnet_plus_forward.12} parent=19 // pred_fallthru
        _
    $region20: #{memnet_plus_forward.12} parent=5 // pred_fallthru
      _
    %p179 = scmp.le.s32.totalorder 1, %s10
    %p180 = scmp.lt.s32.totalorder %s10, 3
    %p181 = pnand %p179, %p180
    %p182 = pneg %p181
    // Predicated region
    $region33: #{memnet_plus_forward.12} parent=5 // pred_check
      _
    $region34: #{memnet_plus_forward.12} parent=5 // pred_check_branch
      %184 = sbr.rel (%p181) target = $region36
    $region35: #{memnet_plus_forward.12} parent=5 // pred_region
      %s185 = ssub.s32 %s10, 1
      %p186 = scmp.lt.s32.totalorder %s15, 1
      %s187 = scalar_select %p186, %s15, 1
      %s188 = smul.addr %s187, 8
      %s189 = smul.addr %s188, 8
      %s190 = scalar_lea.vmem %s0, %s189
      %p191 = pneg %p36
      %p192 = pneg %p33
      %p193 = pneg %p57
      %p194 = pneg %p54
      %p195 = scmp.lt.s32.totalorder %s15, 1
      %s196 = scalar_select %p195, %s15, 1
      %s197 = smul.addr %s196, 2
      %s198 = smul.addr %s197, 8
      %s199 = scalar_lea.vmem %s2, %s198
      %p200 = pneg %p83
      %p201 = pneg %p80
      %p202 = scmp.lt.s32.totalorder %s15, 1
      %s203 = scalar_select %p202, %s15, 1
      %s204 = scalar_lea.vmem %s3, %s203
      %p205 = pneg %p109
      %p206 = pneg %p106
      %p207 = pneg %p135
      %p208 = pneg %p132
      %p209 = scmp.lt.s32.totalorder %s15, 1
      %s210 = scalar_select %p209, %s15, 1
      %s211 = smul.addr %s210, 8
      %s212 = scalar_lea.vmem %s4, %s211
      %p213 = scmp.lt.s32.totalorder %s15, 1
      %s214 = scalar_select %p213, %s15, 1
      %s215 = smul.addr %s214, 8
      %s216 = smul.addr %s215, 8
      %s217 = scalar_lea.vmem %s0, %s216
      %p218 = scmp.lt.s32.totalorder %s15, 1
      %s219 = scalar_select %p218, %s15, 1
      %s220 = smul.addr %s219, 2
      %s221 = smul.addr %s220, 8
      %s222 = scalar_lea.vmem %s2, %s221
      %p223 = scmp.lt.s32.totalorder %s15, 1
      %s224 = scalar_select %p223, %s15, 1
      %s225 = scalar_lea.vmem %s3, %s224
      %p226 = scmp.lt.s32.totalorder %s15, 1
      %s227 = scalar_select %p226, %s15, 1
      %s228 = smul.addr %s227, 8
      %s229 = scalar_lea.vmem %s4, %s228
      loop: start=0, step=1, limit=8
      $region37: #{memnet_plus_forward.12} parent=35 // loop_pre_header
        _
      $region38: #{memnet_plus_forward.12} parent=35 // loop_header
        %s231 = sphi 0, %s235
        %p232 = scmp.ge.s32.totalorder %s231, 8
        %v236 = vphi 0.0, %v370
      $region39: #{memnet_plus_forward.12} parent=35 // loop_header_branch
        %234 = sbr.rel (%p232) target = $region43
      $region40: #{memnet_plus_forward.12} parent=35 // loop_body
        %s237 = smul.u32 %s231, 2
        %s238 = ssub.s32 7, %s237
        %s239 = smul.u32 %s15, %s238
        %s240 = sadd.s32 %s231, %s239
        %s241 = smul.u32 %s240, 8
        %s242 = scalar_lea.vmem %s217, %s241
        %v243 = vld [vmem:[%s242] sm:$0x3f]
        %v244 = vld [vmem:[%s222] sm:$0xff]
        %v245 = vld [vmem:[%s222 + $0x8] sm:$0xff]
        %v246 = vld [vmem:[%s225] sm:$0x1]
        %v248 = vlaneseq
        %v249 = vshrl.u32 %v248, 7
        %v250 = vsub.s32 0, %v249
        %v251 = vrot.slane %v246, %v250
        %254 = vrot.lane.b32.xlu0 %v236, 112
        %v255 = vpop.permute.xlu0 %254
        %vm256 = vcmask 130048
        %v257 = vsel %vm256, %v255, 0
        %259 = vmatprep.subr.mxu0 0.0
        %260 = vmatpush1.msra.mxu0 %v244
        %261 = vmatprep.subr.mxu0 0.0
        %262 = vmatpush1.msra.mxu0 %v245
        %263 = vmatprep.subr.mxu0 0.0
        %264 = vmatpush1.msra.mxu0 0.0
        %265 = vmatprep.subr.mxu0 0.0
        %266 = vmatpush1.msra.mxu0 0.0
        %267 = vmatprep.subr.mxu0 0.0
        %268 = vmatpush1.msra.mxu0 0.0
        %269 = vmatprep.subr.mxu0 0.0
        %270 = vmatpush1.msra.mxu0 0.0
        %271 = vmatprep.subr.mxu0 0.0
        %272 = vmatpush1.msra.mxu0 0.0
        %273 = vmatprep.subr.mxu0 0.0
        %274 = vmatpush1.msra.mxu0 0.0
        %275 = vmatprep.subr.mxu0 0.0
        %276 = vmatpush1.msra.mxu0 0.0
        %277 = vmatprep.subr.mxu0 0.0
        %278 = vmatpush1.msra.mxu0 0.0
        %279 = vmatprep.subr.mxu0 0.0
        %280 = vmatpush1.msra.mxu0 0.0
        %281 = vmatprep.subr.mxu0 0.0
        %282 = vmatpush1.msra.mxu0 0.0
        %283 = vmatprep.subr.mxu0 0.0
        %284 = vmatpush1.msra.mxu0 0.0
        %285 = vmatprep.subr.mxu0 0.0
        %286 = vmatpush1.msra.mxu0 0.0
        %287 = vmatprep.subr.mxu0 0.0
        %288 = vmatpush1.msra.mxu0 0.0
        %289 = vmatprep.subr.mxu0 0.0
        %290 = vmatpush1.msra.mxu0 0.0
        %291 = vmatprep.subr.mxu0 0.0
        %292 = vmatpush1.msra.mxu0 0.0
        %293 = vmatprep.subr.mxu0 0.0
        %294 = vmatpush1.msra.mxu0 0.0
        %295 = vmatprep.subr.mxu0 0.0
        %296 = vmatpush1.msra.mxu0 0.0
        %297 = vmatprep.subr.mxu0 0.0
        %298 = vmatpush1.msra.mxu0 0.0
        %299 = vmatprep.subr.mxu0 0.0
        %300 = vmatpush1.msra.mxu0 0.0
        %301 = vmatprep.subr.mxu0 0.0
        %302 = vmatpush1.msra.mxu0 0.0
        %303 = vmatprep.subr.mxu0 0.0
        %304 = vmatpush1.msra.mxu0 0.0
        %305 = vmatprep.subr.mxu0 0.0
        %306 = vmatpush1.msra.mxu0 0.0
        %307 = vmatprep.subr.mxu0 0.0
        %308 = vmatpush1.msra.mxu0 0.0
        %309 = vmatprep.subr.mxu0 0.0
        %310 = vmatpush1.msra.mxu0 0.0
        %311 = vmatprep.subr.mxu0 0.0
        %312 = vmatpush1.msra.mxu0 0.0
        %313 = vmatprep.subr.mxu0 0.0
        %314 = vmatpush1.msra.mxu0 0.0
        %315 = vmatprep.subr.mxu0 0.0
        %316 = vmatpush1.msra.mxu0 0.0
        %317 = vmatprep.subr.mxu0 0.0
        %318 = vmatpush1.msra.mxu0 0.0
        %319 = vmatprep.subr.mxu0 0.0
        %320 = vmatpush1.msra.mxu0 0.0
        %321 = vmatprep.subr.mxu0 0.0
        %322 = vmatpush1.msra.mxu0 0.0
        %323 = vmatprep.mubr.f32.mxu0 0.0
        %324 = vmatmul.mubr.f32.gmra.mrb[0].mxu0 %v257
        %v325 = vpop.f32.mrb[0].mxu0
        %v326 = vadd.f32 %v251, %v325
        %v327 = vpop.f32.mrb[0].mxu0
        %328 = vdwg.mxu0
        %v329 = vadd.f32 %v243, %v326
        %v330 = vxor.u32 %v329, 2147483648
        %v331 = vmul.f32 %v330, 1.442695
        %v332 = vpow.pop %v331
        %v333 = vadd.f32 %v332, 1.0
        %v334 = vrcp.pop %v333
        %v335 = vmul.f32 1.0, %v334
        %337 = vrot.lane.b32.xlu0 %v326, 96
        %v338 = vpop.permute.xlu0 %337
        %v340 = vmul.f32 %v335, %v338
        %342 = vrot.lane.b32.xlu0 %v340, 32
        %v343 = vpop.permute.xlu0 %342
        %v345 = vadd.f32 %v243, %v343
        %v346 = vtanh.pop %v345
        %v347 = vsub.f32 1.0, %v335
        %349 = vrot.lane.b32.xlu0 %v346, 112
        %v350 = vpop.permute.xlu0 %349
        %v352 = vmul.f32 %v347, %v350
        %v353 = vmul.f32 %v335, %v236
        %v354 = vadd.f32 %v352, %v353
        %s355 = scalar_lea.vmem %s1, %s241
        %v356 = vld [vmem:[%s355] sm:$0x3f]
        %358 = vset.pattern.permute.xlu0 0
        %359 = vperm.xlu0 %358, %v356
        %v360 = vpop.permute.xlu0 %359
        %v362 = vmul.f32 %v360, %v354
        %v363 = vsub.f32 1.0, %v356
        %365 = vset.pattern.permute.xlu0 0
        %366 = vperm.xlu0 %365, %v363
        %v367 = vpop.permute.xlu0 %366
        %v369 = vmul.f32 %v367, %v236
        %v370 = vadd.f32 %v362, %v369
      $region41: #{memnet_plus_forward.12} parent=35 // loop_footer
        %s235 = sadd.s32 1, %s231
      $region42: #{memnet_plus_forward.12} parent=35 // loop_footer_branch
        %230 = sbr.rel target = $region38
      $region43: #{memnet_plus_forward.12} parent=35 // loop_exit
        _
      %372 = vrot.lane.b32.xlu0 %v236, 112
      %v373 = vpop.permute.xlu0 %372
      %vm375 = vcmask 128000
      %376 = vst.msk [vmem:[%s229] sm:$0x3f] %vm375, %v373
      %p377 = scmp.lt.s32.totalorder %s15, 1
      %s378 = scalar_select %p377, %s15, 1
      %s379 = smul.addr %s378, 8
      %s380 = scalar_lea.vmem %s4, %s379
      // Predicated region
      $region44: #{memnet_plus_forward.12} parent=35 // pred_check
        %p381 = pneg %p132
      $region45: #{memnet_plus_forward.12} parent=35 // pred_check_branch
        %383 = sbr.rel (%p381) target = $region47
      $region46: #{memnet_plus_forward.12} parent=35 // pred_region
        _
      $region47: #{memnet_plus_forward.12} parent=35 // pred_fallthru
        _
    $region36: #{memnet_plus_forward.12} parent=5 // pred_fallthru
      _
    %p384 = scmp.le.s32.totalorder 2, %s10
    // Predicated region
    $region48: #{memnet_plus_forward.12} parent=5 // pred_check
      %p385 = pneg %p384
    $region49: #{memnet_plus_forward.12} parent=5 // pred_check_branch
      %387 = sbr.rel (%p385) target = $region51
    $region50: #{memnet_plus_forward.12} parent=5 // pred_region
      %s388 = ssub.s32 %s10, 2
      // Predicated region
      $region52: #{memnet_plus_forward.12} parent=50 // pred_check
        %p389 = pneg %p138
      $region53: #{memnet_plus_forward.12} parent=50 // pred_check_branch
        %391 = sbr.rel (%p389) target = $region55
      $region54: #{memnet_plus_forward.12} parent=50 // pred_region
        %p392 = scmp.lt.s32.totalorder %s16, 1
        %s393 = scalar_select %p392, %s16, 1
        %s394 = smul.addr %s393, 8
        %s395 = scalar_lea.vmem %s4, %s394
      $region55: #{memnet_plus_forward.12} parent=50 // pred_fallthru
        _
    $region51: #{memnet_plus_forward.12} parent=5 // pred_fallthru
      _
  $region6: #{memnet_plus_forward.12} parent=0 // loop_footer
    %s14 = sadd.s32 1, %s10
  $region7: #{memnet_plus_forward.12} parent=0 // loop_footer_branch
    %9 = sbr.rel target = $region3
  $region8: #{memnet_plus_forward.12} parent=0 // loop_exit
    _

// kernel: memnet_plus_forward.16
$region0: #{memnet_plus_forward.16}
  #allocation0 [shape = 'u32[]', space=smem, size = 0x4, offset = 0x4, fixed_abs, tag = 'smem constant byte address 0x4 - core index']
  #allocation1 [shape = 'u32[144,128]{1,0:T(1,128)}', space=vmem, size = 0x12000, scoped, tag = 'internal scratch']
  %s0 = inlined_call_operand.vmem [shape: f32[16,32], index: 0, kind: input, shape index: {}]
  %s1 = inlined_call_operand.vmem [shape: f32[2,32,96], index: 1, kind: input, shape index: {}]
  %s2 = inlined_call_operand.vmem [shape: f32[2,1,96], index: 2, kind: input, shape index: {}]
  %s3 = inlined_call_operand.vmem [shape: f32[2,16,96], index: 3, kind: output, shape index: {}]
  %s4 = sld [smem:[#allocation0]]
  $region45: #{memnet_plus_forward.16} parent=0
    _
  %s6 = ssub.s32 1, %s4
  %s7 = scalar_select 0, %s6, %s4
  loop: start=0, step=1, limit=4
  $region2: #{memnet_plus_forward.16} parent=0 // loop_pre_header
    _
  $region3: #{memnet_plus_forward.16} parent=0 // loop_header
    %s9 = sphi 0, %s13
    %p10 = scmp.ge.s32.totalorder %s9, 4
    %s17 = sphi 0, %s17
    %s19 = sphi 0, %s17
    %s20 = sphi 0, %s19
    %s34 = sphi 0, %s20
    %s40 = sphi 0, %s42
    %s43 = sphi 0, %s40
    %s44 = sphi 0, %s43
    %s60 = sphi 0, %s44
    %s66 = sphi 0, %s68
    %s69 = sphi 0, %s66
    %s70 = sphi 0, %s69
    %s86 = sphi 0, %s70
    %s92 = sphi 0, %s94
    %s95 = sphi 0, %s92
    %s96 = sphi 0, %s95
    %s112 = sphi 0, %s96
  $region4: #{memnet_plus_forward.16} parent=0 // loop_header_branch
    %12 = sbr.rel (%p10) target = $region8
  $region5: #{memnet_plus_forward.16} parent=0 // loop_body
    %s14 = ssub.s32 %s9, 1
    %s15 = ssub.s32 %s9, 2
    %s16 = sadd.s32 %s9, 1
    %s18 = sadd.s32 %s17, 1
    %p21 = scmp.eq.s32.totalorder %s9, 1
    %p22 = scmp.ne.s32.totalorder %s17, %s19
    %p23 = scmp.eq.s32.totalorder %s9, 0
    %p24 = por %p22, %p23
    %p25 = scmp.ne.s32.totalorder %s17, %s19
    %p26 = scmp.eq.s32.totalorder %s14, 1
    %p27 = por %p25, %p26
    %p28 = scmp.ne.s32.totalorder %s19, %s20
    %p29 = scmp.eq.s32.totalorder %s14, 0
    %p30 = por %p28, %p29
    %p31 = scmp.ne.s32.totalorder %s19, %s20
    %p32 = scmp.eq.s32.totalorder %s15, 1
    %p33 = por %p31, %p32
    %p35 = scmp.ne.s32.totalorder %s20, %s34
    %p36 = scmp.eq.s32.totalorder %s15, 0
    %p37 = por %p35, %p36
    %s38 = ssub.s32 %s9, %s16
    %p39 = scmp.eq.s32.totalorder %s38, 0
    %s41 = sadd.s32 %s40, 1
    %s42 = scalar_select %p39, %s40, %s41
    %p45 = pneg %p39
    %p46 = scmp.eq.s32.totalorder %s9, 1
    %p47 = por %p45, %p46
    %p48 = scmp.ne.s32.totalorder %s40, %s43
    %p49 = scmp.eq.s32.totalorder %s9, 0
    %p50 = por %p48, %p49
    %p51 = scmp.ne.s32.totalorder %s40, %s43
    %p52 = scmp.eq.s32.totalorder %s14, 1
    %p53 = por %p51, %p52
    %p54 = scmp.ne.s32.totalorder %s43, %s44
    %p55 = scmp.eq.s32.totalorder %s14, 0
    %p56 = por %p54, %p55
    %p57 = scmp.ne.s32.totalorder %s43, %s44
    %p58 = scmp.eq.s32.totalorder %s15, 1
    %p59 = por %p57, %p58
    %p61 = scmp.ne.s32.totalorder %s44, %s60
    %p62 = scmp.eq.s32.totalorder %s15, 0
    %p63 = por %p61, %p62
    %s64 = ssub.s32 %s9, %s16
    %p65 = scmp.eq.s32.totalorder %s64, 0
    %s67 = sadd.s32 %s66, 1
    %s68 = scalar_select %p65, %s66, %s67
    %p71 = pneg %p65
    %p72 = scmp.eq.s32.totalorder %s9, 1
    %p73 = por %p71, %p72
    %p74 = scmp.ne.s32.totalorder %s66, %s69
    %p75 = scmp.eq.s32.totalorder %s9, 0
    %p76 = por %p74, %p75
    %p77 = scmp.ne.s32.totalorder %s66, %s69
    %p78 = scmp.eq.s32.totalorder %s14, 1
    %p79 = por %p77, %p78
    %p80 = scmp.ne.s32.totalorder %s69, %s70
    %p81 = scmp.eq.s32.totalorder %s14, 0
    %p82 = por %p80, %p81
    %p83 = scmp.ne.s32.totalorder %s69, %s70
    %p84 = scmp.eq.s32.totalorder %s15, 1
    %p85 = por %p83, %p84
    %p87 = scmp.ne.s32.totalorder %s70, %s86
    %p88 = scmp.eq.s32.totalorder %s15, 0
    %p89 = por %p87, %p88
    %s90 = ssub.s32 %s9, %s16
    %p91 = scmp.eq.s32.totalorder %s90, 0
    %s93 = sadd.s32 %s92, 1
    %s94 = scalar_select %p91, %s92, %s93
    %p97 = pneg %p91
    %p98 = scmp.eq.s32.totalorder %s9, 1
    %p99 = por %p97, %p98
    %p100 = scmp.ne.s32.totalorder %s92, %s95
    %p101 = scmp.eq.s32.totalorder %s9, 0
    %p102 = por %p100, %p101
    %p103 = scmp.ne.s32.totalorder %s92, %s95
    %p104 = scmp.eq.s32.totalorder %s14, 1
    %p105 = por %p103, %p104
    %p106 = scmp.ne.s32.totalorder %s95, %s96
    %p107 = scmp.eq.s32.totalorder %s14, 0
    %p108 = por %p106, %p107
    %p109 = scmp.ne.s32.totalorder %s95, %s96
    %p110 = scmp.eq.s32.totalorder %s15, 1
    %p111 = por %p109, %p110
    %p113 = scmp.ne.s32.totalorder %s96, %s112
    %p114 = scmp.eq.s32.totalorder %s15, 0
    %p115 = por %p113, %p114
    %p116 = scmp.le.s32.totalorder 1, %s9
    %p117 = scmp.lt.s32.totalorder %s9, 3
    %p118 = pnand %p116, %p117
    %p119 = pneg %p118
    // Predicated region
    $region9: #{memnet_plus_forward.16} parent=5 // pred_check
      _
    $region10: #{memnet_plus_forward.16} parent=5 // pred_check_branch
      %121 = sbr.rel (%p118) target = $region12
    $region11: #{memnet_plus_forward.16} parent=5 // pred_region
      %s122 = ssub.s32 %s9, 1
      // Predicated region
      $region13: #{memnet_plus_forward.16} parent=11 // pred_check
        %p123 = pneg %p30
      $region14: #{memnet_plus_forward.16} parent=11 // pred_check_branch
        %125 = sbr.rel (%p123) target = $region16
      $region15: #{memnet_plus_forward.16} parent=11 // pred_region
        _
      $region16: #{memnet_plus_forward.16} parent=11 // pred_fallthru
        _
    $region12: #{memnet_plus_forward.16} parent=5 // pred_fallthru
      _
    %p126 = scmp.lt.s32.totalorder %s9, 2
    // Predicated region
    $region17: #{memnet_plus_forward.16} parent=5 // pred_check
      %p127 = pneg %p126
    $region18: #{memnet_plus_forward.16} parent=5 // pred_check_branch
      %129 = sbr.rel (%p127) target = $region20
    $region19: #{memnet_plus_forward.16} parent=5 // pred_region
      // Predicated region
      $region21: #{memnet_plus_forward.16} parent=19 // pred_check
        %p130 = pneg %p50
      $region22: #{memnet_plus_forward.16} parent=19 // pred_check_branch
        %132 = sbr.rel (%p130) target = $region24
      $region23: #{memnet_plus_forward.16} parent=19 // pred_region
        %p133 = scmp.lt.s32.totalorder %s9, 1
        %s134 = scalar_select %p133, %s9, 1
        %s135 = smul.addr %s134, 4
        %s136 = smul.addr %s135, 8
        %s137 = scalar_lea.vmem %s1, %s136
      $region24: #{memnet_plus_forward.16} parent=19 // pred_fallthru
        _
      // Predicated region
      $region25: #{memnet_plus_forward.16} parent=19 // pred_check
        %p138 = pneg %p76
      $region26: #{memnet_plus_forward.16} parent=19 // pred_check_branch
        %140 = sbr.rel (%p138) target = $region28
      $region27: #{memnet_plus_forward.16} parent=19 // pred_region
        %p141 = scmp.lt.s32.totalorder %s9, 1
        %s142 = scalar_select %p141, %s9, 1
        %s143 = scalar_lea.vmem %s2, %s142
      $region28: #{memnet_plus_forward.16} parent=19 // pred_fallthru
        _
    $region20: #{memnet_plus_forward.16} parent=5 // pred_fallthru
      _
    %p144 = scmp.le.s32.totalorder 1, %s9
    %p145 = scmp.lt.s32.totalorder %s9, 3
    %p146 = pnand %p144, %p145
    %p147 = pneg %p146
    // Predicated region
    $region29: #{memnet_plus_forward.16} parent=5 // pred_check
      _
    $region30: #{memnet_plus_forward.16} parent=5 // pred_check_branch
      %149 = sbr.rel (%p146) target = $region32
    $region31: #{memnet_plus_forward.16} parent=5 // pred_region
      %s150 = ssub.s32 %s9, 1
      %p151 = pneg %p30
      %p152 = pneg %p27
      %p153 = scmp.lt.s32.totalorder %s14, 1
      %s154 = scalar_select %p153, %s14, 1
      %s155 = smul.addr %s154, 4
      %s156 = smul.addr %s155, 8
      %s157 = scalar_lea.vmem %s1, %s156
      %p158 = pneg %p56
      %p159 = pneg %p53
      %p160 = scmp.lt.s32.totalorder %s14, 1
      %s161 = scalar_select %p160, %s14, 1
      %s162 = scalar_lea.vmem %s2, %s161
      %p163 = pneg %p82
      %p164 = pneg %p79
      %p165 = pneg %p108
      %p166 = pneg %p105
      %p167 = scmp.lt.s32.totalorder %s14, 1
      %s168 = scalar_select %p167, %s14, 1
      %s169 = smul.addr %s168, 2
      %s170 = smul.addr %s169, 8
      %s171 = scalar_lea.vmem %s3, %s170
      %p172 = scmp.lt.s32.totalorder %s14, 1
      %s173 = scalar_select %p172, %s14, 1
      %s174 = smul.addr %s173, 4
      %s175 = smul.addr %s174, 8
      %s176 = scalar_lea.vmem %s1, %s175
      %p177 = scmp.lt.s32.totalorder %s14, 1
      %s178 = scalar_select %p177, %s14, 1
      %s179 = scalar_lea.vmem %s2, %s178
      %p180 = scmp.lt.s32.totalorder %s14, 1
      %s181 = scalar_select %p180, %s14, 1
      %s182 = smul.addr %s181, 2
      %s183 = smul.addr %s182, 8
      %s184 = scalar_lea.vmem %s3, %s183
      %v185 = vld [vmem:[%s0] sm:$0xff]
      %v186 = vld [vmem:[%s0 + $0x8] sm:$0xff]
      %v187 = vld [vmem:[%s176] sm:$0xff]
      %v188 = vld [vmem:[%s176 + $0x8] sm:$0xff]
      %v189 = vld [vmem:[%s176 + $0x10] sm:$0xff]
      %v190 = vld [vmem:[%s176 + $0x18] sm:$0xff]
      %v191 = vld [vmem:[%s179] sm:$0x1]
      %v193 = vlaneseq
      %v194 = vshrl.u32 %v193, 7
      %v195 = vsub.s32 0, %v194
      %v196 = vrot.slane %v191, %v195
      %vm198 = vcmask 261120
      %v200 = vsel %vm198, %v185, 0
      %v203 = vsel %vm198, %v186, 0
      %205 = vmatprep.subr.mxu0 0.0
      %206 = vmatpush1.msra.mxu0 %v187
      %207 = vmatprep.subr.mxu0 0.0
      %208 = vmatpush1.msra.mxu0 %v188
      %209 = vmatprep.subr.mxu0 0.0
      %210 = vmatpush1.msra.mxu0 %v189
      %211 = vmatprep.subr.mxu0 0.0
      %212 = vmatpush1.msra.mxu0 %v190
      %213 = vmatprep.subr.mxu0 0.0
      %214 = vmatpush1.msra.mxu0 0.0
      %215 = vmatprep.subr.mxu0 0.0
      %216 = vmatpush1.msra.mxu0 0.0
      %217 = vmatprep.subr.mxu0 0.0
      %218 = vmatpush1.msra.mxu0 0.0
      %219 = vmatprep.subr.mxu0 0.0
      %220 = vmatpush1.msra.mxu0 0.0
      %221 = vmatprep.subr.mxu0 0.0
      %222 = vmatpush1.msra.mxu0 0.0
      %223 = vmatprep.subr.mxu0 0.0
      %224 = vmatpush1.msra.mxu0 0.0
      %225 = vmatprep.subr.mxu0 0.0
      %226 = vmatpush1.msra.mxu0 0.0
      %227 = vmatprep.subr.mxu0 0.0
      %228 = vmatpush1.msra.mxu0 0.0
      %229 = vmatprep.subr.mxu0 0.0
      %230 = vmatpush1.msra.mxu0 0.0
      %231 = vmatprep.subr.mxu0 0.0
      %232 = vmatpush1.msra.mxu0 0.0
      %233 = vmatprep.subr.mxu0 0.0
      %234 = vmatpush1.msra.mxu0 0.0
      %235 = vmatprep.subr.mxu0 0.0
      %236 = vmatpush1.msra.mxu0 0.0
      %237 = vmatprep.subr.mxu0 0.0
      %238 = vmatpush1.msra.mxu0 0.0
      %239 = vmatprep.subr.mxu0 0.0
      %240 = vmatpush1.msra.mxu0 0.0
      %241 = vmatprep.subr.mxu0 0.0
      %242 = vmatpush1.msra.mxu0 0.0
      %243 = vmatprep.subr.mxu0 0.0
      %244 = vmatpush1.msra.mxu0 0.0
      %245 = vmatprep.subr.mxu0 0.0
      %246 = vmatpush1.msra.mxu0 0.0
      %247 = vmatprep.subr.mxu0 0.0
      %248 = vmatpush1.msra.mxu0 0.0
      %249 = vmatprep.subr.mxu0 0.0
      %250 = vmatpush1.msra.mxu0 0.0
      %251 = vmatprep.subr.mxu0 0.0
      %252 = vmatpush1.msra.mxu0 0.0
      %253 = vmatprep.subr.mxu0 0.0
      %254 = vmatpush1.msra.mxu0 0.0
      %255 = vmatprep.subr.mxu0 0.0
      %256 = vmatpush1.msra.mxu0 0.0
      %257 = vmatprep.subr.mxu0 0.0
      %258 = vmatpush1.msra.mxu0 0.0
      %259 = vmatprep.subr.mxu0 0.0
      %260 = vmatpush1.msra.mxu0 0.0
      %261 = vmatprep.subr.mxu0 0.0
      %262 = vmatpush1.msra.mxu0 0.0
      %263 = vmatprep.subr.mxu0 0.0
      %264 = vmatpush1.msra.mxu0 0.0
      %265 = vmatprep.subr.mxu0 0.0
      %266 = vmatpush1.msra.mxu0 0.0
      %267 = vmatprep.subr.mxu0 0.0
      %268 = vmatpush1.msra.mxu0 0.0
      %269 = vmatprep.mubr.f32.mxu0 0.0
      %270 = vmatmul.mubr.f32.gmra.mrb[0].mxu0 %v200
      %v271 = vpop.f32.mrb[0].mxu0
      %v272 = vadd.f32 %v196, %v271
      %v273 = vpop.f32.mrb[0].mxu0
      %274 = vmatprep.mubr.f32.mxu0 0.0
      %275 = vmatmul.mubr.f32.gmra.mrb[0].mxu0 %v203
      %v276 = vpop.f32.mrb[0].mxu0
      %v277 = vadd.f32 %v196, %v276
      %v278 = vpop.f32.mrb[0].mxu0
      %279 = vdwg.mxu0
      %vm280 = vcmask 785408
      %281 = vst.msk [vmem:[%s184] sm:$0xff] %vm280, %v272
      %282 = vst.msk [vmem:[%s184 + $0x8] sm:$0xff] %vm280, %v277
      %p283 = scmp.lt.s32.totalorder %s14, 1
      %s284 = scalar_select %p283, %s14, 1
      %s285 = smul.addr %s284, 2
      %s286 = smul.addr %s285, 8
      %s287 = scalar_lea.vmem %s3, %s286
      // Predicated region
      $region33: #{memnet_plus_forward.16} parent=31 // pred_check
        %p288 = pneg %p105
      $region34: #{memnet_plus_forward.16} parent=31 // pred_check_branch
        %290 = sbr.rel (%p288) target = $region36
      $region35: #{memnet_plus_forward.16} parent=31 // pred_region
        _
      $region36: #{memnet_plus_forward.16} parent=31 // pred_fallthru
        _
    $region32: #{memnet_plus_forward.16} parent=5 // pred_fallthru
      _
    %p291 = scmp.le.s32.totalorder 2, %s9
    // Predicated region
    $region37: #{memnet_plus_forward.16} parent=5 // pred_check
      %p292 = pneg %p291
    $region38: #{memnet_plus_forward.16} parent=5 // pred_check_branch
      %294 = sbr.rel (%p292) target = $region40
    $region39: #{memnet_plus_forward.16} parent=5 // pred_region
      %s295 = ssub.s32 %s9, 2
      // Predicated region
      $region41: #{memnet_plus_forward.16} parent=39 // pred_check
        %p296 = pneg %p111
      $region42: #{memnet_plus_forward.16} parent=39 // pred_check_branch
        %298 = sbr.rel (%p296) target = $region44
      $region43: #{memnet_plus_forward.16} parent=39 // pred_region
        %p299 = scmp.lt.s32.totalorder %s15, 1
        %s300 = scalar_select %p299, %s15, 1
        %s301 = smul.addr %s300, 2
        %s302 = smul.addr %s301, 8
        %s303 = scalar_lea.vmem %s3, %s302
      $region44: #{memnet_plus_forward.16} parent=39 // pred_fallthru
        _
    $region40: #{memnet_plus_forward.16} parent=5 // pred_fallthru
      _
  $region6: #{memnet_plus_forward.16} parent=0 // loop_footer
    %s13 = sadd.s32 1, %s9
  $region7: #{memnet_plus_forward.16} parent=0 // loop_footer_branch
    %8 = sbr.rel target = $region3
  $region8: #{memnet_plus_forward.16} parent=0 // loop_exit
    _

// kernel: memnet_plus_forward.15
$region0: #{memnet_plus_forward.15}
  #allocation0 [shape = 'u32[]', space=smem, size = 0x4, offset = 0x4, fixed_abs, tag = 'smem constant byte address 0x4 - core index']
  #allocation1 [shape = 'u32[144,128]{1,0:T(1,128)}', space=vmem, size = 0x12000, scoped, tag = 'internal scratch']
  %s0 = inlined_call_operand.vmem [shape: f32[2,32], index: 0, kind: input, shape index: {}]
  %s1 = inlined_call_operand.vmem [shape: f32[2,3,32], index: 1, kind: input, shape index: {}]
  %s2 = inlined_call_operand.vmem [shape: f32[2,32,64], index: 2, kind: input, shape index: {}]
  %s3 = inlined_call_operand.vmem [shape: f32[1,64], index: 3, kind: input, shape index: {}]
  %s4 = inlined_call_operand.vmem [shape: f32[2,64,128], index: 4, kind: input, shape index: {}]
  %s5 = inlined_call_operand.vmem [shape: f32[2,2,128], index: 5, kind: output, shape index: {}]
  %s6 = sld [smem:[#allocation0]]
  $region30: #{memnet_plus_forward.15} parent=0
    _
  %s8 = ssub.s32 1, %s6
  %s9 = scalar_select 0, %s8, %s6
  // Predicated region
  $region2: #{memnet_plus_forward.15} parent=0 // pred_check
    _
  $region3: #{memnet_plus_forward.15} parent=0 // pred_check_branch
    %11 = sbr.rel (0) target = $region5
  $region4: #{memnet_plus_forward.15} parent=0 // pred_region
    _
  $region5: #{memnet_plus_forward.15} parent=0 // pred_fallthru
    _
  // Predicated region
  $region6: #{memnet_plus_forward.15} parent=0 // pred_check
    _
  $region7: #{memnet_plus_forward.15} parent=0 // pred_check_branch
    %13 = sbr.rel (0) target = $region9
  $region8: #{memnet_plus_forward.15} parent=0 // pred_region
    _
  $region9: #{memnet_plus_forward.15} parent=0 // pred_fallthru
    _
  // Predicated region
  $region10: #{memnet_plus_forward.15} parent=0 // pred_check
    _
  $region11: #{memnet_plus_forward.15} parent=0 // pred_check_branch
    %15 = sbr.rel (0) target = $region13
  $region12: #{memnet_plus_forward.15} parent=0 // pred_region
    _
  $region13: #{memnet_plus_forward.15} parent=0 // pred_fallthru
    _
  // Predicated region
  $region14: #{memnet_plus_forward.15} parent=0 // pred_check
    _
  $region15: #{memnet_plus_forward.15} parent=0 // pred_check_branch
    %17 = sbr.rel (0) target = $region17
  $region16: #{memnet_plus_forward.15} parent=0 // pred_region
    _
  $region17: #{memnet_plus_forward.15} parent=0 // pred_fallthru
    _
  // Predicated region
  $region18: #{memnet_plus_forward.15} parent=0 // pred_check
    _
  $region19: #{memnet_plus_forward.15} parent=0 // pred_check_branch
    %19 = sbr.rel (0) target = $region21
  $region20: #{memnet_plus_forward.15} parent=0 // pred_region
    _
  $region21: #{memnet_plus_forward.15} parent=0 // pred_fallthru
    _
  %v20 = vld [vmem:[%s0] sm:$0x3]
  %v21 = vld [vmem:[%s1] sm:$0x7]
  %v22 = vld [vmem:[%s1 + $0x4] sm:$0x7]
  %v25 = vunpack.c.l.s4 1966171168
  %v26 = vunpack.c.0.s8 %v25
  %v27 = vlaneseq
  %v28 = vshrl.u32 %v27, 7
  %v29 = vsub.s32 %v26, %v28
  %v30 = vrot.slane %v20, %v29
  %v31 = vcombine.high %v30, %v30
  %v33 = vunpack.c.l.s4 1966171168
  %v34 = vunpack.c.0.s8 %v33
  %v35 = vlaneseq
  %v36 = vshrl.u32 %v35, 7
  %v37 = vsub.s32 %v34, %v36
  %v38 = vrot.slane %v30, %v37
  %v40 = vunpack.c.l.s4 1966171168
  %v41 = vunpack.c.0.s8 %v40
  %v42 = vlaneseq
  %v43 = vshrl.u32 %v42, 7
  %v44 = vsub.s32 %v41, %v43
  %v45 = vrot.slane %v31, %v44
  %v46 = vlaneseq
  %v47 = vshrl.u32 %v46, 7
  %v48 = vsub.s32 0, %v47
  %v49 = vrot.slane %v38, %v48
  %v50 = vlaneseq
  %v51 = vshrl.u32 %v50, 7
  %v52 = vsub.s32 0, %v51
  %v53 = vrot.slane %v45, %v52
  %v56 = vmul.f32 %v49, %v21
  %v57 = vmul.f32 %v53, %v22
  %vm58 = vcmask 256000
  %v59 = vsel %vm58, %v56, 0.0
  %60 = vadd.xlane.f32.xlu0 %v59
  %v61 = vpop.xlane.xlu0 %60
  %v62 = vsel %vm58, %v57, 0.0
  %63 = vadd.xlane.f32.xlu0 %v62
  %v64 = vpop.xlane.xlu0 %63
  %v67 = vlaneseq
  %v68 = vand.u32 %v67, 127
  %v69 = vlaneseq
  %v70 = vshrl.u32 %v69, 7
  %v71 = vsub.s32 %v68, %v70
  %v72 = vrot.slane %v61, %v71
  %v73 = vlaneseq
  %v74 = vshrl.u32 %v73, 7
  %v75 = vsub.s32 %v68, %v74
  %v76 = vrot.slane %v64, %v75
  %vm77 = vcmask 1041409
  %v78 = vsel %vm77, %v76, %v72
  %vm80 = vcmask 17408
  %v81 = vsel %vm80, %v78, -inf
  %82 = vmax.xlane.f32.xlu0 %v81
  %v83 = vpop.xlane.xlu0 %82
  %v85 = vlaneseq
  %v86 = vshrl.u32 %v85, 7
  %v87 = vsub.s32 0, %v86
  %v88 = vrot.slane %v83, %v87
  %v89 = vlaneseq
  %v90 = vshrl.u32 %v89, 7
  %v91 = vsub.s32 1, %v90
  %v92 = vrot.slane %v83, %v91
  %v95 = vsub.f32 %v61, %v88
  %v96 = vsub.f32 %v64, %v92
  %v97 = vmul.f32 %v95, 1.442695
  %v98 = vpow.pop %v97
  %v99 = vmul.f32 %v96, 1.442695
  %v100 = vpow.pop %v99
  %103 = vset.pattern.permute.xlu0 0
  %104 = vperm.xlu0 %103, %v98
  %v105 = vpop.permute.xlu0 %104
  %106 = vset.pattern.permute.xlu0 0
  %107 = vperm.xlu0 %106, %v100
  %v108 = vpop.permute.xlu0 %107
  %v109 = vlaneseq
  %v110 = vshrl.u32 %v109, 7
  %v111 = vsub.s32 %v68, %v110
  %v112 = vrot.slane %v105, %v111
  %v113 = vlaneseq
  %v114 = vshrl.u32 %v113, 7
  %v115 = vsub.s32 %v68, %v114
  %v116 = vrot.slane %v108, %v115
  %v117 = vsel %vm77, %v116, %v112
  %v119 = vsel %vm80, %v117, 0.0
  %120 = vadd.xlane.f32.xlu0 %v119
  %v121 = vpop.xlane.xlu0 %120
  %v123 = vlaneseq
  %v124 = vshrl.u32 %v123, 7
  %v125 = vsub.s32 0, %v124
  %v126 = vrot.slane %v121, %v125
  %v127 = vlaneseq
  %v128 = vshrl.u32 %v127, 7
  %v129 = vsub.s32 1, %v128
  %v130 = vrot.slane %v121, %v129
  %v133 = vrcp.pop %v126
  %v134 = vmul.f32 %v98, %v133
  %v135 = vrcp.pop %v130
  %v136 = vmul.f32 %v100, %v135
  %138 = vset.pattern.permute.xlu0 0
  %139 = vperm.xlu0 %138, %v134
  %v140 = vpop.permute.xlu0 %139
  %143 = vset.pattern.permute.xlu0 0
  %144 = vperm.xlu0 %143, %v136
  %v145 = vpop.permute.xlu0 %144
  %v147 = vmul.f32 %v140, %v21
  %v148 = vmul.f32 %v145, %v22
  %v149 = vsel %vm58, %v147, 0.0
  %v150 = vrot.slane %v149, 4
  %v151 = vadd.f32 %v149, %v150
  %v152 = vrot.slane %v151, 2
  %v153 = vadd.f32 %v151, %v152
  %v154 = vrot.slane %v153, 1
  %v155 = vadd.f32 %v153, %v154
  %v156 = vsel %vm58, %v148, 0.0
  %v157 = vrot.slane %v156, 4
  %v158 = vadd.f32 %v156, %v157
  %v159 = vrot.slane %v158, 2
  %v160 = vadd.f32 %v158, %v159
  %v161 = vrot.slane %v160, 1
  %v162 = vadd.f32 %v160, %v161
  %v163 = vld [vmem:[%s2] sm:$0xff]
  %v164 = vld [vmem:[%s2 + $0x8] sm:$0xff]
  %v165 = vld [vmem:[%s2 + $0x10] sm:$0xff]
  %v166 = vld [vmem:[%s2 + $0x18] sm:$0xff]
  %s167 = scalar_lea.vmem %s2, 32
  %v168 = vld [vmem:[%s167] sm:$0xff]
  %v169 = vld [vmem:[%s167 + $0x8] sm:$0xff]
  %v170 = vld [vmem:[%s167 + $0x10] sm:$0xff]
  %v171 = vld [vmem:[%s167 + $0x18] sm:$0xff]
  %vm172 = vcmask 261120
  %v173 = vsel %vm172, %v20, 0
  %175 = vmatprep.subr.mxu0 0.0
  %176 = vmatpush1.msra.mxu0 %v168
  %177 = vmatprep.subr.mxu0 0.0
  %178 = vmatpush1.msra.mxu0 %v169
  %179 = vmatprep.subr.mxu0 0.0
  %180 = vmatpush1.msra.mxu0 %v170
  %181 = vmatprep.subr.mxu0 0.0
  %182 = vmatpush1.msra.mxu0 %v171
  %183 = vmatprep.subr.mxu0 0.0
  %184 = vmatpush1.msra.mxu0 0.0
  %185 = vmatprep.subr.mxu0 0.0
  %186 = vmatpush1.msra.mxu0 0.0
  %187 = vmatprep.subr.mxu0 0.0
  %188 = vmatpush1.msra.mxu0 0.0
  %189 = vmatprep.subr.mxu0 0.0
  %190 = vmatpush1.msra.mxu0 0.0
  %191 = vmatprep.subr.mxu0 0.0
  %192 = vmatpush1.msra.mxu0 0.0
  %193 = vmatprep.subr.mxu0 0.0
  %194 = vmatpush1.msra.mxu0 0.0
  %195 = vmatprep.subr.mxu0 0.0
  %196 = vmatpush1.msra.mxu0 0.0
  %197 = vmatprep.subr.mxu0 0.0
  %198 = vmatpush1.msra.mxu0 0.0
  %199 = vmatprep.subr.mxu0 0.0
  %200 = vmatpush1.msra.mxu0 0.0
  %201 = vmatprep.subr.mxu0 0.0
  %202 = vmatpush1.msra.mxu0 0.0
  %203 = vmatprep.subr.mxu0 0.0
  %204 = vmatpush1.msra.mxu0 0.0
  %205 = vmatprep.subr.mxu0 0.0
  %206 = vmatpush1.msra.mxu0 0.0
  %207 = vmatprep.subr.mxu0 0.0
  %208 = vmatpush1.msra.mxu0 0.0
  %209 = vmatprep.subr.mxu0 0.0
  %210 = vmatpush1.msra.mxu0 0.0
  %211 = vmatprep.subr.mxu0 0.0
  %212 = vmatpush1.msra.mxu0 0.0
  %213 = vmatprep.subr.mxu0 0.0
  %214 = vmatpush1.msra.mxu0 0.0
  %215 = vmatprep.subr.mxu0 0.0
  %216 = vmatpush1.msra.mxu0 0.0
  %217 = vmatprep.subr.mxu0 0.0
  %218 = vmatpush1.msra.mxu0 0.0
  %219 = vmatprep.subr.mxu0 0.0
  %220 = vmatpush1.msra.mxu0 0.0
  %221 = vmatprep.subr.mxu0 0.0
  %222 = vmatpush1.msra.mxu0 0.0
  %223 = vmatprep.subr.mxu0 0.0
  %224 = vmatpush1.msra.mxu0 0.0
  %225 = vmatprep.subr.mxu0 0.0
  %226 = vmatpush1.msra.mxu0 0.0
  %227 = vmatprep.subr.mxu0 0.0
  %228 = vmatpush1.msra.mxu0 0.0
  %229 = vmatprep.subr.mxu0 0.0
  %230 = vmatpush1.msra.mxu0 0.0
  %231 = vmatprep.subr.mxu0 0.0
  %232 = vmatpush1.msra.mxu0 0.0
  %233 = vmatprep.subr.mxu0 0.0
  %234 = vmatpush1.msra.mxu0 0.0
  %235 = vmatprep.subr.mxu0 0.0
  %236 = vmatpush1.msra.mxu0 0.0
  %237 = vmatprep.subr.mxu0 0.0
  %238 = vmatpush1.msra.mxu0 0.0
  %239 = vmatprep.mubr.f32.mxu0 0.0
  %240 = vmatmul.mubr.f32.gmra.mrb[0].mxu0 %v173
  %v241 = vpop.f32.mrb[0].mxu0
  %v242 = vadd.f32 0.0, %v241
  %v243 = vpop.f32.mrb[0].mxu0
  %244 = vdwg.mxu0
  %v247 = vsel %vm77, %v162, %v155
  %v248 = vsel %vm172, %v247, 0
  %250 = vmatprep.subr.mxu0 0.0
  %251 = vmatpush1.msra.mxu0 %v163
  %252 = vmatprep.subr.mxu0 0.0
  %253 = vmatpush1.msra.mxu0 %v164
  %254 = vmatprep.subr.mxu0 0.0
  %255 = vmatpush1.msra.mxu0 %v165
  %256 = vmatprep.subr.mxu0 0.0
  %257 = vmatpush1.msra.mxu0 %v166
  %258 = vmatprep.subr.mxu0 0.0
  %259 = vmatpush1.msra.mxu0 0.0
  %260 = vmatprep.subr.mxu0 0.0
  %261 = vmatpush1.msra.mxu0 0.0
  %262 = vmatprep.subr.mxu0 0.0
  %263 = vmatpush1.msra.mxu0 0.0
  %264 = vmatprep.subr.mxu0 0.0
  %265 = vmatpush1.msra.mxu0 0.0
  %266 = vmatprep.subr.mxu0 0.0
  %267 = vmatpush1.msra.mxu0 0.0
  %268 = vmatprep.subr.mxu0 0.0
  %269 = vmatpush1.msra.mxu0 0.0
  %270 = vmatprep.subr.mxu0 0.0
  %271 = vmatpush1.msra.mxu0 0.0
  %272 = vmatprep.subr.mxu0 0.0
  %273 = vmatpush1.msra.mxu0 0.0
  %274 = vmatprep.subr.mxu0 0.0
  %275 = vmatpush1.msra.mxu0 0.0
  %276 = vmatprep.subr.mxu0 0.0
  %277 = vmatpush1.msra.mxu0 0.0
  %278 = vmatprep.subr.mxu0 0.0
  %279 = vmatpush1.msra.mxu0 0.0
  %280 = vmatprep.subr.mxu0 0.0
  %281 = vmatpush1.msra.mxu0 0.0
  %282 = vmatprep.subr.mxu0 0.0
  %283 = vmatpush1.msra.mxu0 0.0
  %284 = vmatprep.subr.mxu0 0.0
  %285 = vmatpush1.msra.mxu0 0.0
  %286 = vmatprep.subr.mxu0 0.0
  %287 = vmatpush1.msra.mxu0 0.0
  %288 = vmatprep.subr.mxu0 0.0
  %289 = vmatpush1.msra.mxu0 0.0
  %290 = vmatprep.subr.mxu0 0.0
  %291 = vmatpush1.msra.mxu0 0.0
  %292 = vmatprep.subr.mxu0 0.0
  %293 = vmatpush1.msra.mxu0 0.0
  %294 = vmatprep.subr.mxu0 0.0
  %295 = vmatpush1.msra.mxu0 0.0
  %296 = vmatprep.subr.mxu0 0.0
  %297 = vmatpush1.msra.mxu0 0.0
  %298 = vmatprep.subr.mxu0 0.0
  %299 = vmatpush1.msra.mxu0 0.0
  %300 = vmatprep.subr.mxu0 0.0
  %301 = vmatpush1.msra.mxu0 0.0
  %302 = vmatprep.subr.mxu0 0.0
  %303 = vmatpush1.msra.mxu0 0.0
  %304 = vmatprep.subr.mxu0 0.0
  %305 = vmatpush1.msra.mxu0 0.0
  %306 = vmatprep.subr.mxu0 0.0
  %307 = vmatpush1.msra.mxu0 0.0
  %308 = vmatprep.subr.mxu0 0.0
  %309 = vmatpush1.msra.mxu0 0.0
  %310 = vmatprep.subr.mxu0 0.0
  %311 = vmatpush1.msra.mxu0 0.0
  %312 = vmatprep.subr.mxu0 0.0
  %313 = vmatpush1.msra.mxu0 0.0
  %314 = vmatprep.mubr.f32.mxu0 0.0
  %315 = vmatmul.mubr.f32.gmra.mrb[0].mxu0 %v248
  %v316 = vpop.f32.mrb[0].mxu0
  %v317 = vadd.f32 %v242, %v316
  %v318 = vpop.f32.mrb[0].mxu0
  %319 = vdwg.mxu0
  %v320 = vld [vmem:[%s3] sm:$0x1]
  %v322 = vlaneseq
  %v323 = vshrl.u32 %v322, 7
  %v324 = vsub.s32 0, %v323
  %v325 = vrot.slane %v320, %v324
  %v327 = vadd.f32 %v317, %v325
  %v328 = vld [vmem:[%s4] sm:$0xff]
  %v329 = vld [vmem:[%s4 + $0x8] sm:$0xff]
  %v330 = vld [vmem:[%s4 + $0x10] sm:$0xff]
  %v331 = vld [vmem:[%s4 + $0x18] sm:$0xff]
  %v332 = vld [vmem:[%s4 + $0x20] sm:$0xff]
  %v333 = vld [vmem:[%s4 + $0x28] sm:$0xff]
  %v334 = vld [vmem:[%s4 + $0x30] sm:$0xff]
  %v335 = vld [vmem:[%s4 + $0x38] sm:$0xff]
  %vm336 = vcmask 523264
  %v338 = vsel %vm336, %v327, 0
  %340 = vmatprep.subr.mxu0 0.0
  %341 = vmatpush1.msra.mxu0 %v328
  %342 = vmatprep.subr.mxu0 0.0
  %343 = vmatpush1.msra.mxu0 %v329
  %344 = vmatprep.subr.mxu0 0.0
  %345 = vmatpush1.msra.mxu0 %v330
  %346 = vmatprep.subr.mxu0 0.0
  %347 = vmatpush1.msra.mxu0 %v331
  %348 = vmatprep.subr.mxu0 0.0
  %349 = vmatpush1.msra.mxu0 %v332
  %350 = vmatprep.subr.mxu0 0.0
  %351 = vmatpush1.msra.mxu0 %v333
  %352 = vmatprep.subr.mxu0 0.0
  %353 = vmatpush1.msra.mxu0 %v334
  %354 = vmatprep.subr.mxu0 0.0
  %355 = vmatpush1.msra.mxu0 %v335
  %356 = vmatprep.subr.mxu0 0.0
  %357 = vmatpush1.msra.mxu0 0.0
  %358 = vmatprep.subr.mxu0 0.0
  %359 = vmatpush1.msra.mxu0 0.0
  %360 = vmatprep.subr.mxu0 0.0
  %361 = vmatpush1.msra.mxu0 0.0
  %362 = vmatprep.subr.mxu0 0.0
  %363 = vmatpush1.msra.mxu0 0.0
  %364 = vmatprep.subr.mxu0 0.0
  %365 = vmatpush1.msra.mxu0 0.0
  %366 = vmatprep.subr.mxu0 0.0
  %367 = vmatpush1.msra.mxu0 0.0
  %368 = vmatprep.subr.mxu0 0.0
  %369 = vmatpush1.msra.mxu0 0.0
  %370 = vmatprep.subr.mxu0 0.0
  %371 = vmatpush1.msra.mxu0 0.0
  %372 = vmatprep.subr.mxu0 0.0
  %373 = vmatpush1.msra.mxu0 0.0
  %374 = vmatprep.subr.mxu0 0.0
  %375 = vmatpush1.msra.mxu0 0.0
  %376 = vmatprep.subr.mxu0 0.0
  %377 = vmatpush1.msra.mxu0 0.0
  %378 = vmatprep.subr.mxu0 0.0
  %379 = vmatpush1.msra.mxu0 0.0
  %380 = vmatprep.subr.mxu0 0.0
  %381 = vmatpush1.msra.mxu0 0.0
  %382 = vmatprep.subr.mxu0 0.0
  %383 = vmatpush1.msra.mxu0 0.0
  %384 = vmatprep.subr.mxu0 0.0
  %385 = vmatpush1.msra.mxu0 0.0
  %386 = vmatprep.subr.mxu0 0.0
  %387 = vmatpush1.msra.mxu0 0.0
  %388 = vmatprep.subr.mxu0 0.0
  %389 = vmatpush1.msra.mxu0 0.0
  %390 = vmatprep.subr.mxu0 0.0
  %391 = vmatpush1.msra.mxu0 0.0
  %392 = vmatprep.subr.mxu0 0.0
  %393 = vmatpush1.msra.mxu0 0.0
  %394 = vmatprep.subr.mxu0 0.0
  %395 = vmatpush1.msra.mxu0 0.0
  %396 = vmatprep.subr.mxu0 0.0
  %397 = vmatpush1.msra.mxu0 0.0
  %398 = vmatprep.subr.mxu0 0.0
  %399 = vmatpush1.msra.mxu0 0.0
  %400 = vmatprep.subr.mxu0 0.0
  %401 = vmatpush1.msra.mxu0 0.0
  %402 = vmatprep.subr.mxu0 0.0
  %403 = vmatpush1.msra.mxu0 0.0
  %404 = vmatprep.mubr.f32.mxu0 0.0
  %405 = vmatmul.mubr.f32.gmra.mrb[0].mxu0 %v338
  %v406 = vpop.f32.mrb[0].mxu0
  %v407 = vadd.f32 0.0, %v406
  %v408 = vpop.f32.mrb[0].mxu0
  %409 = vdwg.mxu0
  %410 = vst [vmem:[%s5] sm:$0x3] %v407
  %s411 = scalar_lea.vmem %s4, 64
  %v412 = vld [vmem:[%s411] sm:$0xff]
  %v413 = vld [vmem:[%s411 + $0x8] sm:$0xff]
  %v414 = vld [vmem:[%s411 + $0x10] sm:$0xff]
  %v415 = vld [vmem:[%s411 + $0x18] sm:$0xff]
  %v416 = vld [vmem:[%s411 + $0x20] sm:$0xff]
  %v417 = vld [vmem:[%s411 + $0x28] sm:$0xff]
  %v418 = vld [vmem:[%s411 + $0x30] sm:$0xff]
  %v419 = vld [vmem:[%s411 + $0x38] sm:$0xff]
  %420 = vmatprep.subr.mxu0 0.0
  %421 = vmatpush1.msra.mxu0 %v412
  %422 = vmatprep.subr.mxu0 0.0
  %423 = vmatpush1.msra.mxu0 %v413
  %424 = vmatprep.subr.mxu0 0.0
  %425 = vmatpush1.msra.mxu0 %v414
  %426 = vmatprep.subr.mxu0 0.0
  %427 = vmatpush1.msra.mxu0 %v415
  %428 = vmatprep.subr.mxu0 0.0
  %429 = vmatpush1.msra.mxu0 %v416
  %430 = vmatprep.subr.mxu0 0.0
  %431 = vmatpush1.msra.mxu0 %v417
  %432 = vmatprep.subr.mxu0 0.0
  %433 = vmatpush1.msra.mxu0 %v418
  %434 = vmatprep.subr.mxu0 0.0
  %435 = vmatpush1.msra.mxu0 %v419
  %436 = vmatprep.subr.mxu0 0.0
  %437 = vmatpush1.msra.mxu0 0.0
  %438 = vmatprep.subr.mxu0 0.0
  %439 = vmatpush1.msra.mxu0 0.0
  %440 = vmatprep.subr.mxu0 0.0
  %441 = vmatpush1.msra.mxu0 0.0
  %442 = vmatprep.subr.mxu0 0.0
  %443 = vmatpush1.msra.mxu0 0.0
  %444 = vmatprep.subr.mxu0 0.0
  %445 = vmatpush1.msra.mxu0 0.0
  %446 = vmatprep.subr.mxu0 0.0
  %447 = vmatpush1.msra.mxu0 0.0
  %448 = vmatprep.subr.mxu0 0.0
  %449 = vmatpush1.msra.mxu0 0.0
  %450 = vmatprep.subr.mxu0 0.0
  %451 = vmatpush1.msra.mxu0 0.0
  %452 = vmatprep.subr.mxu0 0.0
  %453 = vmatpush1.msra.mxu0 0.0
  %454 = vmatprep.subr.mxu0 0.0
  %455 = vmatpush1.msra.mxu0 0.0
  %456 = vmatprep.subr.mxu0 0.0
  %457 = vmatpush1.msra.mxu0 0.0
  %458 = vmatprep.subr.mxu0 0.0
  %459 = vmatpush1.msra.mxu0 0.0
  %460 = vmatprep.subr.mxu0 0.0
  %461 = vmatpush1.msra.mxu0 0.0
  %462 = vmatprep.subr.mxu0 0.0
  %463 = vmatpush1.msra.mxu0 0.0
  %464 = vmatprep.subr.mxu0 0.0
  %465 = vmatpush1.msra.mxu0 0.0
  %466 = vmatprep.subr.mxu0 0.0
  %467 = vmatpush1.msra.mxu0 0.0
  %468 = vmatprep.subr.mxu0 0.0
  %469 = vmatpush1.msra.mxu0 0.0
  %470 = vmatprep.subr.mxu0 0.0
  %471 = vmatpush1.msra.mxu0 0.0
  %472 = vmatprep.subr.mxu0 0.0
  %473 = vmatpush1.msra.mxu0 0.0
  %474 = vmatprep.subr.mxu0 0.0
  %475 = vmatpush1.msra.mxu0 0.0
  %476 = vmatprep.subr.mxu0 0.0
  %477 = vmatpush1.msra.mxu0 0.0
  %478 = vmatprep.subr.mxu0 0.0
  %479 = vmatpush1.msra.mxu0 0.0
  %480 = vmatprep.subr.mxu0 0.0
  %481 = vmatpush1.msra.mxu0 0.0
  %482 = vmatprep.subr.mxu0 0.0
  %483 = vmatpush1.msra.mxu0 0.0
  %484 = vmatprep.mubr.f32.mxu0 0.0
  %485 = vmatmul.mubr.f32.gmra.mrb[0].mxu0 %v338
  %v486 = vpop.f32.mrb[0].mxu0
  %v487 = vadd.f32 0.0, %v486
  %v488 = vpop.f32.mrb[0].mxu0
  %489 = vdwg.mxu0
  %s490 = scalar_lea.vmem %s5, 2
  %491 = vst [vmem:[%s490] sm:$0x3] %v487
  // Predicated region
  $region22: #{memnet_plus_forward.15} parent=0 // pred_check
    _
  $region23: #{memnet_plus_forward.15} parent=0 // pred_check_branch
    %493 = sbr.rel (0) target = $region25
  $region24: #{memnet_plus_forward.15} parent=0 // pred_region
    _
  $region25: #{memnet_plus_forward.15} parent=0 // pred_fallthru
    _
  // Predicated region
  $region26: #{memnet_plus_forward.15} parent=0 // pred_check
    _
  $region27: #{memnet_plus_forward.15} parent=0 // pred_check_branch
    %495 = sbr.rel (0) target = $region29
  $region28: #{memnet_plus_forward.15} parent=0 // pred_region
    _
  $region29: #{memnet_plus_forward.15} parent=0 // pred_fallthru
    _

// kernel: memnet_plus_forward.17
$region0: #{memnet_plus_forward.17}
  #allocation0 [shape = 'u32[]', space=smem, size = 0x4, offset = 0x4, fixed_abs, tag = 'smem constant byte address 0x4 - core index']
  #allocation1 [shape = 'u32[144,128]{1,0:T(1,128)}', space=vmem, size = 0x12000, scoped, tag = 'internal scratch']
  %s0 = inlined_call_operand.vmem [shape: f32[2,8,2,96], index: 0, kind: input, shape index: {}]
  %s1 = inlined_call_operand.vmem [shape: f32[2,32,96], index: 1, kind: input, shape index: {}]
  %s2 = inlined_call_operand.vmem [shape: f32[2,1,96], index: 2, kind: input, shape index: {}]
  %s3 = inlined_call_operand.vmem [shape: f32[2,8,2,32], index: 3, kind: output, shape index: {}]
  %s4 = sld [smem:[#allocation0]]
  $region52: #{memnet_plus_forward.17} parent=0
    _
  %s6 = ssub.s32 1, %s4
  %s7 = scalar_select 0, %s6, %s4
  loop: start=0, step=1, limit=4
  $region2: #{memnet_plus_forward.17} parent=0 // loop_pre_header
    _
  $region3: #{memnet_plus_forward.17} parent=0 // loop_header
    %s9 = sphi 0, %s13
    %p10 = scmp.ge.s32.totalorder %s9, 4
    %s19 = sphi 0, %s21
    %s22 = sphi 0, %s19
    %s23 = sphi 0, %s22
    %s39 = sphi 0, %s23
    %s45 = sphi 0, %s47
    %s48 = sphi 0, %s45
    %s49 = sphi 0, %s48
    %s65 = sphi 0, %s49
    %s71 = sphi 0, %s73
    %s74 = sphi 0, %s71
    %s75 = sphi 0, %s74
    %s91 = sphi 0, %s75
    %s97 = sphi 0, %s99
    %s100 = sphi 0, %s97
    %s101 = sphi 0, %s100
    %s117 = sphi 0, %s101
  $region4: #{memnet_plus_forward.17} parent=0 // loop_header_branch
    %12 = sbr.rel (%p10) target = $region8
  $region5: #{memnet_plus_forward.17} parent=0 // loop_body
    %s14 = ssub.s32 %s9, 1
    %s15 = ssub.s32 %s9, 2
    %s16 = sadd.s32 %s9, 1
    %s17 = ssub.s32 %s9, %s16
    %p18 = scmp.eq.s32.totalorder %s17, 0
    %s20 = sadd.s32 %s19, 1
    %s21 = scalar_select %p18, %s19, %s20
    %p24 = pneg %p18
    %p25 = scmp.eq.s32.totalorder %s9, 1
    %p26 = por %p24, %p25
    %p27 = scmp.ne.s32.totalorder %s19, %s22
    %p28 = scmp.eq.s32.totalorder %s9, 0
    %p29 = por %p27, %p28
    %p30 = scmp.ne.s32.totalorder %s19, %s22
    %p31 = scmp.eq.s32.totalorder %s14, 1
    %p32 = por %p30, %p31
    %p33 = scmp.ne.s32.totalorder %s22, %s23
    %p34 = scmp.eq.s32.totalorder %s14, 0
    %p35 = por %p33, %p34
    %p36 = scmp.ne.s32.totalorder %s22, %s23
    %p37 = scmp.eq.s32.totalorder %s15, 1
    %p38 = por %p36, %p37
    %p40 = scmp.ne.s32.totalorder %s23, %s39
    %p41 = scmp.eq.s32.totalorder %s15, 0
    %p42 = por %p40, %p41
    %s43 = ssub.s32 %s9, %s16
    %p44 = scmp.eq.s32.totalorder %s43, 0
    %s46 = sadd.s32 %s45, 1
    %s47 = scalar_select %p44, %s45, %s46
    %p50 = pneg %p44
    %p51 = scmp.eq.s32.totalorder %s9, 1
    %p52 = por %p50, %p51
    %p53 = scmp.ne.s32.totalorder %s45, %s48
    %p54 = scmp.eq.s32.totalorder %s9, 0
    %p55 = por %p53, %p54
    %p56 = scmp.ne.s32.totalorder %s45, %s48
    %p57 = scmp.eq.s32.totalorder %s14, 1
    %p58 = por %p56, %p57
    %p59 = scmp.ne.s32.totalorder %s48, %s49
    %p60 = scmp.eq.s32.totalorder %s14, 0
    %p61 = por %p59, %p60
    %p62 = scmp.ne.s32.totalorder %s48, %s49
    %p63 = scmp.eq.s32.totalorder %s15, 1
    %p64 = por %p62, %p63
    %p66 = scmp.ne.s32.totalorder %s49, %s65
    %p67 = scmp.eq.s32.totalorder %s15, 0
    %p68 = por %p66, %p67
    %s69 = ssub.s32 %s9, %s16
    %p70 = scmp.eq.s32.totalorder %s69, 0
    %s72 = sadd.s32 %s71, 1
    %s73 = scalar_select %p70, %s71, %s72
    %p76 = pneg %p70
    %p77 = scmp.eq.s32.totalorder %s9, 1
    %p78 = por %p76, %p77
    %p79 = scmp.ne.s32.totalorder %s71, %s74
    %p80 = scmp.eq.s32.totalorder %s9, 0
    %p81 = por %p79, %p80
    %p82 = scmp.ne.s32.totalorder %s71, %s74
    %p83 = scmp.eq.s32.totalorder %s14, 1
    %p84 = por %p82, %p83
    %p85 = scmp.ne.s32.totalorder %s74, %s75
    %p86 = scmp.eq.s32.totalorder %s14, 0
    %p87 = por %p85, %p86
    %p88 = scmp.ne.s32.totalorder %s74, %s75
    %p89 = scmp.eq.s32.totalorder %s15, 1
    %p90 = por %p88, %p89
    %p92 = scmp.ne.s32.totalorder %s75, %s91
    %p93 = scmp.eq.s32.totalorder %s15, 0
    %p94 = por %p92, %p93
    %s95 = ssub.s32 %s9, %s16
    %p96 = scmp.eq.s32.totalorder %s95, 0
    %s98 = sadd.s32 %s97, 1
    %s99 = scalar_select %p96, %s97, %s98
    %p102 = pneg %p96
    %p103 = scmp.eq.s32.totalorder %s9, 1
    %p104 = por %p102, %p103
    %p105 = scmp.ne.s32.totalorder %s97, %s100
    %p106 = scmp.eq.s32.totalorder %s9, 0
    %p107 = por %p105, %p106
    %p108 = scmp.ne.s32.totalorder %s97, %s100
    %p109 = scmp.eq.s32.totalorder %s14, 1
    %p110 = por %p108, %p109
    %p111 = scmp.ne.s32.totalorder %s100, %s101
    %p112 = scmp.eq.s32.totalorder %s14, 0
    %p113 = por %p111, %p112
    %p114 = scmp.ne.s32.totalorder %s100, %s101
    %p115 = scmp.eq.s32.totalorder %s15, 1
    %p116 = por %p114, %p115
    %p118 = scmp.ne.s32.totalorder %s101, %s117
    %p119 = scmp.eq.s32.totalorder %s15, 0
    %p120 = por %p118, %p119
    %p121 = scmp.le.s32.totalorder 1, %s9
    %p122 = scmp.lt.s32.totalorder %s9, 3
    %p123 = pnand %p121, %p122
    %p124 = pneg %p123
    // Predicated region
    $region9: #{memnet_plus_forward.17} parent=5 // pred_check
      _
    $region10: #{memnet_plus_forward.17} parent=5 // pred_check_branch
      %126 = sbr.rel (%p123) target = $region12
    $region11: #{memnet_plus_forward.17} parent=5 // pred_region
      %s127 = ssub.s32 %s9, 1
    $region12: #{memnet_plus_forward.17} parent=5 // pred_fallthru
      _
    %p128 = scmp.lt.s32.totalorder %s9, 2
    // Predicated region
    $region13: #{memnet_plus_forward.17} parent=5 // pred_check
      %p129 = pneg %p128
    $region14: #{memnet_plus_forward.17} parent=5 // pred_check_branch
      %131 = sbr.rel (%p129) target = $region16
    $region15: #{memnet_plus_forward.17} parent=5 // pred_region
      // Predicated region
      $region17: #{memnet_plus_forward.17} parent=15 // pred_check
        %p132 = pneg %p29
      $region18: #{memnet_plus_forward.17} parent=15 // pred_check_branch
        %134 = sbr.rel (%p132) target = $region20
      $region19: #{memnet_plus_forward.17} parent=15 // pred_region
        %p135 = scmp.lt.s32.totalorder %s9, 1
        %s136 = scalar_select %p135, %s9, 1
        %s137 = smul.addr %s136, 8
        %s138 = smul.addr %s137, 2
        %s139 = scalar_lea.vmem %s0, %s138
      $region20: #{memnet_plus_forward.17} parent=15 // pred_fallthru
        _
      // Predicated region
      $region21: #{memnet_plus_forward.17} parent=15 // pred_check
        %p140 = pneg %p55
      $region22: #{memnet_plus_forward.17} parent=15 // pred_check_branch
        %142 = sbr.rel (%p140) target = $region24
      $region23: #{memnet_plus_forward.17} parent=15 // pred_region
        %p143 = scmp.lt.s32.totalorder %s9, 1
        %s144 = scalar_select %p143, %s9, 1
        %s145 = smul.addr %s144, 4
        %s146 = smul.addr %s145, 8
        %s147 = scalar_lea.vmem %s1, %s146
      $region24: #{memnet_plus_forward.17} parent=15 // pred_fallthru
        _
      // Predicated region
      $region25: #{memnet_plus_forward.17} parent=15 // pred_check
        %p148 = pneg %p81
      $region26: #{memnet_plus_forward.17} parent=15 // pred_check_branch
        %150 = sbr.rel (%p148) target = $region28
      $region27: #{memnet_plus_forward.17} parent=15 // pred_region
        %p151 = scmp.lt.s32.totalorder %s9, 1
        %s152 = scalar_select %p151, %s9, 1
        %s153 = scalar_lea.vmem %s2, %s152
      $region28: #{memnet_plus_forward.17} parent=15 // pred_fallthru
        _
    $region16: #{memnet_plus_forward.17} parent=5 // pred_fallthru
      _
    %p154 = scmp.le.s32.totalorder 1, %s9
    %p155 = scmp.lt.s32.totalorder %s9, 3
    %p156 = pnand %p154, %p155
    %p157 = pneg %p156
    // Predicated region
    $region29: #{memnet_plus_forward.17} parent=5 // pred_check
      _
    $region30: #{memnet_plus_forward.17} parent=5 // pred_check_branch
      %159 = sbr.rel (%p156) target = $region32
    $region31: #{memnet_plus_forward.17} parent=5 // pred_region
      %s160 = ssub.s32 %s9, 1
      %p161 = scmp.lt.s32.totalorder %s14, 1
      %s162 = scalar_select %p161, %s14, 1
      %s163 = smul.addr %s162, 8
      %s164 = smul.addr %s163, 2
      %s165 = scalar_lea.vmem %s0, %s164
      %p166 = pneg %p35
      %p167 = pneg %p32
      %p168 = scmp.lt.s32.totalorder %s14, 1
      %s169 = scalar_select %p168, %s14, 1
      %s170 = smul.addr %s169, 4
      %s171 = smul.addr %s170, 8
      %s172 = scalar_lea.vmem %s1, %s171
      %p173 = pneg %p61
      %p174 = pneg %p58
      %p175 = scmp.lt.s32.totalorder %s14, 1
      %s176 = scalar_select %p175, %s14, 1
      %s177 = scalar_lea.vmem %s2, %s176
      %p178 = pneg %p87
      %p179 = pneg %p84
      %p180 = pneg %p113
      %p181 = pneg %p110
      %p182 = scmp.lt.s32.totalorder %s14, 1
      %s183 = scalar_select %p182, %s14, 1
      %s184 = smul.addr %s183, 8
      %s185 = smul.addr %s184, 2
      %s186 = scalar_lea.vmem %s3, %s185
      %p187 = scmp.lt.s32.totalorder %s14, 1
      %s188 = scalar_select %p187, %s14, 1
      %s189 = smul.addr %s188, 8
      %s190 = smul.addr %s189, 2
      %s191 = scalar_lea.vmem %s0, %s190
      %p192 = scmp.lt.s32.totalorder %s14, 1
      %s193 = scalar_select %p192, %s14, 1
      %s194 = smul.addr %s193, 4
      %s195 = smul.addr %s194, 8
      %s196 = scalar_lea.vmem %s1, %s195
      %p197 = scmp.lt.s32.totalorder %s14, 1
      %s198 = scalar_select %p197, %s14, 1
      %s199 = scalar_lea.vmem %s2, %s198
      %p200 = scmp.lt.s32.totalorder %s14, 1
      %s201 = scalar_select %p200, %s14, 1
      %s202 = smul.addr %s201, 8
      %s203 = smul.addr %s202, 2
      %s204 = scalar_lea.vmem %s3, %s203
      loop: start=0, step=1, limit=8
      $region33: #{memnet_plus_forward.17} parent=31 // loop_pre_header
        _
      $region34: #{memnet_plus_forward.17} parent=31 // loop_header
        %s206 = sphi 0, %s210
        %p207 = scmp.ge.s32.totalorder %s206, 8
        %v211 = vphi 0.0, %v331
      $region35: #{memnet_plus_forward.17} parent=31 // loop_header_branch
        %209 = sbr.rel (%p207) target = $region39
      $region36: #{memnet_plus_forward.17} parent=31 // loop_body
        %s212 = smul.u32 %s206, 2
        %s213 = ssub.s32 7, %s212
        %s214 = smul.u32 %s14, %s213
        %s215 = sadd.s32 %s206, %s214
        %s216 = smul.u32 %s215, 2
        %s217 = scalar_lea.vmem %s191, %s216
        %v218 = vld [vmem:[%s217] sm:$0x3]
        %v219 = vld [vmem:[%s196] sm:$0xff]
        %v220 = vld [vmem:[%s196 + $0x8] sm:$0xff]
        %v221 = vld [vmem:[%s196 + $0x10] sm:$0xff]
        %v222 = vld [vmem:[%s196 + $0x18] sm:$0xff]
        %v223 = vld [vmem:[%s199] sm:$0x1]
        %v225 = vlaneseq
        %v226 = vshrl.u32 %v225, 7
        %v227 = vsub.s32 0, %v226
        %v228 = vrot.slane %v223, %v227
        %231 = vrot.lane.b32.xlu0 %v211, 96
        %v232 = vpop.permute.xlu0 %231
        %vm233 = vcmask 261120
        %v234 = vsel %vm233, %v232, 0
        %236 = vmatprep.subr.mxu0 0.0
        %237 = vmatpush1.msra.mxu0 %v219
        %238 = vmatprep.subr.mxu0 0.0
        %239 = vmatpush1.msra.mxu0 %v220
        %240 = vmatprep.subr.mxu0 0.0
        %241 = vmatpush1.msra.mxu0 %v221
        %242 = vmatprep.subr.mxu0 0.0
        %243 = vmatpush1.msra.mxu0 %v222
        %244 = vmatprep.subr.mxu0 0.0
        %245 = vmatpush1.msra.mxu0 0.0
        %246 = vmatprep.subr.mxu0 0.0
        %247 = vmatpush1.msra.mxu0 0.0
        %248 = vmatprep.subr.mxu0 0.0
        %249 = vmatpush1.msra.mxu0 0.0
        %250 = vmatprep.subr.mxu0 0.0
        %251 = vmatpush1.msra.mxu0 0.0
        %252 = vmatprep.subr.mxu0 0.0
        %253 = vmatpush1.msra.mxu0 0.0
        %254 = vmatprep.subr.mxu0 0.0
        %255 = vmatpush1.msra.mxu0 0.0
        %256 = vmatprep.subr.mxu0 0.0
        %257 = vmatpush1.msra.mxu0 0.0
        %258 = vmatprep.subr.mxu0 0.0
        %259 = vmatpush1.msra.mxu0 0.0
        %260 = vmatprep.subr.mxu0 0.0
        %261 = vmatpush1.msra.mxu0 0.0
        %262 = vmatprep.subr.mxu0 0.0
        %263 = vmatpush1.msra.mxu0 0.0
        %264 = vmatprep.subr.mxu0 0.0
        %265 = vmatpush1.msra.mxu0 0.0
        %266 = vmatprep.subr.mxu0 0.0
        %267 = vmatpush1.msra.mxu0 0.0
        %268 = vmatprep.subr.mxu0 0.0
        %269 = vmatpush1.msra.mxu0 0.0
        %270 = vmatprep.subr.mxu0 0.0
        %271 = vmatpush1.msra.mxu0 0.0
        %272 = vmatprep.subr.mxu0 0.0
        %273 = vmatpush1.msra.mxu0 0.0
        %274 = vmatprep.subr.mxu0 0.0
        %275 = vmatpush1.msra.mxu0 0.0
        %276 = vmatprep.subr.mxu0 0.0
        %277 = vmatpush1.msra.mxu0 0.0
        %278 = vmatprep.subr.mxu0 0.0
        %279 = vmatpush1.msra.mxu0 0.0
        %280 = vmatprep.subr.mxu0 0.0
        %281 = vmatpush1.msra.mxu0 0.0
        %282 = vmatprep.subr.mxu0 0.0
        %283 = vmatpush1.msra.mxu0 0.0
        %284 = vmatprep.subr.mxu0 0.0
        %285 = vmatpush1.msra.mxu0 0.0
        %286 = vmatprep.subr.mxu0 0.0
        %287 = vmatpush1.msra.mxu0 0.0
        %288 = vmatprep.subr.mxu0 0.0
        %289 = vmatpush1.msra.mxu0 0.0
        %290 = vmatprep.subr.mxu0 0.0
        %291 = vmatpush1.msra.mxu0 0.0
        %292 = vmatprep.subr.mxu0 0.0
        %293 = vmatpush1.msra.mxu0 0.0
        %294 = vmatprep.subr.mxu0 0.0
        %295 = vmatpush1.msra.mxu0 0.0
        %296 = vmatprep.subr.mxu0 0.0
        %297 = vmatpush1.msra.mxu0 0.0
        %298 = vmatprep.subr.mxu0 0.0
        %299 = vmatpush1.msra.mxu0 0.0
        %300 = vmatprep.mubr.f32.mxu0 0.0
        %301 = vmatmul.mubr.f32.gmra.mrb[0].mxu0 %v234
        %v302 = vpop.f32.mrb[0].mxu0
        %v303 = vadd.f32 %v228, %v302
        %v304 = vpop.f32.mrb[0].mxu0
        %305 = vdwg.mxu0
        %v306 = vadd.f32 %v218, %v303
        %v307 = vxor.u32 %v306, 2147483648
        %v308 = vmul.f32 %v307, 1.442695
        %v309 = vpow.pop %v308
        %v310 = vadd.f32 %v309, 1.0
        %v311 = vrcp.pop %v310
        %v312 = vmul.f32 1.0, %v311
        %314 = vrot.lane.b32.xlu0 %v303, 64
        %v315 = vpop.permute.xlu0 %314
        %v317 = vmul.f32 %v312, %v315
        %319 = vrot.lane.b32.xlu0 %v317, 64
        %v320 = vpop.permute.xlu0 %319
        %v322 = vadd.f32 %v218, %v320
        %v323 = vtanh.pop %v322
        %v324 = vsub.f32 1.0, %v312
        %326 = vrot.lane.b32.xlu0 %v323, 96
        %v327 = vpop.permute.xlu0 %326
        %v329 = vmul.f32 %v324, %v327
        %v330 = vmul.f32 %v312, %v211
        %v331 = vadd.f32 %v329, %v330
        %333 = vrot.lane.b32.xlu0 %v331, 96
        %v334 = vpop.permute.xlu0 %333
        %s336 = scalar_lea.vmem %s204, %s216
        %vm337 = vcmask 254976
        %338 = vst.msk [vmem:[%s336] sm:$0x3] %vm337, %v334
      $region37: #{memnet_plus_forward.17} parent=31 // loop_footer
        %s210 = sadd.s32 1, %s206
      $region38: #{memnet_plus_forward.17} parent=31 // loop_footer_branch
        %205 = sbr.rel target = $region34
      $region39: #{memnet_plus_forward.17} parent=31 // loop_exit
        _
      %p339 = scmp.lt.s32.totalorder %s14, 1
      %s340 = scalar_select %p339, %s14, 1
      %s341 = smul.addr %s340, 8
      %s342 = smul.addr %s341, 2
      %s343 = scalar_lea.vmem %s3, %s342
      // Predicated region
      $region40: #{memnet_plus_forward.17} parent=31 // pred_check
        %p344 = pneg %p110
      $region41: #{memnet_plus_forward.17} parent=31 // pred_check_branch
        %346 = sbr.rel (%p344) target = $region43
      $region42: #{memnet_plus_forward.17} parent=31 // pred_region
        _
      $region43: #{memnet_plus_forward.17} parent=31 // pred_fallthru
        _
    $region32: #{memnet_plus_forward.17} parent=5 // pred_fallthru
      _
    %p347 = scmp.le.s32.totalorder 2, %s9
    // Predicated region
    $region44: #{memnet_plus_forward.17} parent=5 // pred_check
      %p348 = pneg %p347
    $region45: #{memnet_plus_forward.17} parent=5 // pred_check_branch
      %350 = sbr.rel (%p348) target = $region47
    $region46: #{memnet_plus_forward.17} parent=5 // pred_region
      %s351 = ssub.s32 %s9, 2
      // Predicated region
      $region48: #{memnet_plus_forward.17} parent=46 // pred_check
        %p352 = pneg %p116
      $region49: #{memnet_plus_forward.17} parent=46 // pred_check_branch
        %354 = sbr.rel (%p352) target = $region51
      $region50: #{memnet_plus_forward.17} parent=46 // pred_region
        %p355 = scmp.lt.s32.totalorder %s15, 1
        %s356 = scalar_select %p355, %s15, 1
        %s357 = smul.addr %s356, 8
        %s358 = smul.addr %s357, 2
        %s359 = scalar_lea.vmem %s3, %s358
      $region51: #{memnet_plus_forward.17} parent=46 // pred_fallthru
        _
    $region47: #{memnet_plus_forward.17} parent=5 // pred_fallthru
      _
  $region6: #{memnet_plus_forward.17} parent=0 // loop_footer
    %s13 = sadd.s32 1, %s9
  $region7: #{memnet_plus_forward.17} parent=0 // loop_footer_branch
    %8 = sbr.rel target = $region3
  $region8: #{memnet_plus_forward.17} parent=0 // loop_exit
    _

// kernel: memnet_plus_forward.18
$region0: #{memnet_plus_forward.18}
  #allocation0 [shape = 'u32[]', space=smem, size = 0x4, offset = 0x4, fixed_abs, tag = 'smem constant byte address 0x4 - core index']
  #allocation1 [shape = 'u32[144,128]{1,0:T(1,128)}', space=vmem, size = 0x12000, scoped, tag = 'internal scratch']
  %s0 = inlined_call_operand.vmem [shape: f32[2,16,32], index: 0, kind: input, shape index: {}]
  %s1 = inlined_call_operand.vmem [shape: f32[2,32,128], index: 1, kind: input, shape index: {}]
  %s2 = inlined_call_operand.vmem [shape: f32[2,32,128], index: 2, kind: input, shape index: {}]
  %s3 = inlined_call_operand.vmem [shape: f32[2,1,128], index: 3, kind: input, shape index: {}]
  %s4 = inlined_call_operand.vmem [shape: f32[2,16,128], index: 4, kind: output, shape index: {}]
  %s5 = sld [smem:[#allocation0]]
  $region49: #{memnet_plus_forward.18} parent=0
    _
  %s7 = ssub.s32 1, %s5
  %s8 = scalar_select 0, %s7, %s5
  loop: start=0, step=1, limit=4
  $region2: #{memnet_plus_forward.18} parent=0 // loop_pre_header
    _
  $region3: #{memnet_plus_forward.18} parent=0 // loop_header
    %s10 = sphi 0, %s14
    %p11 = scmp.ge.s32.totalorder %s10, 4
    %s18 = sphi 0, %s18
    %s20 = sphi 0, %s18
    %s21 = sphi 0, %s20
    %s35 = sphi 0, %s21
    %s41 = sphi 0, %s43
    %s44 = sphi 0, %s41
    %s45 = sphi 0, %s44
    %s61 = sphi 0, %s45
    %s67 = sphi 0, %s69
    %s70 = sphi 0, %s67
    %s71 = sphi 0, %s70
    %s87 = sphi 0, %s71
    %s93 = sphi 0, %s95
    %s96 = sphi 0, %s93
    %s97 = sphi 0, %s96
    %s113 = sphi 0, %s97
    %s119 = sphi 0, %s121
    %s122 = sphi 0, %s119
    %s123 = sphi 0, %s122
    %s139 = sphi 0, %s123
  $region4: #{memnet_plus_forward.18} parent=0 // loop_header_branch
    %13 = sbr.rel (%p11) target = $region8
  $region5: #{memnet_plus_forward.18} parent=0 // loop_body
    %s15 = ssub.s32 %s10, 1
    %s16 = ssub.s32 %s10, 2
    %s17 = sadd.s32 %s10, 1
    %s19 = sadd.s32 %s18, 1
    %p22 = scmp.eq.s32.totalorder %s10, 1
    %p23 = scmp.ne.s32.totalorder %s18, %s20
    %p24 = scmp.eq.s32.totalorder %s10, 0
    %p25 = por %p23, %p24
    %p26 = scmp.ne.s32.totalorder %s18, %s20
    %p27 = scmp.eq.s32.totalorder %s15, 1
    %p28 = por %p26, %p27
    %p29 = scmp.ne.s32.totalorder %s20, %s21
    %p30 = scmp.eq.s32.totalorder %s15, 0
    %p31 = por %p29, %p30
    %p32 = scmp.ne.s32.totalorder %s20, %s21
    %p33 = scmp.eq.s32.totalorder %s16, 1
    %p34 = por %p32, %p33
    %p36 = scmp.ne.s32.totalorder %s21, %s35
    %p37 = scmp.eq.s32.totalorder %s16, 0
    %p38 = por %p36, %p37
    %s39 = ssub.s32 %s10, %s17
    %p40 = scmp.eq.s32.totalorder %s39, 0
    %s42 = sadd.s32 %s41, 1
    %s43 = scalar_select %p40, %s41, %s42
    %p46 = pneg %p40
    %p47 = scmp.eq.s32.totalorder %s10, 1
    %p48 = por %p46, %p47
    %p49 = scmp.ne.s32.totalorder %s41, %s44
    %p50 = scmp.eq.s32.totalorder %s10, 0
    %p51 = por %p49, %p50
    %p52 = scmp.ne.s32.totalorder %s41, %s44
    %p53 = scmp.eq.s32.totalorder %s15, 1
    %p54 = por %p52, %p53
    %p55 = scmp.ne.s32.totalorder %s44, %s45
    %p56 = scmp.eq.s32.totalorder %s15, 0
    %p57 = por %p55, %p56
    %p58 = scmp.ne.s32.totalorder %s44, %s45
    %p59 = scmp.eq.s32.totalorder %s16, 1
    %p60 = por %p58, %p59
    %p62 = scmp.ne.s32.totalorder %s45, %s61
    %p63 = scmp.eq.s32.totalorder %s16, 0
    %p64 = por %p62, %p63
    %s65 = ssub.s32 %s10, %s17
    %p66 = scmp.eq.s32.totalorder %s65, 0
    %s68 = sadd.s32 %s67, 1
    %s69 = scalar_select %p66, %s67, %s68
    %p72 = pneg %p66
    %p73 = scmp.eq.s32.totalorder %s10, 1
    %p74 = por %p72, %p73
    %p75 = scmp.ne.s32.totalorder %s67, %s70
    %p76 = scmp.eq.s32.totalorder %s10, 0
    %p77 = por %p75, %p76
    %p78 = scmp.ne.s32.totalorder %s67, %s70
    %p79 = scmp.eq.s32.totalorder %s15, 1
    %p80 = por %p78, %p79
    %p81 = scmp.ne.s32.totalorder %s70, %s71
    %p82 = scmp.eq.s32.totalorder %s15, 0
    %p83 = por %p81, %p82
    %p84 = scmp.ne.s32.totalorder %s70, %s71
    %p85 = scmp.eq.s32.totalorder %s16, 1
    %p86 = por %p84, %p85
    %p88 = scmp.ne.s32.totalorder %s71, %s87
    %p89 = scmp.eq.s32.totalorder %s16, 0
    %p90 = por %p88, %p89
    %s91 = ssub.s32 %s10, %s17
    %p92 = scmp.eq.s32.totalorder %s91, 0
    %s94 = sadd.s32 %s93, 1
    %s95 = scalar_select %p92, %s93, %s94
    %p98 = pneg %p92
    %p99 = scmp.eq.s32.totalorder %s10, 1
    %p100 = por %p98, %p99
    %p101 = scmp.ne.s32.totalorder %s93, %s96
    %p102 = scmp.eq.s32.totalorder %s10, 0
    %p103 = por %p101, %p102
    %p104 = scmp.ne.s32.totalorder %s93, %s96
    %p105 = scmp.eq.s32.totalorder %s15, 1
    %p106 = por %p104, %p105
    %p107 = scmp.ne.s32.totalorder %s96, %s97
    %p108 = scmp.eq.s32.totalorder %s15, 0
    %p109 = por %p107, %p108
    %p110 = scmp.ne.s32.totalorder %s96, %s97
    %p111 = scmp.eq.s32.totalorder %s16, 1
    %p112 = por %p110, %p111
    %p114 = scmp.ne.s32.totalorder %s97, %s113
    %p115 = scmp.eq.s32.totalorder %s16, 0
    %p116 = por %p114, %p115
    %s117 = ssub.s32 %s10, %s17
    %p118 = scmp.eq.s32.totalorder %s117, 0
    %s120 = sadd.s32 %s119, 1
    %s121 = scalar_select %p118, %s119, %s120
    %p124 = pneg %p118
    %p125 = scmp.eq.s32.totalorder %s10, 1
    %p126 = por %p124, %p125
    %p127 = scmp.ne.s32.totalorder %s119, %s122
    %p128 = scmp.eq.s32.totalorder %s10, 0
    %p129 = por %p127, %p128
    %p130 = scmp.ne.s32.totalorder %s119, %s122
    %p131 = scmp.eq.s32.totalorder %s15, 1
    %p132 = por %p130, %p131
    %p133 = scmp.ne.s32.totalorder %s122, %s123
    %p134 = scmp.eq.s32.totalorder %s15, 0
    %p135 = por %p133, %p134
    %p136 = scmp.ne.s32.totalorder %s122, %s123
    %p137 = scmp.eq.s32.totalorder %s16, 1
    %p138 = por %p136, %p137
    %p140 = scmp.ne.s32.totalorder %s123, %s139
    %p141 = scmp.eq.s32.totalorder %s16, 0
    %p142 = por %p140, %p141
    %p143 = scmp.le.s32.totalorder 1, %s10
    %p144 = scmp.lt.s32.totalorder %s10, 3
    %p145 = pnand %p143, %p144
    %p146 = pneg %p145
    // Predicated region
    $region9: #{memnet_plus_forward.18} parent=5 // pred_check
      _
    $region10: #{memnet_plus_forward.18} parent=5 // pred_check_branch
      %148 = sbr.rel (%p145) target = $region12
    $region11: #{memnet_plus_forward.18} parent=5 // pred_region
      %s149 = ssub.s32 %s10, 1
      // Predicated region
      $region13: #{memnet_plus_forward.18} parent=11 // pred_check
        %p150 = pneg %p31
      $region14: #{memnet_plus_forward.18} parent=11 // pred_check_branch
        %152 = sbr.rel (%p150) target = $region16
      $region15: #{memnet_plus_forward.18} parent=11 // pred_region
        _
      $region16: #{memnet_plus_forward.18} parent=11 // pred_fallthru
        _
    $region12: #{memnet_plus_forward.18} parent=5 // pred_fallthru
      _
    %p153 = scmp.lt.s32.totalorder %s10, 2
    // Predicated region
    $region17: #{memnet_plus_forward.18} parent=5 // pred_check
      %p154 = pneg %p153
    $region18: #{memnet_plus_forward.18} parent=5 // pred_check_branch
      %156 = sbr.rel (%p154) target = $region20
    $region19: #{memnet_plus_forward.18} parent=5 // pred_region
      // Predicated region
      $region21: #{memnet_plus_forward.18} parent=19 // pred_check
        %p157 = pneg %p51
      $region22: #{memnet_plus_forward.18} parent=19 // pred_check_branch
        %159 = sbr.rel (%p157) target = $region24
      $region23: #{memnet_plus_forward.18} parent=19 // pred_region
        %p160 = scmp.lt.s32.totalorder %s10, 1
        %s161 = scalar_select %p160, %s10, 1
        %s162 = smul.addr %s161, 4
        %s163 = smul.addr %s162, 8
        %s164 = scalar_lea.vmem %s1, %s163
      $region24: #{memnet_plus_forward.18} parent=19 // pred_fallthru
        _
      // Predicated region
      $region25: #{memnet_plus_forward.18} parent=19 // pred_check
        %p165 = pneg %p77
      $region26: #{memnet_plus_forward.18} parent=19 // pred_check_branch
        %167 = sbr.rel (%p165) target = $region28
      $region27: #{memnet_plus_forward.18} parent=19 // pred_region
        %p168 = scmp.lt.s32.totalorder %s10, 1
        %s169 = scalar_select %p168, %s10, 1
        %s170 = smul.addr %s169, 4
        %s171 = smul.addr %s170, 8
        %s172 = scalar_lea.vmem %s2, %s171
      $region28: #{memnet_plus_forward.18} parent=19 // pred_fallthru
        _
      // Predicated region
      $region29: #{memnet_plus_forward.18} parent=19 // pred_check
        %p173 = pneg %p103
      $region30: #{memnet_plus_forward.18} parent=19 // pred_check_branch
        %175 = sbr.rel (%p173) target = $region32
      $region31: #{memnet_plus_forward.18} parent=19 // pred_region
        %p176 = scmp.lt.s32.totalorder %s10, 1
        %s177 = scalar_select %p176, %s10, 1
        %s178 = scalar_lea.vmem %s3, %s177
      $region32: #{memnet_plus_forward.18} parent=19 // pred_fallthru
        _
    $region20: #{memnet_plus_forward.18} parent=5 // pred_fallthru
      _
    %p179 = scmp.le.s32.totalorder 1, %s10
    %p180 = scmp.lt.s32.totalorder %s10, 3
    %p181 = pnand %p179, %p180
    %p182 = pneg %p181
    // Predicated region
    $region33: #{memnet_plus_forward.18} parent=5 // pred_check
      _
    $region34: #{memnet_plus_forward.18} parent=5 // pred_check_branch
      %184 = sbr.rel (%p181) target = $region36
    $region35: #{memnet_plus_forward.18} parent=5 // pred_region
      %s185 = ssub.s32 %s10, 1
      %p186 = pneg %p31
      %p187 = pneg %p28
      %p188 = scmp.lt.s32.totalorder %s15, 1
      %s189 = scalar_select %p188, %s15, 1
      %s190 = smul.addr %s189, 4
      %s191 = smul.addr %s190, 8
      %s192 = scalar_lea.vmem %s1, %s191
      %p193 = pneg %p57
      %p194 = pneg %p54
      %p195 = scmp.lt.s32.totalorder %s15, 1
      %s196 = scalar_select %p195, %s15, 1
      %s197 = smul.addr %s196, 4
      %s198 = smul.addr %s197, 8
      %s199 = scalar_lea.vmem %s2, %s198
      %p200 = pneg %p83
      %p201 = pneg %p80
      %p202 = scmp.lt.s32.totalorder %s15, 1
      %s203 = scalar_select %p202, %s15, 1
      %s204 = scalar_lea.vmem %s3, %s203
      %p205 = pneg %p109
      %p206 = pneg %p106
      %p207 = pneg %p135
      %p208 = pneg %p132
      %p209 = scmp.lt.s32.totalorder %s15, 1
      %s210 = scalar_select %p209, %s15, 1
      %s211 = smul.addr %s210, 2
      %s212 = smul.addr %s211, 8
      %s213 = scalar_lea.vmem %s4, %s212
      %p214 = scmp.lt.s32.totalorder %s15, 1
      %s215 = scalar_select %p214, %s15, 1
      %s216 = smul.addr %s215, 4
      %s217 = smul.addr %s216, 8
      %s218 = scalar_lea.vmem %s1, %s217
      %p219 = scmp.lt.s32.totalorder %s15, 1
      %s220 = scalar_select %p219, %s15, 1
      %s221 = smul.addr %s220, 4
      %s222 = smul.addr %s221, 8
      %s223 = scalar_lea.vmem %s2, %s222
      %p224 = scmp.lt.s32.totalorder %s15, 1
      %s225 = scalar_select %p224, %s15, 1
      %s226 = scalar_lea.vmem %s3, %s225
      %p227 = scmp.lt.s32.totalorder %s15, 1
      %s228 = scalar_select %p227, %s15, 1
      %s229 = smul.addr %s228, 2
      %s230 = smul.addr %s229, 8
      %s231 = scalar_lea.vmem %s4, %s230
      %v232 = vld [vmem:[%s0] sm:$0xff]
      %v233 = vld [vmem:[%s0 + $0x8] sm:$0xff]
      %v234 = vld [vmem:[%s218] sm:$0xff]
      %v235 = vld [vmem:[%s218 + $0x8] sm:$0xff]
      %v236 = vld [vmem:[%s218 + $0x10] sm:$0xff]
      %v237 = vld [vmem:[%s218 + $0x18] sm:$0xff]
      %s238 = scalar_lea.vmem %s0, 16
      %v239 = vld [vmem:[%s238] sm:$0xff]
      %v240 = vld [vmem:[%s238 + $0x8] sm:$0xff]
      %v241 = vld [vmem:[%s223] sm:$0xff]
      %v242 = vld [vmem:[%s223 + $0x8] sm:$0xff]
      %v243 = vld [vmem:[%s223 + $0x10] sm:$0xff]
      %v244 = vld [vmem:[%s223 + $0x18] sm:$0xff]
      %vm245 = vcmask 261120
      %v247 = vsel %vm245, %v239, 0
      %v250 = vsel %vm245, %v240, 0
      %252 = vmatprep.subr.mxu0 0.0
      %253 = vmatpush1.msra.mxu0 %v241
      %254 = vmatprep.subr.mxu0 0.0
      %255 = vmatpush1.msra.mxu0 %v242
      %256 = vmatprep.subr.mxu0 0.0
      %257 = vmatpush1.msra.mxu0 %v243
      %258 = vmatprep.subr.mxu0 0.0
      %259 = vmatpush1.msra.mxu0 %v244
      %260 = vmatprep.subr.mxu0 0.0
      %261 = vmatpush1.msra.mxu0 0.0
      %262 = vmatprep.subr.mxu0 0.0
      %263 = vmatpush1.msra.mxu0 0.0
      %264 = vmatprep.subr.mxu0 0.0
      %265 = vmatpush1.msra.mxu0 0.0
      %266 = vmatprep.subr.mxu0 0.0
      %267 = vmatpush1.msra.mxu0 0.0
      %268 = vmatprep.subr.mxu0 0.0
      %269 = vmatpush1.msra.mxu0 0.0
      %270 = vmatprep.subr.mxu0 0.0
      %271 = vmatpush1.msra.mxu0 0.0
      %272 = vmatprep.subr.mxu0 0.0
      %273 = vmatpush1.msra.mxu0 0.0
      %274 = vmatprep.subr.mxu0 0.0
      %275 = vmatpush1.msra.mxu0 0.0
      %276 = vmatprep.subr.mxu0 0.0
      %277 = vmatpush1.msra.mxu0 0.0
      %278 = vmatprep.subr.mxu0 0.0
      %279 = vmatpush1.msra.mxu0 0.0
      %280 = vmatprep.subr.mxu0 0.0
      %281 = vmatpush1.msra.mxu0 0.0
      %282 = vmatprep.subr.mxu0 0.0
      %283 = vmatpush1.msra.mxu0 0.0
      %284 = vmatprep.subr.mxu0 0.0
      %285 = vmatpush1.msra.mxu0 0.0
      %286 = vmatprep.subr.mxu0 0.0
      %287 = vmatpush1.msra.mxu0 0.0
      %288 = vmatprep.subr.mxu0 0.0
      %289 = vmatpush1.msra.mxu0 0.0
      %290 = vmatprep.subr.mxu0 0.0
      %291 = vmatpush1.msra.mxu0 0.0
      %292 = vmatprep.subr.mxu0 0.0
      %293 = vmatpush1.msra.mxu0 0.0
      %294 = vmatprep.subr.mxu0 0.0
      %295 = vmatpush1.msra.mxu0 0.0
      %296 = vmatprep.subr.mxu0 0.0
      %297 = vmatpush1.msra.mxu0 0.0
      %298 = vmatprep.subr.mxu0 0.0
      %299 = vmatpush1.msra.mxu0 0.0
      %300 = vmatprep.subr.mxu0 0.0
      %301 = vmatpush1.msra.mxu0 0.0
      %302 = vmatprep.subr.mxu0 0.0
      %303 = vmatpush1.msra.mxu0 0.0
      %304 = vmatprep.subr.mxu0 0.0
      %305 = vmatpush1.msra.mxu0 0.0
      %306 = vmatprep.subr.mxu0 0.0
      %307 = vmatpush1.msra.mxu0 0.0
      %308 = vmatprep.subr.mxu0 0.0
      %309 = vmatpush1.msra.mxu0 0.0
      %310 = vmatprep.subr.mxu0 0.0
      %311 = vmatpush1.msra.mxu0 0.0
      %312 = vmatprep.subr.mxu0 0.0
      %313 = vmatpush1.msra.mxu0 0.0
      %314 = vmatprep.subr.mxu0 0.0
      %315 = vmatpush1.msra.mxu0 0.0
      %316 = vmatprep.mubr.f32.mxu0 0.0
      %317 = vmatmul.mubr.f32.gmra.mrb[0].mxu0 %v247
      %v318 = vpop.f32.mrb[0].mxu0
      %v319 = vadd.f32 0.0, %v318
      %v320 = vpop.f32.mrb[0].mxu0
      %321 = vmatprep.mubr.f32.mxu0 0.0
      %322 = vmatmul.mubr.f32.gmra.mrb[0].mxu0 %v250
      %v323 = vpop.f32.mrb[0].mxu0
      %v324 = vadd.f32 0.0, %v323
      %v325 = vpop.f32.mrb[0].mxu0
      %326 = vdwg.mxu0
      %v328 = vsel %vm245, %v232, 0
      %v331 = vsel %vm245, %v233, 0
      %333 = vmatprep.subr.mxu0 0.0
      %334 = vmatpush1.msra.mxu0 %v234
      %335 = vmatprep.subr.mxu0 0.0
      %336 = vmatpush1.msra.mxu0 %v235
      %337 = vmatprep.subr.mxu0 0.0
      %338 = vmatpush1.msra.mxu0 %v236
      %339 = vmatprep.subr.mxu0 0.0
      %340 = vmatpush1.msra.mxu0 %v237
      %341 = vmatprep.subr.mxu0 0.0
      %342 = vmatpush1.msra.mxu0 0.0
      %343 = vmatprep.subr.mxu0 0.0
      %344 = vmatpush1.msra.mxu0 0.0
      %345 = vmatprep.subr.mxu0 0.0
      %346 = vmatpush1.msra.mxu0 0.0
      %347 = vmatprep.subr.mxu0 0.0
      %348 = vmatpush1.msra.mxu0 0.0
      %349 = vmatprep.subr.mxu0 0.0
      %350 = vmatpush1.msra.mxu0 0.0
      %351 = vmatprep.subr.mxu0 0.0
      %352 = vmatpush1.msra.mxu0 0.0
      %353 = vmatprep.subr.mxu0 0.0
      %354 = vmatpush1.msra.mxu0 0.0
      %355 = vmatprep.subr.mxu0 0.0
      %356 = vmatpush1.msra.mxu0 0.0
      %357 = vmatprep.subr.mxu0 0.0
      %358 = vmatpush1.msra.mxu0 0.0
      %359 = vmatprep.subr.mxu0 0.0
      %360 = vmatpush1.msra.mxu0 0.0
      %361 = vmatprep.subr.mxu0 0.0
      %362 = vmatpush1.msra.mxu0 0.0
      %363 = vmatprep.subr.mxu0 0.0
      %364 = vmatpush1.msra.mxu0 0.0
      %365 = vmatprep.subr.mxu0 0.0
      %366 = vmatpush1.msra.mxu0 0.0
      %367 = vmatprep.subr.mxu0 0.0
      %368 = vmatpush1.msra.mxu0 0.0
      %369 = vmatprep.subr.mxu0 0.0
      %370 = vmatpush1.msra.mxu0 0.0
      %371 = vmatprep.subr.mxu0 0.0
      %372 = vmatpush1.msra.mxu0 0.0
      %373 = vmatprep.subr.mxu0 0.0
      %374 = vmatpush1.msra.mxu0 0.0
      %375 = vmatprep.subr.mxu0 0.0
      %376 = vmatpush1.msra.mxu0 0.0
      %377 = vmatprep.subr.mxu0 0.0
      %378 = vmatpush1.msra.mxu0 0.0
      %379 = vmatprep.subr.mxu0 0.0
      %380 = vmatpush1.msra.mxu0 0.0
      %381 = vmatprep.subr.mxu0 0.0
      %382 = vmatpush1.msra.mxu0 0.0
      %383 = vmatprep.subr.mxu0 0.0
      %384 = vmatpush1.msra.mxu0 0.0
      %385 = vmatprep.subr.mxu0 0.0
      %386 = vmatpush1.msra.mxu0 0.0
      %387 = vmatprep.subr.mxu0 0.0
      %388 = vmatpush1.msra.mxu0 0.0
      %389 = vmatprep.subr.mxu0 0.0
      %390 = vmatpush1.msra.mxu0 0.0
      %391 = vmatprep.subr.mxu0 0.0
      %392 = vmatpush1.msra.mxu0 0.0
      %393 = vmatprep.subr.mxu0 0.0
      %394 = vmatpush1.msra.mxu0 0.0
      %395 = vmatprep.subr.mxu0 0.0
      %396 = vmatpush1.msra.mxu0 0.0
      %397 = vmatprep.mubr.f32.mxu0 0.0
      %398 = vmatmul.mubr.f32.gmra.mrb[0].mxu0 %v328
      %v399 = vpop.f32.mrb[0].mxu0
      %v400 = vadd.f32 %v319, %v399
      %v401 = vpop.f32.mrb[0].mxu0
      %402 = vmatprep.mubr.f32.mxu0 0.0
      %403 = vmatmul.mubr.f32.gmra.mrb[0].mxu0 %v331
      %v404 = vpop.f32.mrb[0].mxu0
      %v405 = vadd.f32 %v324, %v404
      %v406 = vpop.f32.mrb[0].mxu0
      %407 = vdwg.mxu0
      %v408 = vld [vmem:[%s226] sm:$0x1]
      %v410 = vlaneseq
      %v411 = vshrl.u32 %v410, 7
      %v412 = vsub.s32 0, %v411
      %v413 = vrot.slane %v408, %v412
      %v415 = vadd.f32 %v400, %v413
      %v416 = vadd.f32 %v405, %v413
      %417 = vst [vmem:[%s231] sm:$0xff] %v415
      %418 = vst [vmem:[%s231 + $0x8] sm:$0xff] %v416
      %p419 = scmp.lt.s32.totalorder %s15, 1
      %s420 = scalar_select %p419, %s15, 1
      %s421 = smul.addr %s420, 2
      %s422 = smul.addr %s421, 8
      %s423 = scalar_lea.vmem %s4, %s422
      // Predicated region
      $region37: #{memnet_plus_forward.18} parent=35 // pred_check
        %p424 = pneg %p132
      $region38: #{memnet_plus_forward.18} parent=35 // pred_check_branch
        %426 = sbr.rel (%p424) target = $region40
      $region39: #{memnet_plus_forward.18} parent=35 // pred_region
        _
      $region40: #{memnet_plus_forward.18} parent=35 // pred_fallthru
        _
    $region36: #{memnet_plus_forward.18} parent=5 // pred_fallthru
      _
    %p427 = scmp.le.s32.totalorder 2, %s10
    // Predicated region
    $region41: #{memnet_plus_forward.18} parent=5 // pred_check
      %p428 = pneg %p427
    $region42: #{memnet_plus_forward.18} parent=5 // pred_check_branch
      %430 = sbr.rel (%p428) target = $region44
    $region43: #{memnet_plus_forward.18} parent=5 // pred_region
      %s431 = ssub.s32 %s10, 2
      // Predicated region
      $region45: #{memnet_plus_forward.18} parent=43 // pred_check
        %p432 = pneg %p138
      $region46: #{memnet_plus_forward.18} parent=43 // pred_check_branch
        %434 = sbr.rel (%p432) target = $region48
      $region47: #{memnet_plus_forward.18} parent=43 // pred_region
        %p435 = scmp.lt.s32.totalorder %s16, 1
        %s436 = scalar_select %p435, %s16, 1
        %s437 = smul.addr %s436, 2
        %s438 = smul.addr %s437, 8
        %s439 = scalar_lea.vmem %s4, %s438
      $region48: #{memnet_plus_forward.18} parent=43 // pred_fallthru
        _
    $region44: #{memnet_plus_forward.18} parent=5 // pred_fallthru
      _
  $region6: #{memnet_plus_forward.18} parent=0 // loop_footer
    %s14 = sadd.s32 1, %s10
  $region7: #{memnet_plus_forward.18} parent=0 // loop_footer_branch
    %9 = sbr.rel target = $region3
  $region8: #{memnet_plus_forward.18} parent=0 // loop_exit
    _

// kernel: memnet_plus_forward.19
$region0: #{memnet_plus_forward.19}
  #allocation0 [shape = 'u32[]', space=smem, size = 0x4, offset = 0x4, fixed_abs, tag = 'smem constant byte address 0x4 - core index']
  #allocation1 [shape = 'u32[144,128]{1,0:T(1,128)}', space=vmem, size = 0x12000, scoped, tag = 'internal scratch']
  %s0 = inlined_call_operand.vmem [shape: f32[2,8,2,128], index: 0, kind: input, shape index: {}]
  %s1 = inlined_call_operand.vmem [shape: f32[2,2,128], index: 1, kind: input, shape index: {}]
  %s2 = inlined_call_operand.vmem [shape: f32[2,32,128], index: 2, kind: input, shape index: {}]
  %s3 = inlined_call_operand.vmem [shape: f32[2,8,2,32], index: 3, kind: output, shape index: {0}]
  %s4 = inlined_call_operand.vmem [shape: f32[2,2,32], index: 4, kind: output, shape index: {1}]
  %5 = xla_tuple %s3, %s4
  %s6 = sld [smem:[#allocation0]]
  $region60: #{memnet_plus_forward.19} parent=0
    _
  %s8 = ssub.s32 1, %s6
  %s9 = scalar_select 0, %s8, %s6
  loop: start=0, step=1, limit=4
  $region2: #{memnet_plus_forward.19} parent=0 // loop_pre_header
    _
  $region3: #{memnet_plus_forward.19} parent=0 // loop_header
    %s11 = sphi 0, %s15
    %p12 = scmp.ge.s32.totalorder %s11, 4
    %s21 = sphi 0, %s23
    %s24 = sphi 0, %s21
    %s25 = sphi 0, %s24
    %s41 = sphi 0, %s25
    %s47 = sphi 0, %s49
    %s50 = sphi 0, %s47
    %s51 = sphi 0, %s50
    %s67 = sphi 0, %s51
    %s73 = sphi 0, %s75
    %s76 = sphi 0, %s73
    %s77 = sphi 0, %s76
    %s93 = sphi 0, %s77
    %s99 = sphi 0, %s101
    %s102 = sphi 0, %s99
    %s103 = sphi 0, %s102
    %s119 = sphi 0, %s103
    %s125 = sphi 0, %s127
    %s128 = sphi 0, %s125
    %s129 = sphi 0, %s128
    %s145 = sphi 0, %s129
  $region4: #{memnet_plus_forward.19} parent=0 // loop_header_branch
    %14 = sbr.rel (%p12) target = $region8
  $region5: #{memnet_plus_forward.19} parent=0 // loop_body
    %s16 = ssub.s32 %s11, 1
    %s17 = ssub.s32 %s11, 2
    %s18 = sadd.s32 %s11, 1
    %s19 = ssub.s32 %s11, %s18
    %p20 = scmp.eq.s32.totalorder %s19, 0
    %s22 = sadd.s32 %s21, 1
    %s23 = scalar_select %p20, %s21, %s22
    %p26 = pneg %p20
    %p27 = scmp.eq.s32.totalorder %s11, 1
    %p28 = por %p26, %p27
    %p29 = scmp.ne.s32.totalorder %s21, %s24
    %p30 = scmp.eq.s32.totalorder %s11, 0
    %p31 = por %p29, %p30
    %p32 = scmp.ne.s32.totalorder %s21, %s24
    %p33 = scmp.eq.s32.totalorder %s16, 1
    %p34 = por %p32, %p33
    %p35 = scmp.ne.s32.totalorder %s24, %s25
    %p36 = scmp.eq.s32.totalorder %s16, 0
    %p37 = por %p35, %p36
    %p38 = scmp.ne.s32.totalorder %s24, %s25
    %p39 = scmp.eq.s32.totalorder %s17, 1
    %p40 = por %p38, %p39
    %p42 = scmp.ne.s32.totalorder %s25, %s41
    %p43 = scmp.eq.s32.totalorder %s17, 0
    %p44 = por %p42, %p43
    %s45 = ssub.s32 %s11, %s18
    %p46 = scmp.eq.s32.totalorder %s45, 0
    %s48 = sadd.s32 %s47, 1
    %s49 = scalar_select %p46, %s47, %s48
    %p52 = pneg %p46
    %p53 = scmp.eq.s32.totalorder %s11, 1
    %p54 = por %p52, %p53
    %p55 = scmp.ne.s32.totalorder %s47, %s50
    %p56 = scmp.eq.s32.totalorder %s11, 0
    %p57 = por %p55, %p56
    %p58 = scmp.ne.s32.totalorder %s47, %s50
    %p59 = scmp.eq.s32.totalorder %s16, 1
    %p60 = por %p58, %p59
    %p61 = scmp.ne.s32.totalorder %s50, %s51
    %p62 = scmp.eq.s32.totalorder %s16, 0
    %p63 = por %p61, %p62
    %p64 = scmp.ne.s32.totalorder %s50, %s51
    %p65 = scmp.eq.s32.totalorder %s17, 1
    %p66 = por %p64, %p65
    %p68 = scmp.ne.s32.totalorder %s51, %s67
    %p69 = scmp.eq.s32.totalorder %s17, 0
    %p70 = por %p68, %p69
    %s71 = ssub.s32 %s11, %s18
    %p72 = scmp.eq.s32.totalorder %s71, 0
    %s74 = sadd.s32 %s73, 1
    %s75 = scalar_select %p72, %s73, %s74
    %p78 = pneg %p72
    %p79 = scmp.eq.s32.totalorder %s11, 1
    %p80 = por %p78, %p79
    %p81 = scmp.ne.s32.totalorder %s73, %s76
    %p82 = scmp.eq.s32.totalorder %s11, 0
    %p83 = por %p81, %p82
    %p84 = scmp.ne.s32.totalorder %s73, %s76
    %p85 = scmp.eq.s32.totalorder %s16, 1
    %p86 = por %p84, %p85
    %p87 = scmp.ne.s32.totalorder %s76, %s77
    %p88 = scmp.eq.s32.totalorder %s16, 0
    %p89 = por %p87, %p88
    %p90 = scmp.ne.s32.totalorder %s76, %s77
    %p91 = scmp.eq.s32.totalorder %s17, 1
    %p92 = por %p90, %p91
    %p94 = scmp.ne.s32.totalorder %s77, %s93
    %p95 = scmp.eq.s32.totalorder %s17, 0
    %p96 = por %p94, %p95
    %s97 = ssub.s32 %s11, %s18
    %p98 = scmp.eq.s32.totalorder %s97, 0
    %s100 = sadd.s32 %s99, 1
    %s101 = scalar_select %p98, %s99, %s100
    %p104 = pneg %p98
    %p105 = scmp.eq.s32.totalorder %s11, 1
    %p106 = por %p104, %p105
    %p107 = scmp.ne.s32.totalorder %s99, %s102
    %p108 = scmp.eq.s32.totalorder %s11, 0
    %p109 = por %p107, %p108
    %p110 = scmp.ne.s32.totalorder %s99, %s102
    %p111 = scmp.eq.s32.totalorder %s16, 1
    %p112 = por %p110, %p111
    %p113 = scmp.ne.s32.totalorder %s102, %s103
    %p114 = scmp.eq.s32.totalorder %s16, 0
    %p115 = por %p113, %p114
    %p116 = scmp.ne.s32.totalorder %s102, %s103
    %p117 = scmp.eq.s32.totalorder %s17, 1
    %p118 = por %p116, %p117
    %p120 = scmp.ne.s32.totalorder %s103, %s119
    %p121 = scmp.eq.s32.totalorder %s17, 0
    %p122 = por %p120, %p121
    %s123 = ssub.s32 %s11, %s18
    %p124 = scmp.eq.s32.totalorder %s123, 0
    %s126 = sadd.s32 %s125, 1
    %s127 = scalar_select %p124, %s125, %s126
    %p130 = pneg %p124
    %p131 = scmp.eq.s32.totalorder %s11, 1
    %p132 = por %p130, %p131
    %p133 = scmp.ne.s32.totalorder %s125, %s128
    %p134 = scmp.eq.s32.totalorder %s11, 0
    %p135 = por %p133, %p134
    %p136 = scmp.ne.s32.totalorder %s125, %s128
    %p137 = scmp.eq.s32.totalorder %s16, 1
    %p138 = por %p136, %p137
    %p139 = scmp.ne.s32.totalorder %s128, %s129
    %p140 = scmp.eq.s32.totalorder %s16, 0
    %p141 = por %p139, %p140
    %p142 = scmp.ne.s32.totalorder %s128, %s129
    %p143 = scmp.eq.s32.totalorder %s17, 1
    %p144 = por %p142, %p143
    %p146 = scmp.ne.s32.totalorder %s129, %s145
    %p147 = scmp.eq.s32.totalorder %s17, 0
    %p148 = por %p146, %p147
    %p149 = scmp.le.s32.totalorder 1, %s11
    %p150 = scmp.lt.s32.totalorder %s11, 3
    %p151 = pnand %p149, %p150
    %p152 = pneg %p151
    // Predicated region
    $region9: #{memnet_plus_forward.19} parent=5 // pred_check
      _
    $region10: #{memnet_plus_forward.19} parent=5 // pred_check_branch
      %154 = sbr.rel (%p151) target = $region12
    $region11: #{memnet_plus_forward.19} parent=5 // pred_region
      %s155 = ssub.s32 %s11, 1
    $region12: #{memnet_plus_forward.19} parent=5 // pred_fallthru
      _
    %p156 = scmp.lt.s32.totalorder %s11, 2
    // Predicated region
    $region13: #{memnet_plus_forward.19} parent=5 // pred_check
      %p157 = pneg %p156
    $region14: #{memnet_plus_forward.19} parent=5 // pred_check_branch
      %159 = sbr.rel (%p157) target = $region16
    $region15: #{memnet_plus_forward.19} parent=5 // pred_region
      // Predicated region
      $region17: #{memnet_plus_forward.19} parent=15 // pred_check
        %p160 = pneg %p31
      $region18: #{memnet_plus_forward.19} parent=15 // pred_check_branch
        %162 = sbr.rel (%p160) target = $region20
      $region19: #{memnet_plus_forward.19} parent=15 // pred_region
        %p163 = scmp.lt.s32.totalorder %s11, 1
        %s164 = scalar_select %p163, %s11, 1
        %s165 = smul.addr %s164, 8
        %s166 = smul.addr %s165, 2
        %s167 = scalar_lea.vmem %s0, %s166
      $region20: #{memnet_plus_forward.19} parent=15 // pred_fallthru
        _
      // Predicated region
      $region21: #{memnet_plus_forward.19} parent=15 // pred_check
        %p168 = pneg %p57
      $region22: #{memnet_plus_forward.19} parent=15 // pred_check_branch
        %170 = sbr.rel (%p168) target = $region24
      $region23: #{memnet_plus_forward.19} parent=15 // pred_region
        %p171 = scmp.lt.s32.totalorder %s11, 1
        %s172 = scalar_select %p171, %s11, 1
        %s173 = smul.addr %s172, 2
        %s174 = scalar_lea.vmem %s1, %s173
      $region24: #{memnet_plus_forward.19} parent=15 // pred_fallthru
        _
      // Predicated region
      $region25: #{memnet_plus_forward.19} parent=15 // pred_check
        %p175 = pneg %p83
      $region26: #{memnet_plus_forward.19} parent=15 // pred_check_branch
        %177 = sbr.rel (%p175) target = $region28
      $region27: #{memnet_plus_forward.19} parent=15 // pred_region
        %p178 = scmp.lt.s32.totalorder %s11, 1
        %s179 = scalar_select %p178, %s11, 1
        %s180 = smul.addr %s179, 4
        %s181 = smul.addr %s180, 8
        %s182 = scalar_lea.vmem %s2, %s181
      $region28: #{memnet_plus_forward.19} parent=15 // pred_fallthru
        _
    $region16: #{memnet_plus_forward.19} parent=5 // pred_fallthru
      _
    %p183 = scmp.le.s32.totalorder 1, %s11
    %p184 = scmp.lt.s32.totalorder %s11, 3
    %p185 = pnand %p183, %p184
    %p186 = pneg %p185
    // Predicated region
    $region29: #{memnet_plus_forward.19} parent=5 // pred_check
      _
    $region30: #{memnet_plus_forward.19} parent=5 // pred_check_branch
      %188 = sbr.rel (%p185) target = $region32
    $region31: #{memnet_plus_forward.19} parent=5 // pred_region
      %s189 = ssub.s32 %s11, 1
      %p190 = scmp.lt.s32.totalorder %s16, 1
      %s191 = scalar_select %p190, %s16, 1
      %s192 = smul.addr %s191, 8
      %s193 = smul.addr %s192, 2
      %s194 = scalar_lea.vmem %s0, %s193
      %p195 = pneg %p37
      %p196 = pneg %p34
      %p197 = scmp.lt.s32.totalorder %s16, 1
      %s198 = scalar_select %p197, %s16, 1
      %s199 = smul.addr %s198, 2
      %s200 = scalar_lea.vmem %s1, %s199
      %p201 = pneg %p63
      %p202 = pneg %p60
      %p203 = scmp.lt.s32.totalorder %s16, 1
      %s204 = scalar_select %p203, %s16, 1
      %s205 = smul.addr %s204, 4
      %s206 = smul.addr %s205, 8
      %s207 = scalar_lea.vmem %s2, %s206
      %p208 = pneg %p89
      %p209 = pneg %p86
      %p210 = pneg %p115
      %p211 = pneg %p112
      %p212 = scmp.lt.s32.totalorder %s16, 1
      %s213 = scalar_select %p212, %s16, 1
      %s214 = smul.addr %s213, 8
      %s215 = smul.addr %s214, 2
      %s216 = scalar_lea.vmem %s3, %s215
      %p217 = pneg %p141
      %p218 = pneg %p138
      %p219 = scmp.lt.s32.totalorder %s16, 1
      %s220 = scalar_select %p219, %s16, 1
      %s221 = smul.addr %s220, 2
      %s222 = scalar_lea.vmem %s4, %s221
      %p223 = scmp.lt.s32.totalorder %s16, 1
      %s224 = scalar_select %p223, %s16, 1
      %s225 = smul.addr %s224, 8
      %s226 = smul.addr %s225, 2
      %s227 = scalar_lea.vmem %s0, %s226
      %p228 = scmp.lt.s32.totalorder %s16, 1
      %s229 = scalar_select %p228, %s16, 1
      %s230 = smul.addr %s229, 2
      %s231 = scalar_lea.vmem %s1, %s230
      %p232 = scmp.lt.s32.totalorder %s16, 1
      %s233 = scalar_select %p232, %s16, 1
      %s234 = smul.addr %s233, 4
      %s235 = smul.addr %s234, 8
      %s236 = scalar_lea.vmem %s2, %s235
      %p237 = scmp.lt.s32.totalorder %s16, 1
      %s238 = scalar_select %p237, %s16, 1
      %s239 = smul.addr %s238, 8
      %s240 = smul.addr %s239, 2
      %s241 = scalar_lea.vmem %s3, %s240
      %p242 = scmp.lt.s32.totalorder %s16, 1
      %s243 = scalar_select %p242, %s16, 1
      %s244 = smul.addr %s243, 2
      %s245 = scalar_lea.vmem %s4, %s244
      loop: start=0, step=1, limit=8
      $region33: #{memnet_plus_forward.19} parent=31 // loop_pre_header
        _
      $region34: #{memnet_plus_forward.19} parent=31 // loop_header
        %s247 = sphi 0, %s251
        %p248 = scmp.ge.s32.totalorder %s247, 8
        %v252 = vphi 0.0, %v367
        %v253 = vphi 0.0, %v361
      $region35: #{memnet_plus_forward.19} parent=31 // loop_header_branch
        %250 = sbr.rel (%p248) target = $region39
      $region36: #{memnet_plus_forward.19} parent=31 // loop_body
        %s254 = smul.u32 %s247, 2
        %s255 = ssub.s32 7, %s254
        %s256 = smul.u32 %s16, %s255
        %s257 = sadd.s32 %s247, %s256
        %s258 = smul.u32 %s257, 2
        %s259 = scalar_lea.vmem %s227, %s258
        %v260 = vld [vmem:[%s259] sm:$0x3]
        %v261 = vld [vmem:[%s231] sm:$0x3]
        %v262 = vadd.f32 %v260, %v261
        %v263 = vld [vmem:[%s236] sm:$0xff]
        %v264 = vld [vmem:[%s236 + $0x8] sm:$0xff]
        %v265 = vld [vmem:[%s236 + $0x10] sm:$0xff]
        %v266 = vld [vmem:[%s236 + $0x18] sm:$0xff]
        %268 = vrot.lane.b32.xlu0 %v252, 32
        %v269 = vpop.permute.xlu0 %268
        %vm270 = vcmask 261120
        %v271 = vsel %vm270, %v269, 0
        %273 = vmatprep.subr.mxu0 0.0
        %274 = vmatpush1.msra.mxu0 %v263
        %275 = vmatprep.subr.mxu0 0.0
        %276 = vmatpush1.msra.mxu0 %v264
        %277 = vmatprep.subr.mxu0 0.0
        %278 = vmatpush1.msra.mxu0 %v265
        %279 = vmatprep.subr.mxu0 0.0
        %280 = vmatpush1.msra.mxu0 %v266
        %281 = vmatprep.subr.mxu0 0.0
        %282 = vmatpush1.msra.mxu0 0.0
        %283 = vmatprep.subr.mxu0 0.0
        %284 = vmatpush1.msra.mxu0 0.0
        %285 = vmatprep.subr.mxu0 0.0
        %286 = vmatpush1.msra.mxu0 0.0
        %287 = vmatprep.subr.mxu0 0.0
        %288 = vmatpush1.msra.mxu0 0.0
        %289 = vmatprep.subr.mxu0 0.0
        %290 = vmatpush1.msra.mxu0 0.0
        %291 = vmatprep.subr.mxu0 0.0
        %292 = vmatpush1.msra.mxu0 0.0
        %293 = vmatprep.subr.mxu0 0.0
        %294 = vmatpush1.msra.mxu0 0.0
        %295 = vmatprep.subr.mxu0 0.0
        %296 = vmatpush1.msra.mxu0 0.0
        %297 = vmatprep.subr.mxu0 0.0
        %298 = vmatpush1.msra.mxu0 0.0
        %299 = vmatprep.subr.mxu0 0.0
        %300 = vmatpush1.msra.mxu0 0.0
        %301 = vmatprep.subr.mxu0 0.0
        %302 = vmatpush1.msra.mxu0 0.0
        %303 = vmatprep.subr.mxu0 0.0
        %304 = vmatpush1.msra.mxu0 0.0
        %305 = vmatprep.subr.mxu0 0.0
        %306 = vmatpush1.msra.mxu0 0.0
        %307 = vmatprep.subr.mxu0 0.0
        %308 = vmatpush1.msra.mxu0 0.0
        %309 = vmatprep.subr.mxu0 0.0
        %310 = vmatpush1.msra.mxu0 0.0
        %311 = vmatprep.subr.mxu0 0.0
        %312 = vmatpush1.msra.mxu0 0.0
        %313 = vmatprep.subr.mxu0 0.0
        %314 = vmatpush1.msra.mxu0 0.0
        %315 = vmatprep.subr.mxu0 0.0
        %316 = vmatpush1.msra.mxu0 0.0
        %317 = vmatprep.subr.mxu0 0.0
        %318 = vmatpush1.msra.mxu0 0.0
        %319 = vmatprep.subr.mxu0 0.0
        %320 = vmatpush1.msra.mxu0 0.0
        %321 = vmatprep.subr.mxu0 0.0
        %322 = vmatpush1.msra.mxu0 0.0
        %323 = vmatprep.subr.mxu0 0.0
        %324 = vmatpush1.msra.mxu0 0.0
        %325 = vmatprep.subr.mxu0 0.0
        %326 = vmatpush1.msra.mxu0 0.0
        %327 = vmatprep.subr.mxu0 0.0
        %328 = vmatpush1.msra.mxu0 0.0
        %329 = vmatprep.subr.mxu0 0.0
        %330 = vmatpush1.msra.mxu0 0.0
        %331 = vmatprep.subr.mxu0 0.0
        %332 = vmatpush1.msra.mxu0 0.0
        %333 = vmatprep.subr.mxu0 0.0
        %334 = vmatpush1.msra.mxu0 0.0
        %335 = vmatprep.subr.mxu0 0.0
        %336 = vmatpush1.msra.mxu0 0.0
        %337 = vmatprep.mubr.f32.mxu0 0.0
        %338 = vmatmul.mubr.f32.gmra.mrb[0].mxu0 %v271
        %v339 = vpop.f32.mrb[0].mxu0
        %v340 = vadd.f32 0.0, %v339
        %v341 = vpop.f32.mrb[0].mxu0
        %342 = vdwg.mxu0
        %v343 = vadd.f32 %v262, %v340
        %v344 = vxor.u32 %v343, 2147483648
        %v345 = vmul.f32 %v344, 1.442695
        %v346 = vpow.pop %v345
        %v347 = vadd.f32 %v346, 1.0
        %v348 = vrcp.pop %v347
        %v349 = vmul.f32 1.0, %v348
        %v350 = vtanh.pop %v343
        %v351 = vmul.f32 %v349, %v253
        %353 = vrot.lane.b32.xlu0 %v350, 64
        %v354 = vpop.permute.xlu0 %353
        %v356 = vmul.f32 %v349, %v354
        %358 = vrot.lane.b32.xlu0 %v356, 32
        %v359 = vpop.permute.xlu0 %358
        %v361 = vadd.f32 %v351, %v359
        %v362 = vtanh.pop %v361
        %364 = vrot.lane.b32.xlu0 %v362, 64
        %v365 = vpop.permute.xlu0 %364
        %v367 = vmul.f32 %v349, %v365
        %369 = vrot.lane.b32.xlu0 %v367, 32
        %v370 = vpop.permute.xlu0 %369
        %s372 = scalar_lea.vmem %s241, %s258
        %vm373 = vcmask 254976
        %374 = vst.msk [vmem:[%s372] sm:$0x3] %vm373, %v370
      $region37: #{memnet_plus_forward.19} parent=31 // loop_footer
        %s251 = sadd.s32 1, %s247
      $region38: #{memnet_plus_forward.19} parent=31 // loop_footer_branch
        %246 = sbr.rel target = $region34
      $region39: #{memnet_plus_forward.19} parent=31 // loop_exit
        _
      %376 = vrot.lane.b32.xlu0 %v252, 32
      %v377 = vpop.permute.xlu0 %376
      %vm379 = vcmask 254976
      %380 = vst.msk [vmem:[%s245] sm:$0x3] %vm379, %v377
      %p381 = scmp.lt.s32.totalorder %s16, 1
      %s382 = scalar_select %p381, %s16, 1
      %s383 = smul.addr %s382, 8
      %s384 = smul.addr %s383, 2
      %s385 = scalar_lea.vmem %s3, %s384
      %p386 = scmp.lt.s32.totalorder %s16, 1
      %s387 = scalar_select %p386, %s16, 1
      %s388 = smul.addr %s387, 2
      %s389 = scalar_lea.vmem %s4, %s388
      // Predicated region
      $region40: #{memnet_plus_forward.19} parent=31 // pred_check
        %p390 = pneg %p112
      $region41: #{memnet_plus_forward.19} parent=31 // pred_check_branch
        %392 = sbr.rel (%p390) target = $region43
      $region42: #{memnet_plus_forward.19} parent=31 // pred_region
        _
      $region43: #{memnet_plus_forward.19} parent=31 // pred_fallthru
        _
      // Predicated region
      $region44: #{memnet_plus_forward.19} parent=31 // pred_check
        %p393 = pneg %p138
      $region45: #{memnet_plus_forward.19} parent=31 // pred_check_branch
        %395 = sbr.rel (%p393) target = $region47
      $region46: #{memnet_plus_forward.19} parent=31 // pred_region
        _
      $region47: #{memnet_plus_forward.19} parent=31 // pred_fallthru
        _
    $region32: #{memnet_plus_forward.19} parent=5 // pred_fallthru
      _
    %p396 = scmp.le.s32.totalorder 2, %s11
    // Predicated region
    $region48: #{memnet_plus_forward.19} parent=5 // pred_check
      %p397 = pneg %p396
    $region49: #{memnet_plus_forward.19} parent=5 // pred_check_branch
      %399 = sbr.rel (%p397) target = $region51
    $region50: #{memnet_plus_forward.19} parent=5 // pred_region
      %s400 = ssub.s32 %s11, 2
      // Predicated region
      $region52: #{memnet_plus_forward.19} parent=50 // pred_check
        %p401 = pneg %p118
      $region53: #{memnet_plus_forward.19} parent=50 // pred_check_branch
        %403 = sbr.rel (%p401) target = $region55
      $region54: #{memnet_plus_forward.19} parent=50 // pred_region
        %p404 = scmp.lt.s32.totalorder %s17, 1
        %s405 = scalar_select %p404, %s17, 1
        %s406 = smul.addr %s405, 8
        %s407 = smul.addr %s406, 2
        %s408 = scalar_lea.vmem %s3, %s407
      $region55: #{memnet_plus_forward.19} parent=50 // pred_fallthru
        _
      // Predicated region
      $region56: #{memnet_plus_forward.19} parent=50 // pred_check
        %p409 = pneg %p144
      $region57: #{memnet_plus_forward.19} parent=50 // pred_check_branch
        %411 = sbr.rel (%p409) target = $region59
      $region58: #{memnet_plus_forward.19} parent=50 // pred_region
        %p412 = scmp.lt.s32.totalorder %s17, 1
        %s413 = scalar_select %p412, %s17, 1
        %s414 = smul.addr %s413, 2
        %s415 = scalar_lea.vmem %s4, %s414
      $region59: #{memnet_plus_forward.19} parent=50 // pred_fallthru
        _
    $region51: #{memnet_plus_forward.19} parent=5 // pred_fallthru
      _
  $region6: #{memnet_plus_forward.19} parent=0 // loop_footer
    %s15 = sadd.s32 1, %s11
  $region7: #{memnet_plus_forward.19} parent=0 // loop_footer_branch
    %10 = sbr.rel target = $region3
  $region8: #{memnet_plus_forward.19} parent=0 // loop_exit
    _

// kernel: memnet_plus_forward.21
$region0: #{memnet_plus_forward.21}
  #allocation0 [shape = 'u32[]', space=smem, size = 0x4, offset = 0x4, fixed_abs, tag = 'smem constant byte address 0x4 - core index']
  #allocation1 [shape = 'u32[144,128]{1,0:T(1,128)}', space=vmem, size = 0x12000, scoped, tag = 'internal scratch']
  %s0 = inlined_call_operand.vmem [shape: f32[2,16,32], index: 0, kind: input, shape index: {}]
  %s1 = inlined_call_operand.vmem [shape: f32[1,32,10], index: 1, kind: input, shape index: {}]
  %s2 = inlined_call_operand.vmem [shape: f32[1,32,10], index: 2, kind: input, shape index: {}]
  %s3 = inlined_call_operand.vmem [shape: f32[1,1,10], index: 3, kind: input, shape index: {}]
  %s4 = inlined_call_operand.vmem [shape: f32[1,16,10], index: 4, kind: output, shape index: {}]
  %s5 = sld [smem:[#allocation0]]
  $region26: #{memnet_plus_forward.21} parent=0
    _
  %s7 = ssub.s32 1, %s5
  %s8 = scalar_select 0, %s7, %s5
  // Predicated region
  $region2: #{memnet_plus_forward.21} parent=0 // pred_check
    _
  $region3: #{memnet_plus_forward.21} parent=0 // pred_check_branch
    %10 = sbr.rel (0) target = $region5
  $region4: #{memnet_plus_forward.21} parent=0 // pred_region
    _
  $region5: #{memnet_plus_forward.21} parent=0 // pred_fallthru
    _
  // Predicated region
  $region6: #{memnet_plus_forward.21} parent=0 // pred_check
    _
  $region7: #{memnet_plus_forward.21} parent=0 // pred_check_branch
    %12 = sbr.rel (0) target = $region9
  $region8: #{memnet_plus_forward.21} parent=0 // pred_region
    _
  $region9: #{memnet_plus_forward.21} parent=0 // pred_fallthru
    _
  // Predicated region
  $region10: #{memnet_plus_forward.21} parent=0 // pred_check
    _
  $region11: #{memnet_plus_forward.21} parent=0 // pred_check_branch
    %14 = sbr.rel (0) target = $region13
  $region12: #{memnet_plus_forward.21} parent=0 // pred_region
    _
  $region13: #{memnet_plus_forward.21} parent=0 // pred_fallthru
    _
  // Predicated region
  $region14: #{memnet_plus_forward.21} parent=0 // pred_check
    _
  $region15: #{memnet_plus_forward.21} parent=0 // pred_check_branch
    %16 = sbr.rel (0) target = $region17
  $region16: #{memnet_plus_forward.21} parent=0 // pred_region
    _
  $region17: #{memnet_plus_forward.21} parent=0 // pred_fallthru
    _
  %v17 = vld [vmem:[%s0] sm:$0xff]
  %v18 = vld [vmem:[%s0 + $0x8] sm:$0xff]
  %v19 = vld [vmem:[%s1] sm:$0xff]
  %v20 = vld [vmem:[%s1 + $0x8] sm:$0xff]
  %v21 = vld [vmem:[%s1 + $0x10] sm:$0xff]
  %v22 = vld [vmem:[%s1 + $0x18] sm:$0xff]
  %s23 = scalar_lea.vmem %s0, 16
  %v24 = vld [vmem:[%s23] sm:$0xff]
  %v25 = vld [vmem:[%s23 + $0x8] sm:$0xff]
  %v26 = vld [vmem:[%s2] sm:$0xff]
  %v27 = vld [vmem:[%s2 + $0x8] sm:$0xff]
  %v28 = vld [vmem:[%s2 + $0x10] sm:$0xff]
  %v29 = vld [vmem:[%s2 + $0x18] sm:$0xff]
  %vm30 = vcmask 261120
  %v32 = vsel %vm30, %v24, 0
  %v35 = vsel %vm30, %v25, 0
  %37 = vmatprep.subr.mxu0 0.0
  %38 = vmatpush1.msra.mxu0 %v26
  %39 = vmatprep.subr.mxu0 0.0
  %40 = vmatpush1.msra.mxu0 %v27
  %41 = vmatprep.subr.mxu0 0.0
  %42 = vmatpush1.msra.mxu0 %v28
  %43 = vmatprep.subr.mxu0 0.0
  %44 = vmatpush1.msra.mxu0 %v29
  %45 = vmatprep.subr.mxu0 0.0
  %46 = vmatpush1.msra.mxu0 0.0
  %47 = vmatprep.subr.mxu0 0.0
  %48 = vmatpush1.msra.mxu0 0.0
  %49 = vmatprep.subr.mxu0 0.0
  %50 = vmatpush1.msra.mxu0 0.0
  %51 = vmatprep.subr.mxu0 0.0
  %52 = vmatpush1.msra.mxu0 0.0
  %53 = vmatprep.subr.mxu0 0.0
  %54 = vmatpush1.msra.mxu0 0.0
  %55 = vmatprep.subr.mxu0 0.0
  %56 = vmatpush1.msra.mxu0 0.0
  %57 = vmatprep.subr.mxu0 0.0
  %58 = vmatpush1.msra.mxu0 0.0
  %59 = vmatprep.subr.mxu0 0.0
  %60 = vmatpush1.msra.mxu0 0.0
  %61 = vmatprep.subr.mxu0 0.0
  %62 = vmatpush1.msra.mxu0 0.0
  %63 = vmatprep.subr.mxu0 0.0
  %64 = vmatpush1.msra.mxu0 0.0
  %65 = vmatprep.subr.mxu0 0.0
  %66 = vmatpush1.msra.mxu0 0.0
  %67 = vmatprep.subr.mxu0 0.0
  %68 = vmatpush1.msra.mxu0 0.0
  %69 = vmatprep.subr.mxu0 0.0
  %70 = vmatpush1.msra.mxu0 0.0
  %71 = vmatprep.subr.mxu0 0.0
  %72 = vmatpush1.msra.mxu0 0.0
  %73 = vmatprep.subr.mxu0 0.0
  %74 = vmatpush1.msra.mxu0 0.0
  %75 = vmatprep.subr.mxu0 0.0
  %76 = vmatpush1.msra.mxu0 0.0
  %77 = vmatprep.subr.mxu0 0.0
  %78 = vmatpush1.msra.mxu0 0.0
  %79 = vmatprep.subr.mxu0 0.0
  %80 = vmatpush1.msra.mxu0 0.0
  %81 = vmatprep.subr.mxu0 0.0
  %82 = vmatpush1.msra.mxu0 0.0
  %83 = vmatprep.subr.mxu0 0.0
  %84 = vmatpush1.msra.mxu0 0.0
  %85 = vmatprep.subr.mxu0 0.0
  %86 = vmatpush1.msra.mxu0 0.0
  %87 = vmatprep.subr.mxu0 0.0
  %88 = vmatpush1.msra.mxu0 0.0
  %89 = vmatprep.subr.mxu0 0.0
  %90 = vmatpush1.msra.mxu0 0.0
  %91 = vmatprep.subr.mxu0 0.0
  %92 = vmatpush1.msra.mxu0 0.0
  %93 = vmatprep.subr.mxu0 0.0
  %94 = vmatpush1.msra.mxu0 0.0
  %95 = vmatprep.subr.mxu0 0.0
  %96 = vmatpush1.msra.mxu0 0.0
  %97 = vmatprep.subr.mxu0 0.0
  %98 = vmatpush1.msra.mxu0 0.0
  %99 = vmatprep.subr.mxu0 0.0
  %100 = vmatpush1.msra.mxu0 0.0
  %101 = vmatprep.mubr.f32.mxu0 0.0
  %102 = vmatmul.mubr.f32.gmra.mrb[0].mxu0 %v32
  %v103 = vpop.f32.mrb[0].mxu0
  %v104 = vadd.f32 0.0, %v103
  %v105 = vpop.f32.mrb[0].mxu0
  %106 = vmatprep.mubr.f32.mxu0 0.0
  %107 = vmatmul.mubr.f32.gmra.mrb[0].mxu0 %v35
  %v108 = vpop.f32.mrb[0].mxu0
  %v109 = vadd.f32 0.0, %v108
  %v110 = vpop.f32.mrb[0].mxu0
  %111 = vdwg.mxu0
  %v113 = vsel %vm30, %v17, 0
  %v116 = vsel %vm30, %v18, 0
  %118 = vmatprep.subr.mxu0 0.0
  %119 = vmatpush1.msra.mxu0 %v19
  %120 = vmatprep.subr.mxu0 0.0
  %121 = vmatpush1.msra.mxu0 %v20
  %122 = vmatprep.subr.mxu0 0.0
  %123 = vmatpush1.msra.mxu0 %v21
  %124 = vmatprep.subr.mxu0 0.0
  %125 = vmatpush1.msra.mxu0 %v22
  %126 = vmatprep.subr.mxu0 0.0
  %127 = vmatpush1.msra.mxu0 0.0
  %128 = vmatprep.subr.mxu0 0.0
  %129 = vmatpush1.msra.mxu0 0.0
  %130 = vmatprep.subr.mxu0 0.0
  %131 = vmatpush1.msra.mxu0 0.0
  %132 = vmatprep.subr.mxu0 0.0
  %133 = vmatpush1.msra.mxu0 0.0
  %134 = vmatprep.subr.mxu0 0.0
  %135 = vmatpush1.msra.mxu0 0.0
  %136 = vmatprep.subr.mxu0 0.0
  %137 = vmatpush1.msra.mxu0 0.0
  %138 = vmatprep.subr.mxu0 0.0
  %139 = vmatpush1.msra.mxu0 0.0
  %140 = vmatprep.subr.mxu0 0.0
  %141 = vmatpush1.msra.mxu0 0.0
  %142 = vmatprep.subr.mxu0 0.0
  %143 = vmatpush1.msra.mxu0 0.0
  %144 = vmatprep.subr.mxu0 0.0
  %145 = vmatpush1.msra.mxu0 0.0
  %146 = vmatprep.subr.mxu0 0.0
  %147 = vmatpush1.msra.mxu0 0.0
  %148 = vmatprep.subr.mxu0 0.0
  %149 = vmatpush1.msra.mxu0 0.0
  %150 = vmatprep.subr.mxu0 0.0
  %151 = vmatpush1.msra.mxu0 0.0
  %152 = vmatprep.subr.mxu0 0.0
  %153 = vmatpush1.msra.mxu0 0.0
  %154 = vmatprep.subr.mxu0 0.0
  %155 = vmatpush1.msra.mxu0 0.0
  %156 = vmatprep.subr.mxu0 0.0
  %157 = vmatpush1.msra.mxu0 0.0
  %158 = vmatprep.subr.mxu0 0.0
  %159 = vmatpush1.msra.mxu0 0.0
  %160 = vmatprep.subr.mxu0 0.0
  %161 = vmatpush1.msra.mxu0 0.0
  %162 = vmatprep.subr.mxu0 0.0
  %163 = vmatpush1.msra.mxu0 0.0
  %164 = vmatprep.subr.mxu0 0.0
  %165 = vmatpush1.msra.mxu0 0.0
  %166 = vmatprep.subr.mxu0 0.0
  %167 = vmatpush1.msra.mxu0 0.0
  %168 = vmatprep.subr.mxu0 0.0
  %169 = vmatpush1.msra.mxu0 0.0
  %170 = vmatprep.subr.mxu0 0.0
  %171 = vmatpush1.msra.mxu0 0.0
  %172 = vmatprep.subr.mxu0 0.0
  %173 = vmatpush1.msra.mxu0 0.0
  %174 = vmatprep.subr.mxu0 0.0
  %175 = vmatpush1.msra.mxu0 0.0
  %176 = vmatprep.subr.mxu0 0.0
  %177 = vmatpush1.msra.mxu0 0.0
  %178 = vmatprep.subr.mxu0 0.0
  %179 = vmatpush1.msra.mxu0 0.0
  %180 = vmatprep.subr.mxu0 0.0
  %181 = vmatpush1.msra.mxu0 0.0
  %182 = vmatprep.mubr.f32.mxu0 0.0
  %183 = vmatmul.mubr.f32.gmra.mrb[0].mxu0 %v113
  %v184 = vpop.f32.mrb[0].mxu0
  %v185 = vadd.f32 %v104, %v184
  %v186 = vpop.f32.mrb[0].mxu0
  %187 = vmatprep.mubr.f32.mxu0 0.0
  %188 = vmatmul.mubr.f32.gmra.mrb[0].mxu0 %v116
  %v189 = vpop.f32.mrb[0].mxu0
  %v190 = vadd.f32 %v109, %v189
  %v191 = vpop.f32.mrb[0].mxu0
  %192 = vdwg.mxu0
  %v193 = vld [vmem:[%s3] sm:$0x1]
  %v195 = vlaneseq
  %v196 = vshrl.u32 %v195, 7
  %v197 = vsub.s32 0, %v196
  %v198 = vrot.slane %v193, %v197
  %v200 = vadd.f32 %v185, %v198
  %v201 = vadd.f32 %v190, %v198
  %vm202 = vcmask 80896
  %203 = vst.msk [vmem:[%s4] sm:$0xff] %vm202, %v200
  %204 = vst.msk [vmem:[%s4 + $0x8] sm:$0xff] %vm202, %v201
  // Predicated region
  $region18: #{memnet_plus_forward.21} parent=0 // pred_check
    _
  $region19: #{memnet_plus_forward.21} parent=0 // pred_check_branch
    %206 = sbr.rel (0) target = $region21
  $region20: #{memnet_plus_forward.21} parent=0 // pred_region
    _
  $region21: #{memnet_plus_forward.21} parent=0 // pred_fallthru
    _
  // Predicated region
  $region22: #{memnet_plus_forward.21} parent=0 // pred_check
    _
  $region23: #{memnet_plus_forward.21} parent=0 // pred_check_branch
    %208 = sbr.rel (0) target = $region25
  $region24: #{memnet_plus_forward.21} parent=0 // pred_region
    _
  $region25: #{memnet_plus_forward.21} parent=0 // pred_fallthru
    _

// kernel: memnet_plus_forward.20
$region0: #{memnet_plus_forward.20}
  #allocation0 [shape = 'u32[]', space=smem, size = 0x4, offset = 0x4, fixed_abs, tag = 'smem constant byte address 0x4 - core index']
  #allocation1 [shape = 'u32[144,128]{1,0:T(1,128)}', space=vmem, size = 0x12000, scoped, tag = 'internal scratch']
  %s0 = inlined_call_operand.vmem [shape: f32[2,2,32], index: 0, kind: input, shape index: {}]
  %s1 = inlined_call_operand.vmem [shape: f32[1,32,5], index: 1, kind: input, shape index: {}]
  %s2 = inlined_call_operand.vmem [shape: f32[1,32,5], index: 2, kind: input, shape index: {}]
  %s3 = inlined_call_operand.vmem [shape: f32[1,1,5], index: 3, kind: input, shape index: {}]
  %s4 = inlined_call_operand.hbm [shape: f32[1,2,5], index: 4, kind: output, shape index: {}]
  %s5 = sld [smem:[#allocation0]]
  $region26: #{memnet_plus_forward.20} parent=0
    _
  %s7 = ssub.s32 1, %s5
  %s8 = scalar_select 0, %s7, %s5
  $region1: #{memnet_plus_forward.20} parent=0
    #allocation2 [shape = 'u8[1024]{0}', space=vmem, size = 0x400, scoped, tag = 'output window, operand 0, single buffered']
    #allocation3 [shape = 's32[1]{0}', space=sflag, size = 0x4, scoped, tag = 'scoped memory for memnet_plus_forward.20']
    %9 = vsyncpa [#allocation3], 0
    // Predicated region
    $region2: #{memnet_plus_forward.20} parent=1 // pred_check
      _
    $region3: #{memnet_plus_forward.20} parent=1 // pred_check_branch
      %11 = sbr.rel (0) target = $region5
    $region4: #{memnet_plus_forward.20} parent=1 // pred_region
      _
    $region5: #{memnet_plus_forward.20} parent=1 // pred_fallthru
      _
    // Predicated region
    $region6: #{memnet_plus_forward.20} parent=1 // pred_check
      _
    $region7: #{memnet_plus_forward.20} parent=1 // pred_check_branch
      %13 = sbr.rel (0) target = $region9
    $region8: #{memnet_plus_forward.20} parent=1 // pred_region
      _
    $region9: #{memnet_plus_forward.20} parent=1 // pred_fallthru
      _
    // Predicated region
    $region10: #{memnet_plus_forward.20} parent=1 // pred_check
      _
    $region11: #{memnet_plus_forward.20} parent=1 // pred_check_branch
      %15 = sbr.rel (0) target = $region13
    $region12: #{memnet_plus_forward.20} parent=1 // pred_region
      _
    $region13: #{memnet_plus_forward.20} parent=1 // pred_fallthru
      _
    // Predicated region
    $region14: #{memnet_plus_forward.20} parent=1 // pred_check
      _
    $region15: #{memnet_plus_forward.20} parent=1 // pred_check_branch
      %17 = sbr.rel (0) target = $region17
    $region16: #{memnet_plus_forward.20} parent=1 // pred_region
      _
    $region17: #{memnet_plus_forward.20} parent=1 // pred_fallthru
      _
    %v18 = vld [vmem:[%s0] sm:$0x3]
    %v19 = vld [vmem:[%s1] sm:$0xff]
    %v20 = vld [vmem:[%s1 + $0x8] sm:$0xff]
    %v21 = vld [vmem:[%s1 + $0x10] sm:$0xff]
    %v22 = vld [vmem:[%s1 + $0x18] sm:$0xff]
    %s23 = scalar_lea.vmem %s0, 2
    %v24 = vld [vmem:[%s23] sm:$0x3]
    %v25 = vld [vmem:[%s2] sm:$0xff]
    %v26 = vld [vmem:[%s2 + $0x8] sm:$0xff]
    %v27 = vld [vmem:[%s2 + $0x10] sm:$0xff]
    %v28 = vld [vmem:[%s2 + $0x18] sm:$0xff]
    %vm29 = vcmask 261120
    %v31 = vsel %vm29, %v24, 0
    %33 = vmatprep.subr.mxu0 0.0
    %34 = vmatpush1.msra.mxu0 %v25
    %35 = vmatprep.subr.mxu0 0.0
    %36 = vmatpush1.msra.mxu0 %v26
    %37 = vmatprep.subr.mxu0 0.0
    %38 = vmatpush1.msra.mxu0 %v27
    %39 = vmatprep.subr.mxu0 0.0
    %40 = vmatpush1.msra.mxu0 %v28
    %41 = vmatprep.subr.mxu0 0.0
    %42 = vmatpush1.msra.mxu0 0.0
    %43 = vmatprep.subr.mxu0 0.0
    %44 = vmatpush1.msra.mxu0 0.0
    %45 = vmatprep.subr.mxu0 0.0
    %46 = vmatpush1.msra.mxu0 0.0
    %47 = vmatprep.subr.mxu0 0.0
    %48 = vmatpush1.msra.mxu0 0.0
    %49 = vmatprep.subr.mxu0 0.0
    %50 = vmatpush1.msra.mxu0 0.0
    %51 = vmatprep.subr.mxu0 0.0
    %52 = vmatpush1.msra.mxu0 0.0
    %53 = vmatprep.subr.mxu0 0.0
    %54 = vmatpush1.msra.mxu0 0.0
    %55 = vmatprep.subr.mxu0 0.0
    %56 = vmatpush1.msra.mxu0 0.0
    %57 = vmatprep.subr.mxu0 0.0
    %58 = vmatpush1.msra.mxu0 0.0
    %59 = vmatprep.subr.mxu0 0.0
    %60 = vmatpush1.msra.mxu0 0.0
    %61 = vmatprep.subr.mxu0 0.0
    %62 = vmatpush1.msra.mxu0 0.0
    %63 = vmatprep.subr.mxu0 0.0
    %64 = vmatpush1.msra.mxu0 0.0
    %65 = vmatprep.subr.mxu0 0.0
    %66 = vmatpush1.msra.mxu0 0.0
    %67 = vmatprep.subr.mxu0 0.0
    %68 = vmatpush1.msra.mxu0 0.0
    %69 = vmatprep.subr.mxu0 0.0
    %70 = vmatpush1.msra.mxu0 0.0
    %71 = vmatprep.subr.mxu0 0.0
    %72 = vmatpush1.msra.mxu0 0.0
    %73 = vmatprep.subr.mxu0 0.0
    %74 = vmatpush1.msra.mxu0 0.0
    %75 = vmatprep.subr.mxu0 0.0
    %76 = vmatpush1.msra.mxu0 0.0
    %77 = vmatprep.subr.mxu0 0.0
    %78 = vmatpush1.msra.mxu0 0.0
    %79 = vmatprep.subr.mxu0 0.0
    %80 = vmatpush1.msra.mxu0 0.0
    %81 = vmatprep.subr.mxu0 0.0
    %82 = vmatpush1.msra.mxu0 0.0
    %83 = vmatprep.subr.mxu0 0.0
    %84 = vmatpush1.msra.mxu0 0.0
    %85 = vmatprep.subr.mxu0 0.0
    %86 = vmatpush1.msra.mxu0 0.0
    %87 = vmatprep.subr.mxu0 0.0
    %88 = vmatpush1.msra.mxu0 0.0
    %89 = vmatprep.subr.mxu0 0.0
    %90 = vmatpush1.msra.mxu0 0.0
    %91 = vmatprep.subr.mxu0 0.0
    %92 = vmatpush1.msra.mxu0 0.0
    %93 = vmatprep.subr.mxu0 0.0
    %94 = vmatpush1.msra.mxu0 0.0
    %95 = vmatprep.subr.mxu0 0.0
    %96 = vmatpush1.msra.mxu0 0.0
    %97 = vmatprep.mubr.f32.mxu0 0.0
    %98 = vmatmul.mubr.f32.gmra.mrb[0].mxu0 %v31
    %v99 = vpop.f32.mrb[0].mxu0
    %v100 = vadd.f32 0.0, %v99
    %v101 = vpop.f32.mrb[0].mxu0
    %102 = vdwg.mxu0
    %v104 = vsel %vm29, %v18, 0
    %106 = vmatprep.subr.mxu0 0.0
    %107 = vmatpush1.msra.mxu0 %v19
    %108 = vmatprep.subr.mxu0 0.0
    %109 = vmatpush1.msra.mxu0 %v20
    %110 = vmatprep.subr.mxu0 0.0
    %111 = vmatpush1.msra.mxu0 %v21
    %112 = vmatprep.subr.mxu0 0.0
    %113 = vmatpush1.msra.mxu0 %v22
    %114 = vmatprep.subr.mxu0 0.0
    %115 = vmatpush1.msra.mxu0 0.0
    %116 = vmatprep.subr.mxu0 0.0
    %117 = vmatpush1.msra.mxu0 0.0
    %118 = vmatprep.subr.mxu0 0.0
    %119 = vmatpush1.msra.mxu0 0.0
    %120 = vmatprep.subr.mxu0 0.0
    %121 = vmatpush1.msra.mxu0 0.0
    %122 = vmatprep.subr.mxu0 0.0
    %123 = vmatpush1.msra.mxu0 0.0
    %124 = vmatprep.subr.mxu0 0.0
    %125 = vmatpush1.msra.mxu0 0.0
    %126 = vmatprep.subr.mxu0 0.0
    %127 = vmatpush1.msra.mxu0 0.0
    %128 = vmatprep.subr.mxu0 0.0
    %129 = vmatpush1.msra.mxu0 0.0
    %130 = vmatprep.subr.mxu0 0.0
    %131 = vmatpush1.msra.mxu0 0.0
    %132 = vmatprep.subr.mxu0 0.0
    %133 = vmatpush1.msra.mxu0 0.0
    %134 = vmatprep.subr.mxu0 0.0
    %135 = vmatpush1.msra.mxu0 0.0
    %136 = vmatprep.subr.mxu0 0.0
    %137 = vmatpush1.msra.mxu0 0.0
    %138 = vmatprep.subr.mxu0 0.0
    %139 = vmatpush1.msra.mxu0 0.0
    %140 = vmatprep.subr.mxu0 0.0
    %141 = vmatpush1.msra.mxu0 0.0
    %142 = vmatprep.subr.mxu0 0.0
    %143 = vmatpush1.msra.mxu0 0.0
    %144 = vmatprep.subr.mxu0 0.0
    %145 = vmatpush1.msra.mxu0 0.0
    %146 = vmatprep.subr.mxu0 0.0
    %147 = vmatpush1.msra.mxu0 0.0
    %148 = vmatprep.subr.mxu0 0.0
    %149 = vmatpush1.msra.mxu0 0.0
    %150 = vmatprep.subr.mxu0 0.0
    %151 = vmatpush1.msra.mxu0 0.0
    %152 = vmatprep.subr.mxu0 0.0
    %153 = vmatpush1.msra.mxu0 0.0
    %154 = vmatprep.subr.mxu0 0.0
    %155 = vmatpush1.msra.mxu0 0.0
    %156 = vmatprep.subr.mxu0 0.0
    %157 = vmatpush1.msra.mxu0 0.0
    %158 = vmatprep.subr.mxu0 0.0
    %159 = vmatpush1.msra.mxu0 0.0
    %160 = vmatprep.subr.mxu0 0.0
    %161 = vmatpush1.msra.mxu0 0.0
    %162 = vmatprep.subr.mxu0 0.0
    %163 = vmatpush1.msra.mxu0 0.0
    %164 = vmatprep.subr.mxu0 0.0
    %165 = vmatpush1.msra.mxu0 0.0
    %166 = vmatprep.subr.mxu0 0.0
    %167 = vmatpush1.msra.mxu0 0.0
    %168 = vmatprep.subr.mxu0 0.0
    %169 = vmatpush1.msra.mxu0 0.0
    %170 = vmatprep.mubr.f32.mxu0 0.0
    %171 = vmatmul.mubr.f32.gmra.mrb[0].mxu0 %v104
    %v172 = vpop.f32.mrb[0].mxu0
    %v173 = vadd.f32 %v100, %v172
    %v174 = vpop.f32.mrb[0].mxu0
    %175 = vdwg.mxu0
    %v176 = vld [vmem:[%s3] sm:$0x1]
    %v178 = vlaneseq
    %v179 = vshrl.u32 %v178, 7
    %v180 = vsub.s32 0, %v179
    %v181 = vrot.slane %v176, %v180
    %v183 = vadd.f32 %v173, %v181
    %vm184 = vcmask 33792
    %185 = vst.msk [vmem:[#allocation2] sm:$0x3] %vm184, %v183
    // Predicated region
    $region18: #{memnet_plus_forward.20} parent=1 // pred_check
      _
    $region19: #{memnet_plus_forward.20} parent=1 // pred_check_branch
      %187 = sbr.rel (0) target = $region21
    $region20: #{memnet_plus_forward.20} parent=1 // pred_region
      %s189 = ssub.s32 32, 32
      %190 = vsyncadd [#allocation3], %s189
      %s192 = sshll.u32 [#allocation2], 4
      %s193 = int_to_ptr.vmem [resolvable:$true] %s192
      %195 = dma.vmem_to_hbm [thread:$0]  %s193, 32, %s4, [#allocation3]
    $region21: #{memnet_plus_forward.20} parent=1 // pred_fallthru
      _
    // Predicated region
    $region22: #{memnet_plus_forward.20} parent=1 // pred_check
      _
    $region23: #{memnet_plus_forward.20} parent=1 // pred_check_branch
      %197 = sbr.rel (0) target = $region25
    $region24: #{memnet_plus_forward.20} parent=1 // pred_region
      %198 = dma.done [#allocation3], 32
    $region25: #{memnet_plus_forward.20} parent=1 // pred_fallthru
      _
    %199 = vsyncpa [#allocation3], 1

</llo_original>
